<compile_context>
chip_gen: v6e
topology: v6e:2x2x1
jax: 0.10.0
libtpu: 0.0.40
codegen_flags: <defaults>
</compile_context>

<pallas_src>
import functools

import jax
import jax.numpy as jnp
from jax.experimental import pallas as pl
from jax.experimental.pallas import tpu as pltpu

# Original 8 layers: (in, out) and whether a ReLU follows (matches the PyTorch module).
LAYER_DIMS = [
    (1024, 512), (512, 256), (256, 128), (128, 8),   # encoder
    (8, 128), (128, 256), (256, 512), (512, 1024),   # decoder
]
RELU_AFTER = [True, True, True, False, True, True, True, False]


def _round_up(x, m):
    return (x + m - 1) // m * m


def _autoencoder_kernel(x_ref, *refs, relu_flags):
    """Fused MLP forward. refs = (w0, b0, w1, b1, ..., wN, bN, o_ref)."""
    o_ref = refs[-1]
    wb = refs[:-1]
    h = x_ref[...].astype(jnp.float32)
    for li, do_relu in enumerate(relu_flags):
        w = wb[2 * li][...]          # bf16 (in, out)
        b = wb[2 * li + 1][...]      # f32  (1, out)
        # bf16 operands = MXU-native on v5e/v6e/v7x; accumulate in f32.
        h = jnp.dot(h.astype(jnp.bfloat16), w,
                    preferred_element_type=jnp.float32) + b
        if do_relu:
            h = jnp.maximum(h, 0.0)  # elementwise stays f32 (v5e VPU has no bf16)
    o_ref[...] = h.astype(o_ref.dtype)


def _fuse_bottleneck(params):
    """Fold Linear(128,8) -> Linear(8,128) into one exact 128x128 linear layer.

    Exact because no ReLU sits between them:
      relu((h @ W3 + b3) @ W4 + b4) == relu(h @ (W3 @ W4) + (b3 @ W4 + b4)).
    """
    fused, flags = [], []
    li = 0
    while li < len(params):
        if li == 3:
            (w3, b3), (w4, b4) = params[3], params[4]
            w = w3.astype(jnp.float32) @ w4.astype(jnp.float32)
            b = b3.astype(jnp.float32).reshape(1, -1) @ w4.astype(jnp.float32) \
                + b4.astype(jnp.float32).reshape(1, -1)
            fused.append((w, b))
            flags.append(RELU_AFTER[4])   # the ReLU that followed the 8->128 layer
            li = 5
        else:
            w, b = params[li]
            fused.append((w, b))
            flags.append(RELU_AFTER[li])
            li += 1
    return fused, flags


def autoencoder_forward(x, params, *, batch_tile=256, fuse_bottleneck=True):
    """x: (B, 1024) f32. params: 8 x (w, b) with w: (in,out), b: (1,out) (PyTorch W^T)."""
    B, d_in = x.shape
    assert d_in == 1024

    if fuse_bottleneck:
        layers, relu_flags = _fuse_bottleneck(params)
    else:
        layers, relu_flags = [(w, b) for (w, b) in params], list(RELU_AFTER)

    # bf16 weights halve VMEM residency / DMA and hit the MXU's native dtype.
    weights = [jnp.asarray(w, jnp.bfloat16) for (w, _) in layers]
    biases = [jnp.asarray(b, jnp.float32).reshape(1, -1) for (_, b) in layers]

    # Batch tile: large enough to fill the MXU M dimension, 8-row aligned,
    # and B is zero-padded up to a multiple of the tile (padded rows sliced off).
    tb = max(8, min(_round_up(batch_tile, 8), _round_up(B, 8)))
    b_pad = _round_up(B, tb)
    x_p = x if b_pad == B else jnp.pad(x, ((0, b_pad - B), (0, 0)))

    flat_params = []
    in_specs = [pl.BlockSpec((tb, 1024), lambda i: (i, 0))]  # x: batch-tiled
    for w, b in zip(weights, biases):
        flat_params.append(w)
        flat_params.append(b)
        # Constant block index for every grid step -> fetched once, stays resident.
        in_specs.append(pl.BlockSpec(w.shape, lambda i: (0, 0)))
        in_specs.append(pl.BlockSpec(b.shape, lambda i: (0, 0)))
        # TODO(synk): pipeline_mode=pl.Buffered(1) on the weight specs would drop the
        # redundant second buffer (~2.7 MiB bf16); skipped to keep compilation robust.
    out_spec = pl.BlockSpec((tb, 1024), lambda i: (i, 0))

    flops = 2 * b_pad * sum(w.shape[0] * w.shape[1] for w in weights)
    bytes_accessed = (
        sum(w.size * w.dtype.itemsize for w in weights)
        + sum(b.size * b.dtype.itemsize for b in biases)
        + x_p.size * x_p.dtype.itemsize
        + b_pad * 1024 * x.dtype.itemsize
    )

    kernel = functools.partial(_autoencoder_kernel, relu_flags=tuple(relu_flags))

    out = pl.pallas_call(
        kernel,
        out_shape=jax.ShapeDtypeStruct((b_pad, 1024), x.dtype),
        grid_spec=pltpu.PrefetchScalarGridSpec(
            num_scalar_prefetch=0,
            grid=(b_pad // tb,),
            in_specs=in_specs,
            out_specs=out_spec,
        ),
        compiler_params=pltpu.CompilerParams(
            dimension_semantics=("parallel",),        # megacore-shardable batch axis
            vmem_limit_bytes=48 * 1024 * 1024,        # fits v7x's 64 MiB VMEM
        ),
        cost_estimate=pl.CostEstimate(
            flops=int(flops), transcendentals=0, bytes_accessed=int(bytes_accessed)
        ),
    )(x_p, *flat_params)

    return out[:B] if b_pad != B else out


def init_params(key):
    """Deterministic synthetic params (same shapes/init style as nn.Linear)."""
    params = []
    for (d_in, d_out) in LAYER_DIMS:
        kw, kb, key = jax.random.split(key, 3)
        scale = 1.0 / jnp.sqrt(jnp.float32(d_in))
        w = jax.random.uniform(kw, (d_in, d_out), jnp.float32, -scale, scale)
        b = jax.random.uniform(kb, (1, d_out), jnp.float32, -scale, scale)
        params.append((w, b))
    return params


def reference_forward_f32(x, params):
    """Pure-f32 JAX reference of the original (unfused) module."""
    h = x.astype(jnp.float32)
    for (w, b), do_relu in zip(params, RELU_AFTER):
        h = h @ w.astype(jnp.float32) + b.astype(jnp.float32).reshape(1, -1)
        if do_relu:
            h = jnp.maximum(h, 0.0)
    return h


def reference_forward_matched(x, params):
    """Reference with the same numerics as the kernel (fused bottleneck + bf16 matmuls)."""
    layers, flags = _fuse_bottleneck(params)
    h = x.astype(jnp.float32)
    for (w, b), do_relu in zip(layers, flags):
        h = jnp.dot(h.astype(jnp.bfloat16), jnp.asarray(w, jnp.bfloat16),
                    preferred_element_type=jnp.float32)
        h = h + jnp.asarray(b, jnp.float32).reshape(1, -1)
        if do_relu:
            h = jnp.maximum(h, 0.0)
    return h


if __name__ == "__main__":
    key = jax.random.PRNGKey(0)
    kx_small, kx_big, kp = jax.random.split(key, 3)
    params = init_params(kp)

    # Small-shape check (B=8, single grid step).
    x_small = jax.random.normal(kx_small, (8, 1024), dtype=jnp.float32)
    out_small = jax.block_until_ready(autoencoder_forward(x_small, params))
    assert out_small.shape == (8, 1024)
    assert jnp.allclose(out_small, reference_forward_matched(x_small, params),
                        atol=2e-3, rtol=2e-3), "mismatch vs. bf16-matched reference"
    assert jnp.allclose(out_small, reference_forward_f32(x_small, params),
                        atol=5e-2, rtol=5e-2), "mismatch vs. f32 reference"

    # Larger batch exercising the 256-row tile, multi-step grid and padding path.
    x_big = jax.random.normal(kx_big, (500, 1024), dtype=jnp.float32)  # padded to 512
    out_big = jax.block_until_ready(
        autoencoder_forward(x_big, params, batch_tile=256))
    assert out_big.shape == (500, 1024)
    assert jnp.allclose(out_big, reference_forward_matched(x_big, params),
                        atol=2e-3, rtol=2e-3), "mismatch vs. bf16-matched reference (big)"

    print("KERNEL_OK")
</pallas_src>

<mosaic_0001>
module attributes {stable_mosaic.version = 11 : i64} {
  func.func @_autoencoder_kernel(%arg0: i32, %arg1: memref<8x1024xf32, #tpu.memory_space<vmem>>, %arg2: memref<1024x512xbf16, #tpu.memory_space<vmem>>, %arg3: memref<1x512xf32, #tpu.memory_space<vmem>>, %arg4: memref<512x256xbf16, #tpu.memory_space<vmem>>, %arg5: memref<1x256xf32, #tpu.memory_space<vmem>>, %arg6: memref<256x128xbf16, #tpu.memory_space<vmem>>, %arg7: memref<1x128xf32, #tpu.memory_space<vmem>>, %arg8: memref<128x128xbf16, #tpu.memory_space<vmem>>, %arg9: memref<1x128xf32, #tpu.memory_space<vmem>>, %arg10: memref<128x256xbf16, #tpu.memory_space<vmem>>, %arg11: memref<1x256xf32, #tpu.memory_space<vmem>>, %arg12: memref<256x512xbf16, #tpu.memory_space<vmem>>, %arg13: memref<1x512xf32, #tpu.memory_space<vmem>>, %arg14: memref<512x1024xbf16, #tpu.memory_space<vmem>>, %arg15: memref<1x1024xf32, #tpu.memory_space<vmem>>, %arg16: memref<8x1024xf32, #tpu.memory_space<vmem>>) attributes {dimension_semantics = [#tpu.dimension_semantics<parallel>], iteration_bounds = array<i64: 1>, scalar_prefetch = 0 : i64, scratch_operands = 0 : i64, tpu.core_type = #tpu.core_type<tc>, window_params = [{transform_indices = @transform_0, window_bounds = array<i64: 8, 1024>}, {pipeline_mode = #tpu.pipeline_mode<synchronous>, transform_indices = @transform_1, window_bounds = array<i64: 1024, 512>}, {pipeline_mode = #tpu.pipeline_mode<synchronous>, transform_indices = @transform_2, window_bounds = array<i64: 1, 512>}, {pipeline_mode = #tpu.pipeline_mode<synchronous>, transform_indices = @transform_3, window_bounds = array<i64: 512, 256>}, {pipeline_mode = #tpu.pipeline_mode<synchronous>, transform_indices = @transform_4, window_bounds = array<i64: 1, 256>}, {pipeline_mode = #tpu.pipeline_mode<synchronous>, transform_indices = @transform_5, window_bounds = array<i64: 256, 128>}, {pipeline_mode = #tpu.pipeline_mode<synchronous>, transform_indices = @transform_6, window_bounds = array<i64: 1, 128>}, {pipeline_mode = #tpu.pipeline_mode<synchronous>, transform_indices = @transform_7, window_bounds = array<i64: 128, 128>}, {pipeline_mode = #tpu.pipeline_mode<synchronous>, transform_indices = @transform_8, window_bounds = array<i64: 1, 128>}, {pipeline_mode = #tpu.pipeline_mode<synchronous>, transform_indices = @transform_9, window_bounds = array<i64: 128, 256>}, {pipeline_mode = #tpu.pipeline_mode<synchronous>, transform_indices = @transform_10, window_bounds = array<i64: 1, 256>}, {pipeline_mode = #tpu.pipeline_mode<synchronous>, transform_indices = @transform_11, window_bounds = array<i64: 256, 512>}, {pipeline_mode = #tpu.pipeline_mode<synchronous>, transform_indices = @transform_12, window_bounds = array<i64: 1, 512>}, {pipeline_mode = #tpu.pipeline_mode<synchronous>, transform_indices = @transform_13, window_bounds = array<i64: 512, 1024>}, {pipeline_mode = #tpu.pipeline_mode<synchronous>, transform_indices = @transform_14, window_bounds = array<i64: 1, 1024>}, {transform_indices = @transform_15, window_bounds = array<i64: 8, 1024>}]} {
    %c0 = arith.constant 0 : index
    %c0_0 = arith.constant 0 : index
    %0 = vector.load %arg1[%c0, %c0_0] : memref<8x1024xf32, #tpu.memory_space<vmem>>, vector<8x1024xf32>
    %c0_1 = arith.constant 0 : index
    %c0_2 = arith.constant 0 : index
    %1 = vector.load %arg2[%c0_1, %c0_2] : memref<1024x512xbf16, #tpu.memory_space<vmem>>, vector<1024x512xbf16>
    %c0_3 = arith.constant 0 : index
    %c0_4 = arith.constant 0 : index
    %2 = vector.load %arg3[%c0_3, %c0_4] : memref<1x512xf32, #tpu.memory_space<vmem>>, vector<1x512xf32>
    %3 = arith.truncf %0 : vector<8x1024xf32> to vector<8x1024xbf16>
    %cst = arith.constant dense<0.000000e+00> : vector<8x512xf32>
    %4 = tpu.matmul %3, %1, %cst {dimension_numbers = #tpu.dot_dimension_numbers<[1], [0], [0], [1], [0, 0, 1, 1], [], []>} : vector<8x1024xbf16>, vector<1024x512xbf16>, vector<8x512xf32> -> vector<8x512xf32>
    %5 = vector.broadcast %2 : vector<1x512xf32> to vector<8x512xf32>
    %6 = arith.addf %4, %5 : vector<8x512xf32>
    %cst_5 = arith.constant 0.000000e+00 : f32
    %7 = vector.broadcast %cst_5 : f32 to vector<8x512xf32>
    %8 = arith.maximumf %6, %7 : vector<8x512xf32>
    %c0_6 = arith.constant 0 : index
    %c0_7 = arith.constant 0 : index
    %9 = vector.load %arg4[%c0_6, %c0_7] : memref<512x256xbf16, #tpu.memory_space<vmem>>, vector<512x256xbf16>
    %c0_8 = arith.constant 0 : index
    %c0_9 = arith.constant 0 : index
    %10 = vector.load %arg5[%c0_8, %c0_9] : memref<1x256xf32, #tpu.memory_space<vmem>>, vector<1x256xf32>
    %11 = arith.truncf %8 : vector<8x512xf32> to vector<8x512xbf16>
    %cst_10 = arith.constant dense<0.000000e+00> : vector<8x256xf32>
    %12 = tpu.matmul %11, %9, %cst_10 {dimension_numbers = #tpu.dot_dimension_numbers<[1], [0], [0], [1], [0, 0, 1, 1], [], []>} : vector<8x512xbf16>, vector<512x256xbf16>, vector<8x256xf32> -> vector<8x256xf32>
    %13 = vector.broadcast %10 : vector<1x256xf32> to vector<8x256xf32>
    %14 = arith.addf %12, %13 : vector<8x256xf32>
    %cst_11 = arith.constant 0.000000e+00 : f32
    %15 = vector.broadcast %cst_11 : f32 to vector<8x256xf32>
    %16 = arith.maximumf %14, %15 : vector<8x256xf32>
    %c0_12 = arith.constant 0 : index
    %c0_13 = arith.constant 0 : index
    %17 = vector.load %arg6[%c0_12, %c0_13] : memref<256x128xbf16, #tpu.memory_space<vmem>>, vector<256x128xbf16>
    %c0_14 = arith.constant 0 : index
    %c0_15 = arith.constant 0 : index
    %18 = vector.load %arg7[%c0_14, %c0_15] : memref<1x128xf32, #tpu.memory_space<vmem>>, vector<1x128xf32>
    %19 = arith.truncf %16 : vector<8x256xf32> to vector<8x256xbf16>
    %cst_16 = arith.constant dense<0.000000e+00> : vector<8x128xf32>
    %20 = tpu.matmul %19, %17, %cst_16 {dimension_numbers = #tpu.dot_dimension_numbers<[1], [0], [0], [1], [0, 0, 1, 1], [], []>} : vector<8x256xbf16>, vector<256x128xbf16>, vector<8x128xf32> -> vector<8x128xf32>
    %21 = vector.broadcast %18 : vector<1x128xf32> to vector<8x128xf32>
    %22 = arith.addf %20, %21 : vector<8x128xf32>
    %cst_17 = arith.constant 0.000000e+00 : f32
    %23 = vector.broadcast %cst_17 : f32 to vector<8x128xf32>
    %24 = arith.maximumf %22, %23 : vector<8x128xf32>
    %c0_18 = arith.constant 0 : index
    %c0_19 = arith.constant 0 : index
    %25 = vector.load %arg8[%c0_18, %c0_19] : memref<128x128xbf16, #tpu.memory_space<vmem>>, vector<128x128xbf16>
    %c0_20 = arith.constant 0 : index
    %c0_21 = arith.constant 0 : index
    %26 = vector.load %arg9[%c0_20, %c0_21] : memref<1x128xf32, #tpu.memory_space<vmem>>, vector<1x128xf32>
    %27 = arith.truncf %24 : vector<8x128xf32> to vector<8x128xbf16>
    %cst_22 = arith.constant dense<0.000000e+00> : vector<8x128xf32>
    %28 = tpu.matmul %27, %25, %cst_22 {dimension_numbers = #tpu.dot_dimension_numbers<[1], [0], [0], [1], [0, 0, 1, 1], [], []>} : vector<8x128xbf16>, vector<128x128xbf16>, vector<8x128xf32> -> vector<8x128xf32>
    %29 = vector.broadcast %26 : vector<1x128xf32> to vector<8x128xf32>
    %30 = arith.addf %28, %29 : vector<8x128xf32>
    %cst_23 = arith.constant 0.000000e+00 : f32
    %31 = vector.broadcast %cst_23 : f32 to vector<8x128xf32>
    %32 = arith.maximumf %30, %31 : vector<8x128xf32>
    %c0_24 = arith.constant 0 : index
    %c0_25 = arith.constant 0 : index
    %33 = vector.load %arg10[%c0_24, %c0_25] : memref<128x256xbf16, #tpu.memory_space<vmem>>, vector<128x256xbf16>
    %c0_26 = arith.constant 0 : index
    %c0_27 = arith.constant 0 : index
    %34 = vector.load %arg11[%c0_26, %c0_27] : memref<1x256xf32, #tpu.memory_space<vmem>>, vector<1x256xf32>
    %35 = arith.truncf %32 : vector<8x128xf32> to vector<8x128xbf16>
    %cst_28 = arith.constant dense<0.000000e+00> : vector<8x256xf32>
    %36 = tpu.matmul %35, %33, %cst_28 {dimension_numbers = #tpu.dot_dimension_numbers<[1], [0], [0], [1], [0, 0, 1, 1], [], []>} : vector<8x128xbf16>, vector<128x256xbf16>, vector<8x256xf32> -> vector<8x256xf32>
    %37 = vector.broadcast %34 : vector<1x256xf32> to vector<8x256xf32>
    %38 = arith.addf %36, %37 : vector<8x256xf32>
    %cst_29 = arith.constant 0.000000e+00 : f32
    %39 = vector.broadcast %cst_29 : f32 to vector<8x256xf32>
    %40 = arith.maximumf %38, %39 : vector<8x256xf32>
    %c0_30 = arith.constant 0 : index
    %c0_31 = arith.constant 0 : index
    %41 = vector.load %arg12[%c0_30, %c0_31] : memref<256x512xbf16, #tpu.memory_space<vmem>>, vector<256x512xbf16>
    %c0_32 = arith.constant 0 : index
    %c0_33 = arith.constant 0 : index
    %42 = vector.load %arg13[%c0_32, %c0_33] : memref<1x512xf32, #tpu.memory_space<vmem>>, vector<1x512xf32>
    %43 = arith.truncf %40 : vector<8x256xf32> to vector<8x256xbf16>
    %cst_34 = arith.constant dense<0.000000e+00> : vector<8x512xf32>
    %44 = tpu.matmul %43, %41, %cst_34 {dimension_numbers = #tpu.dot_dimension_numbers<[1], [0], [0], [1], [0, 0, 1, 1], [], []>} : vector<8x256xbf16>, vector<256x512xbf16>, vector<8x512xf32> -> vector<8x512xf32>
    %45 = vector.broadcast %42 : vector<1x512xf32> to vector<8x512xf32>
    %46 = arith.addf %44, %45 : vector<8x512xf32>
    %cst_35 = arith.constant 0.000000e+00 : f32
    %47 = vector.broadcast %cst_35 : f32 to vector<8x512xf32>
    %48 = arith.maximumf %46, %47 : vector<8x512xf32>
    %c0_36 = arith.constant 0 : index
    %c0_37 = arith.constant 0 : index
    %49 = vector.load %arg14[%c0_36, %c0_37] : memref<512x1024xbf16, #tpu.memory_space<vmem>>, vector<512x1024xbf16>
    %c0_38 = arith.constant 0 : index
    %c0_39 = arith.constant 0 : index
    %50 = vector.load %arg15[%c0_38, %c0_39] : memref<1x1024xf32, #tpu.memory_space<vmem>>, vector<1x1024xf32>
    %51 = arith.truncf %48 : vector<8x512xf32> to vector<8x512xbf16>
    %cst_40 = arith.constant dense<0.000000e+00> : vector<8x1024xf32>
    %52 = tpu.matmul %51, %49, %cst_40 {dimension_numbers = #tpu.dot_dimension_numbers<[1], [0], [0], [1], [0, 0, 1, 1], [], []>} : vector<8x512xbf16>, vector<512x1024xbf16>, vector<8x1024xf32> -> vector<8x1024xf32>
    %53 = vector.broadcast %50 : vector<1x1024xf32> to vector<8x1024xf32>
    %54 = arith.addf %52, %53 : vector<8x1024xf32>
    %c0_41 = arith.constant 0 : index
    %c0_42 = arith.constant 0 : index
    %55 = vector.load %arg16[%c0_41, %c0_42] : memref<8x1024xf32, #tpu.memory_space<vmem>>, vector<8x1024xf32>
    tpu.vector_store %arg16[%c0_41, %c0_42], %54 {strides = array<i32>} : memref<8x1024xf32, #tpu.memory_space<vmem>>, vector<8x1024xf32>,
    return
  }
  func.func @transform_0(%arg0: i32) -> (i32, i32) {
    %c0_i32 = arith.constant 0 : i32
    %c0_i32_0 = arith.constant 0 : i32
    return %arg0, %c0_i32 : i32, i32
  }
  func.func @transform_1(%arg0: i32) -> (i32, i32) {
    %c0_i32 = arith.constant 0 : i32
    %c0_i32_0 = arith.constant 0 : i32
    %c0_i32_1 = arith.constant 0 : i32
    return %c0_i32, %c0_i32_0 : i32, i32
  }
  func.func @transform_2(%arg0: i32) -> (i32, i32) {
    %c0_i32 = arith.constant 0 : i32
    %c0_i32_0 = arith.constant 0 : i32
    %c0_i32_1 = arith.constant 0 : i32
    return %c0_i32, %c0_i32_0 : i32, i32
  }
  func.func @transform_3(%arg0: i32) -> (i32, i32) {
    %c0_i32 = arith.constant 0 : i32
    %c0_i32_0 = arith.constant 0 : i32
    %c0_i32_1 = arith.constant 0 : i32
    return %c0_i32, %c0_i32_0 : i32, i32
  }
  func.func @transform_4(%arg0: i32) -> (i32, i32) {
    %c0_i32 = arith.constant 0 : i32
    %c0_i32_0 = arith.constant 0 : i32
    %c0_i32_1 = arith.constant 0 : i32
    return %c0_i32, %c0_i32_0 : i32, i32
  }
  func.func @transform_5(%arg0: i32) -> (i32, i32) {
    %c0_i32 = arith.constant 0 : i32
    %c0_i32_0 = arith.constant 0 : i32
    %c0_i32_1 = arith.constant 0 : i32
    return %c0_i32, %c0_i32_0 : i32, i32
  }
  func.func @transform_6(%arg0: i32) -> (i32, i32) {
    %c0_i32 = arith.constant 0 : i32
    %c0_i32_0 = arith.constant 0 : i32
    %c0_i32_1 = arith.constant 0 : i32
    return %c0_i32, %c0_i32_0 : i32, i32
  }
  func.func @transform_7(%arg0: i32) -> (i32, i32) {
    %c0_i32 = arith.constant 0 : i32
    %c0_i32_0 = arith.constant 0 : i32
    %c0_i32_1 = arith.constant 0 : i32
    return %c0_i32, %c0_i32_0 : i32, i32
  }
  func.func @transform_8(%arg0: i32) -> (i32, i32) {
    %c0_i32 = arith.constant 0 : i32
    %c0_i32_0 = arith.constant 0 : i32
    %c0_i32_1 = arith.constant 0 : i32
    return %c0_i32, %c0_i32_0 : i32, i32
  }
  func.func @transform_9(%arg0: i32) -> (i32, i32) {
    %c0_i32 = arith.constant 0 : i32
    %c0_i32_0 = arith.constant 0 : i32
    %c0_i32_1 = arith.constant 0 : i32
    return %c0_i32, %c0_i32_0 : i32, i32
  }
  func.func @transform_10(%arg0: i32) -> (i32, i32) {
    %c0_i32 = arith.constant 0 : i32
    %c0_i32_0 = arith.constant 0 : i32
    %c0_i32_1 = arith.constant 0 : i32
    return %c0_i32, %c0_i32_0 : i32, i32
  }
  func.func @transform_11(%arg0: i32) -> (i32, i32) {
    %c0_i32 = arith.constant 0 : i32
    %c0_i32_0 = arith.constant 0 : i32
    %c0_i32_1 = arith.constant 0 : i32
    return %c0_i32, %c0_i32_0 : i32, i32
  }
  func.func @transform_12(%arg0: i32) -> (i32, i32) {
    %c0_i32 = arith.constant 0 : i32
    %c0_i32_0 = arith.constant 0 : i32
    %c0_i32_1 = arith.constant 0 : i32
    return %c0_i32, %c0_i32_0 : i32, i32
  }
  func.func @transform_13(%arg0: i32) -> (i32, i32) {
    %c0_i32 = arith.constant 0 : i32
    %c0_i32_0 = arith.constant 0 : i32
    %c0_i32_1 = arith.constant 0 : i32
    return %c0_i32, %c0_i32_0 : i32, i32
  }
  func.func @transform_14(%arg0: i32) -> (i32, i32) {
    %c0_i32 = arith.constant 0 : i32
    %c0_i32_0 = arith.constant 0 : i32
    %c0_i32_1 = arith.constant 0 : i32
    return %c0_i32, %c0_i32_0 : i32, i32
  }
  func.func @transform_15(%arg0: i32) -> (i32, i32) {
    %c0_i32 = arith.constant 0 : i32
    %c0_i32_0 = arith.constant 0 : i32
    return %arg0, %c0_i32 : i32, i32
  }
}

</mosaic_0001>

<llo_original>
// kernel: tpu_custom_call.1
$region0: #{tpu_custom_call.1}
  #allocation0 [shape = 'u32[]', space=smem, size = 0x4, offset = 0x4, fixed_abs, tag = 'smem constant byte address 0x4 - core index']
  #allocation1 [shape = 'u32[144,128]{1,0:T(1,128)}', space=vmem, size = 0x12000, scoped, tag = 'internal scratch']
  %s0 = inlined_call_operand.hbm [shape: f32[8,1024], index: 0, kind: input, shape index: {}]
  %s1 = inlined_call_operand.hbm [shape: bf16[1024,512], index: 1, kind: input, shape index: {}]
  %s2 = inlined_call_operand.hbm [shape: f32[1,512], index: 2, kind: input, shape index: {}]
  %s3 = inlined_call_operand.hbm [shape: bf16[512,256], index: 3, kind: input, shape index: {}]
  %s4 = inlined_call_operand.vmem [shape: f32[1,256], index: 4, kind: input, shape index: {}]
  %s5 = inlined_call_operand.hbm [shape: bf16[256,128], index: 5, kind: input, shape index: {}]
  %s6 = inlined_call_operand.hbm [shape: f32[1,128], index: 6, kind: input, shape index: {}]
  %s7 = inlined_call_operand.hbm [shape: bf16[128,128], index: 7, kind: input, shape index: {}]
  %s8 = inlined_call_operand.hbm [shape: f32[1,128], index: 8, kind: input, shape index: {}]
  %s9 = inlined_call_operand.hbm [shape: bf16[128,256], index: 9, kind: input, shape index: {}]
  %s10 = inlined_call_operand.vmem [shape: f32[1,256], index: 10, kind: input, shape index: {}]
  %s11 = inlined_call_operand.hbm [shape: bf16[256,512], index: 11, kind: input, shape index: {}]
  %s12 = inlined_call_operand.vmem [shape: f32[1,512], index: 12, kind: input, shape index: {}]
  %s13 = inlined_call_operand.hbm [shape: bf16[512,1024], index: 13, kind: input, shape index: {}]
  %s14 = inlined_call_operand.vmem [shape: f32[1,1024], index: 14, kind: input, shape index: {}]
  %s15 = inlined_call_operand.hbm [shape: f32[8,1024], index: 15, kind: output, shape index: {}]
  %s16 = sld [smem:[#allocation0]]
  $region114: #{tpu_custom_call.1} parent=0
    _
  %s18 = ssub.s32 1, %s16
  %s19 = scalar_select 0, %s18, %s16
  $region1: #{tpu_custom_call.1} parent=0
    #allocation2 [shape = 'u8[32768]{0}', space=vmem, size = 0x8000, scoped, tag = 'input window, operand 0, single buffered']
    #allocation3 [shape = 's32[1]{0}', space=sflag, size = 0x4, scoped, tag = 'scoped memory for tpu_custom_call.1']
    #allocation4 [shape = 's32[1]{0}', space=sflag, size = 0x4, scoped, tag = 'scoped memory for tpu_custom_call.1']
    #allocation5 [shape = 'u8[1048576]{0}', space=vmem, size = 0x100000, scoped, tag = 'input window, operand 1, single buffered']
    #allocation6 [shape = 's32[1]{0}', space=sflag, size = 0x4, scoped, tag = 'scoped memory for tpu_custom_call.1']
    #allocation7 [shape = 'u8[2048]{0}', space=vmem, size = 0x800, scoped, tag = 'input window, operand 2, single buffered']
    #allocation8 [shape = 'u8[262144]{0}', space=vmem, size = 0x40000, scoped, tag = 'input window, operand 3, single buffered']
    #allocation9 [shape = 's32[1]{0}', space=sflag, size = 0x4, scoped, tag = 'scoped memory for tpu_custom_call.1']
    #allocation10 [shape = 'u8[65536]{0}', space=vmem, size = 0x10000, scoped, tag = 'input window, operand 5, single buffered']
    #allocation11 [shape = 'u8[512]{0}', space=vmem, size = 0x400, scoped, tag = 'input window, operand 6, single buffered']
    #allocation12 [shape = 's32[1]{0}', space=sflag, size = 0x4, scoped, tag = 'scoped memory for tpu_custom_call.1']
    #allocation13 [shape = 'u8[32768]{0}', space=vmem, size = 0x8000, scoped, tag = 'input window, operand 7, single buffered']
    #allocation14 [shape = 'u8[512]{0}', space=vmem, size = 0x400, scoped, tag = 'input window, operand 8, single buffered']
    #allocation15 [shape = 's32[1]{0}', space=sflag, size = 0x4, scoped, tag = 'scoped memory for tpu_custom_call.1']
    #allocation16 [shape = 'u8[65536]{0}', space=vmem, size = 0x10000, scoped, tag = 'input window, operand 9, single buffered']
    #allocation17 [shape = 'u8[262144]{0}', space=vmem, size = 0x40000, scoped, tag = 'input window, operand 11, single buffered']
    #allocation18 [shape = 's32[1]{0}', space=sflag, size = 0x4, scoped, tag = 'scoped memory for tpu_custom_call.1']
    #allocation19 [shape = 'u8[1048576]{0}', space=vmem, size = 0x100000, scoped, tag = 'input window, operand 13, single buffered']
    #allocation20 [shape = 'u8[32768]{0}', space=vmem, size = 0x8000, scoped, tag = 'output window, operand 0, single buffered']
    %20 = vsyncpa [#allocation3], 0
    %21 = vsyncpa [#allocation6], 0
    %22 = vsyncpa [#allocation9], 0
    %23 = vsyncpa [#allocation12], 0
    %24 = vsyncpa [#allocation15], 0
    %25 = vsyncpa [#allocation18], 0
    %26 = vsyncpa [#allocation4], 0
    // Predicated region
    $region2: #{tpu_custom_call.1} parent=1 // pred_check
      _
    $region3: #{tpu_custom_call.1} parent=1 // pred_check_branch
      %28 = sbr.rel (0) target = $region5
    $region4: #{tpu_custom_call.1} parent=1 // pred_region
      %s30 = ssub.s32 1024, 1024
      %31 = vsyncadd [#allocation3], %s30
      %s33 = sshll.u32 [#allocation2], 4
      %s34 = int_to_ptr.vmem [resolvable:$true] %s33
      %36 = dma.hbm_to_vmem [thread:$0]  %s0, 1024, %s34, [#allocation3]
    $region5: #{tpu_custom_call.1} parent=1 // pred_fallthru
      _
    // Predicated region
    $region6: #{tpu_custom_call.1} parent=1 // pred_check
      _
    $region7: #{tpu_custom_call.1} parent=1 // pred_check_branch
      %38 = sbr.rel (0) target = $region9
    $region8: #{tpu_custom_call.1} parent=1 // pred_region
      %s40 = ssub.s32 32768, 32768
      %41 = vsyncadd [#allocation6], %s40
      %s42 = sshll.u32 [#allocation5], 4
      %s43 = int_to_ptr.vmem [resolvable:$true] %s42
      %48 = dma.hbm_to_vmem [thread:$0]  %s1, 32768, %s43, [#allocation6], 256, 256, 16
    $region9: #{tpu_custom_call.1} parent=1 // pred_fallthru
      _
    // Predicated region
    $region10: #{tpu_custom_call.1} parent=1 // pred_check
      _
    $region11: #{tpu_custom_call.1} parent=1 // pred_check_branch
      %50 = sbr.rel (0) target = $region13
    $region12: #{tpu_custom_call.1} parent=1 // pred_region
      %s52 = ssub.s32 64, 64
      %53 = vsyncadd [#allocation6], %s52
      %s55 = sshll.u32 [#allocation7], 4
      %s56 = int_to_ptr.vmem [resolvable:$true] %s55
      %58 = dma.hbm_to_vmem [thread:$0]  %s2, 64, %s56, [#allocation6]
    $region13: #{tpu_custom_call.1} parent=1 // pred_fallthru
      _
    // Predicated region
    $region14: #{tpu_custom_call.1} parent=1 // pred_check
      _
    $region15: #{tpu_custom_call.1} parent=1 // pred_check_branch
      %60 = sbr.rel (0) target = $region17
    $region16: #{tpu_custom_call.1} parent=1 // pred_region
      %s62 = ssub.s32 8192, 8192
      %63 = vsyncadd [#allocation9], %s62
      %s64 = sshll.u32 [#allocation8], 4
      %s65 = int_to_ptr.vmem [resolvable:$true] %s64
      %70 = dma.hbm_to_vmem [thread:$0]  %s3, 8192, %s65, [#allocation9], 128, 128, 8
    $region17: #{tpu_custom_call.1} parent=1 // pred_fallthru
      _
    // Predicated region
    $region18: #{tpu_custom_call.1} parent=1 // pred_check
      _
    $region19: #{tpu_custom_call.1} parent=1 // pred_check_branch
      %72 = sbr.rel (0) target = $region21
    $region20: #{tpu_custom_call.1} parent=1 // pred_region
      _
    $region21: #{tpu_custom_call.1} parent=1 // pred_fallthru
      _
    // Predicated region
    $region22: #{tpu_custom_call.1} parent=1 // pred_check
      _
    $region23: #{tpu_custom_call.1} parent=1 // pred_check_branch
      %74 = sbr.rel (0) target = $region25
    $region24: #{tpu_custom_call.1} parent=1 // pred_region
      %s76 = ssub.s32 2048, 2048
      %77 = vsyncadd [#allocation9], %s76
      %s78 = sshll.u32 [#allocation10], 4
      %s79 = int_to_ptr.vmem [resolvable:$true] %s78
      %84 = dma.hbm_to_vmem [thread:$0]  %s5, 2048, %s79, [#allocation9], 64, 64, 4
    $region25: #{tpu_custom_call.1} parent=1 // pred_fallthru
      _
    // Predicated region
    $region26: #{tpu_custom_call.1} parent=1 // pred_check
      _
    $region27: #{tpu_custom_call.1} parent=1 // pred_check_branch
      %86 = sbr.rel (0) target = $region29
    $region28: #{tpu_custom_call.1} parent=1 // pred_region
      %s88 = ssub.s32 16, 16
      %89 = vsyncadd [#allocation12], %s88
      %s91 = sshll.u32 [#allocation11], 4
      %s92 = int_to_ptr.vmem [resolvable:$true] %s91
      %94 = dma.hbm_to_vmem [thread:$0]  %s6, 16, %s92, [#allocation12]
    $region29: #{tpu_custom_call.1} parent=1 // pred_fallthru
      _
    // Predicated region
    $region30: #{tpu_custom_call.1} parent=1 // pred_check
      _
    $region31: #{tpu_custom_call.1} parent=1 // pred_check_branch
      %96 = sbr.rel (0) target = $region33
    $region32: #{tpu_custom_call.1} parent=1 // pred_region
      %s98 = ssub.s32 1024, 1024
      %99 = vsyncadd [#allocation12], %s98
      %s100 = sshll.u32 [#allocation13], 4
      %s101 = int_to_ptr.vmem [resolvable:$true] %s100
      %106 = dma.hbm_to_vmem [thread:$0]  %s7, 1024, %s101, [#allocation12], 64, 64, 4
    $region33: #{tpu_custom_call.1} parent=1 // pred_fallthru
      _
    // Predicated region
    $region34: #{tpu_custom_call.1} parent=1 // pred_check
      _
    $region35: #{tpu_custom_call.1} parent=1 // pred_check_branch
      %108 = sbr.rel (0) target = $region37
    $region36: #{tpu_custom_call.1} parent=1 // pred_region
      %s110 = ssub.s32 16, 16
      %111 = vsyncadd [#allocation15], %s110
      %s113 = sshll.u32 [#allocation14], 4
      %s114 = int_to_ptr.vmem [resolvable:$true] %s113
      %116 = dma.hbm_to_vmem [thread:$0]  %s8, 16, %s114, [#allocation15]
    $region37: #{tpu_custom_call.1} parent=1 // pred_fallthru
      _
    // Predicated region
    $region38: #{tpu_custom_call.1} parent=1 // pred_check
      _
    $region39: #{tpu_custom_call.1} parent=1 // pred_check_branch
      %118 = sbr.rel (0) target = $region41
    $region40: #{tpu_custom_call.1} parent=1 // pred_region
      %s120 = ssub.s32 2048, 2048
      %121 = vsyncadd [#allocation15], %s120
      %s122 = sshll.u32 [#allocation16], 4
      %s123 = int_to_ptr.vmem [resolvable:$true] %s122
      %128 = dma.hbm_to_vmem [thread:$0]  %s9, 2048, %s123, [#allocation15], 128, 128, 8
    $region41: #{tpu_custom_call.1} parent=1 // pred_fallthru
      _
    // Predicated region
    $region42: #{tpu_custom_call.1} parent=1 // pred_check
      _
    $region43: #{tpu_custom_call.1} parent=1 // pred_check_branch
      %130 = sbr.rel (0) target = $region45
    $region44: #{tpu_custom_call.1} parent=1 // pred_region
      _
    $region45: #{tpu_custom_call.1} parent=1 // pred_fallthru
      _
    // Predicated region
    $region46: #{tpu_custom_call.1} parent=1 // pred_check
      _
    $region47: #{tpu_custom_call.1} parent=1 // pred_check_branch
      %132 = sbr.rel (0) target = $region49
    $region48: #{tpu_custom_call.1} parent=1 // pred_region
      %s134 = ssub.s32 8192, 8192
      %135 = vsyncadd [#allocation18], %s134
      %s136 = sshll.u32 [#allocation17], 4
      %s137 = int_to_ptr.vmem [resolvable:$true] %s136
      %142 = dma.hbm_to_vmem [thread:$0]  %s11, 8192, %s137, [#allocation18], 256, 256, 16
    $region49: #{tpu_custom_call.1} parent=1 // pred_fallthru
      _
    // Predicated region
    $region50: #{tpu_custom_call.1} parent=1 // pred_check
      _
    $region51: #{tpu_custom_call.1} parent=1 // pred_check_branch
      %144 = sbr.rel (0) target = $region53
    $region52: #{tpu_custom_call.1} parent=1 // pred_region
      _
    $region53: #{tpu_custom_call.1} parent=1 // pred_fallthru
      _
    // Predicated region
    $region54: #{tpu_custom_call.1} parent=1 // pred_check
      _
    $region55: #{tpu_custom_call.1} parent=1 // pred_check_branch
      %146 = sbr.rel (0) target = $region57
    $region56: #{tpu_custom_call.1} parent=1 // pred_region
      %s148 = ssub.s32 32768, 32768
      %149 = vsyncadd [#allocation18], %s148
      %s150 = sshll.u32 [#allocation19], 4
      %s151 = int_to_ptr.vmem [resolvable:$true] %s150
      %156 = dma.hbm_to_vmem [thread:$0]  %s13, 32768, %s151, [#allocation18], 512, 512, 32
    $region57: #{tpu_custom_call.1} parent=1 // pred_fallthru
      _
    // Predicated region
    $region58: #{tpu_custom_call.1} parent=1 // pred_check
      _
    $region59: #{tpu_custom_call.1} parent=1 // pred_check_branch
      %158 = sbr.rel (0) target = $region61
    $region60: #{tpu_custom_call.1} parent=1 // pred_region
      _
    $region61: #{tpu_custom_call.1} parent=1 // pred_fallthru
      _
    // Predicated region
    $region62: #{tpu_custom_call.1} parent=1 // pred_check
      _
    $region63: #{tpu_custom_call.1} parent=1 // pred_check_branch
      %160 = sbr.rel (0) target = $region65
    $region64: #{tpu_custom_call.1} parent=1 // pred_region
      %161 = dma.done [#allocation3], 1024
    $region65: #{tpu_custom_call.1} parent=1 // pred_fallthru
      _
    // Predicated region
    $region66: #{tpu_custom_call.1} parent=1 // pred_check
      _
    $region67: #{tpu_custom_call.1} parent=1 // pred_check_branch
      %163 = sbr.rel (0) target = $region69
    $region68: #{tpu_custom_call.1} parent=1 // pred_region
      %164 = dma.done [#allocation6], 32768
    $region69: #{tpu_custom_call.1} parent=1 // pred_fallthru
      _
    // Predicated region
    $region70: #{tpu_custom_call.1} parent=1 // pred_check
      _
    $region71: #{tpu_custom_call.1} parent=1 // pred_check_branch
      %166 = sbr.rel (0) target = $region73
    $region72: #{tpu_custom_call.1} parent=1 // pred_region
      %167 = dma.done [#allocation6], 64
    $region73: #{tpu_custom_call.1} parent=1 // pred_fallthru
      _
    // Predicated region
    $region74: #{tpu_custom_call.1} parent=1 // pred_check
      _
    $region75: #{tpu_custom_call.1} parent=1 // pred_check_branch
      %169 = sbr.rel (0) target = $region77
    $region76: #{tpu_custom_call.1} parent=1 // pred_region
      %170 = dma.done [#allocation9], 8192
    $region77: #{tpu_custom_call.1} parent=1 // pred_fallthru
      _
    // Predicated region
    $region78: #{tpu_custom_call.1} parent=1 // pred_check
      _
    $region79: #{tpu_custom_call.1} parent=1 // pred_check_branch
      %172 = sbr.rel (0) target = $region81
    $region80: #{tpu_custom_call.1} parent=1 // pred_region
      %173 = dma.done [#allocation9], 2048
    $region81: #{tpu_custom_call.1} parent=1 // pred_fallthru
      _
    // Predicated region
    $region82: #{tpu_custom_call.1} parent=1 // pred_check
      _
    $region83: #{tpu_custom_call.1} parent=1 // pred_check_branch
      %175 = sbr.rel (0) target = $region85
    $region84: #{tpu_custom_call.1} parent=1 // pred_region
      %176 = dma.done [#allocation12], 16
    $region85: #{tpu_custom_call.1} parent=1 // pred_fallthru
      _
    // Predicated region
    $region86: #{tpu_custom_call.1} parent=1 // pred_check
      _
    $region87: #{tpu_custom_call.1} parent=1 // pred_check_branch
      %178 = sbr.rel (0) target = $region89
    $region88: #{tpu_custom_call.1} parent=1 // pred_region
      %179 = dma.done [#allocation12], 1024
    $region89: #{tpu_custom_call.1} parent=1 // pred_fallthru
      _
    // Predicated region
    $region90: #{tpu_custom_call.1} parent=1 // pred_check
      _
    $region91: #{tpu_custom_call.1} parent=1 // pred_check_branch
      %181 = sbr.rel (0) target = $region93
    $region92: #{tpu_custom_call.1} parent=1 // pred_region
      %182 = dma.done [#allocation15], 16
    $region93: #{tpu_custom_call.1} parent=1 // pred_fallthru
      _
    // Predicated region
    $region94: #{tpu_custom_call.1} parent=1 // pred_check
      _
    $region95: #{tpu_custom_call.1} parent=1 // pred_check_branch
      %184 = sbr.rel (0) target = $region97
    $region96: #{tpu_custom_call.1} parent=1 // pred_region
      %185 = dma.done [#allocation15], 2048
    $region97: #{tpu_custom_call.1} parent=1 // pred_fallthru
      _
    // Predicated region
    $region98: #{tpu_custom_call.1} parent=1 // pred_check
      _
    $region99: #{tpu_custom_call.1} parent=1 // pred_check_branch
      %187 = sbr.rel (0) target = $region101
    $region100: #{tpu_custom_call.1} parent=1 // pred_region
      %188 = dma.done [#allocation18], 8192
    $region101: #{tpu_custom_call.1} parent=1 // pred_fallthru
      _
    // Predicated region
    $region102: #{tpu_custom_call.1} parent=1 // pred_check
      _
    $region103: #{tpu_custom_call.1} parent=1 // pred_check_branch
      %190 = sbr.rel (0) target = $region105
    $region104: #{tpu_custom_call.1} parent=1 // pred_region
      %191 = dma.done [#allocation18], 32768
    $region105: #{tpu_custom_call.1} parent=1 // pred_fallthru
      _
    %v193 = vld [vmem:[#allocation2] sm:$0xff]
    %v194 = vld [vmem:[#allocation2 + $0x8] sm:$0xff]
    %v195 = vld [vmem:[#allocation2 + $0x10] sm:$0xff]
    %v196 = vld [vmem:[#allocation2 + $0x18] sm:$0xff]
    %v197 = vld [vmem:[#allocation2 + $0x20] sm:$0xff]
    %v198 = vld [vmem:[#allocation2 + $0x28] sm:$0xff]
    %v199 = vld [vmem:[#allocation2 + $0x30] sm:$0xff]
    %v200 = vld [vmem:[#allocation2 + $0x38] sm:$0xff]
    %v201 = vld [vmem:[#allocation5] sm:$0xff]
    %v202 = vld [vmem:[#allocation5 + $0x8] sm:$0xff]
    %v203 = vld [vmem:[#allocation5 + $0x10] sm:$0xff]
    %v204 = vld [vmem:[#allocation5 + $0x18] sm:$0xff]
    %v205 = vld [vmem:[#allocation5 + $0x20] sm:$0xff]
    %v206 = vld [vmem:[#allocation5 + $0x28] sm:$0xff]
    %v207 = vld [vmem:[#allocation5 + $0x30] sm:$0xff]
    %v208 = vld [vmem:[#allocation5 + $0x38] sm:$0xff]
    %v209 = vld [vmem:[#allocation5 + $0x40] sm:$0xff]
    %v210 = vld [vmem:[#allocation5 + $0x48] sm:$0xff]
    %v211 = vld [vmem:[#allocation5 + $0x50] sm:$0xff]
    %v212 = vld [vmem:[#allocation5 + $0x58] sm:$0xff]
    %v213 = vld [vmem:[#allocation5 + $0x60] sm:$0xff]
    %v214 = vld [vmem:[#allocation5 + $0x68] sm:$0xff]
    %v215 = vld [vmem:[#allocation5 + $0x70] sm:$0xff]
    %v216 = vld [vmem:[#allocation5 + $0x78] sm:$0xff]
    %v217 = vld [vmem:[#allocation5 + $0x80] sm:$0xff]
    %v218 = vld [vmem:[#allocation5 + $0x88] sm:$0xff]
    %v219 = vld [vmem:[#allocation5 + $0x90] sm:$0xff]
    %v220 = vld [vmem:[#allocation5 + $0x98] sm:$0xff]
    %v221 = vld [vmem:[#allocation5 + $0xa0] sm:$0xff]
    %v222 = vld [vmem:[#allocation5 + $0xa8] sm:$0xff]
    %v223 = vld [vmem:[#allocation5 + $0xb0] sm:$0xff]
    %v224 = vld [vmem:[#allocation5 + $0xb8] sm:$0xff]
    %v225 = vld [vmem:[#allocation5 + $0xc0] sm:$0xff]
    %v226 = vld [vmem:[#allocation5 + $0xc8] sm:$0xff]
    %v227 = vld [vmem:[#allocation5 + $0xd0] sm:$0xff]
    %v228 = vld [vmem:[#allocation5 + $0xd8] sm:$0xff]
    %v229 = vld [vmem:[#allocation5 + $0xe0] sm:$0xff]
    %v230 = vld [vmem:[#allocation5 + $0xe8] sm:$0xff]
    %v231 = vld [vmem:[#allocation5 + $0xf0] sm:$0xff]
    %v232 = vld [vmem:[#allocation5 + $0xf8] sm:$0xff]
    %v233 = vld [vmem:[#allocation5 + $0x100] sm:$0xff]
    %v234 = vld [vmem:[#allocation5 + $0x108] sm:$0xff]
    %v235 = vld [vmem:[#allocation5 + $0x110] sm:$0xff]
    %v236 = vld [vmem:[#allocation5 + $0x118] sm:$0xff]
    %v237 = vld [vmem:[#allocation5 + $0x120] sm:$0xff]
    %v238 = vld [vmem:[#allocation5 + $0x128] sm:$0xff]
    %v239 = vld [vmem:[#allocation5 + $0x130] sm:$0xff]
    %v240 = vld [vmem:[#allocation5 + $0x138] sm:$0xff]
    %v241 = vld [vmem:[#allocation5 + $0x140] sm:$0xff]
    %v242 = vld [vmem:[#allocation5 + $0x148] sm:$0xff]
    %v243 = vld [vmem:[#allocation5 + $0x150] sm:$0xff]
    %v244 = vld [vmem:[#allocation5 + $0x158] sm:$0xff]
    %v245 = vld [vmem:[#allocation5 + $0x160] sm:$0xff]
    %v246 = vld [vmem:[#allocation5 + $0x168] sm:$0xff]
    %v247 = vld [vmem:[#allocation5 + $0x170] sm:$0xff]
    %v248 = vld [vmem:[#allocation5 + $0x178] sm:$0xff]
    %v249 = vld [vmem:[#allocation5 + $0x180] sm:$0xff]
    %v250 = vld [vmem:[#allocation5 + $0x188] sm:$0xff]
    %v251 = vld [vmem:[#allocation5 + $0x190] sm:$0xff]
    %v252 = vld [vmem:[#allocation5 + $0x198] sm:$0xff]
    %v253 = vld [vmem:[#allocation5 + $0x1a0] sm:$0xff]
    %v254 = vld [vmem:[#allocation5 + $0x1a8] sm:$0xff]
    %v255 = vld [vmem:[#allocation5 + $0x1b0] sm:$0xff]
    %v256 = vld [vmem:[#allocation5 + $0x1b8] sm:$0xff]
    %v257 = vld [vmem:[#allocation5 + $0x1c0] sm:$0xff]
    %v258 = vld [vmem:[#allocation5 + $0x1c8] sm:$0xff]
    %v259 = vld [vmem:[#allocation5 + $0x1d0] sm:$0xff]
    %v260 = vld [vmem:[#allocation5 + $0x1d8] sm:$0xff]
    %v261 = vld [vmem:[#allocation5 + $0x1e0] sm:$0xff]
    %v262 = vld [vmem:[#allocation5 + $0x1e8] sm:$0xff]
    %v263 = vld [vmem:[#allocation5 + $0x1f0] sm:$0xff]
    %v264 = vld [vmem:[#allocation5 + $0x1f8] sm:$0xff]
    %v265 = vld [vmem:[#allocation5 + $0x200] sm:$0xff]
    %v266 = vld [vmem:[#allocation5 + $0x208] sm:$0xff]
    %v267 = vld [vmem:[#allocation5 + $0x210] sm:$0xff]
    %v268 = vld [vmem:[#allocation5 + $0x218] sm:$0xff]
    %v269 = vld [vmem:[#allocation5 + $0x220] sm:$0xff]
    %v270 = vld [vmem:[#allocation5 + $0x228] sm:$0xff]
    %v271 = vld [vmem:[#allocation5 + $0x230] sm:$0xff]
    %v272 = vld [vmem:[#allocation5 + $0x238] sm:$0xff]
    %v273 = vld [vmem:[#allocation5 + $0x240] sm:$0xff]
    %v274 = vld [vmem:[#allocation5 + $0x248] sm:$0xff]
    %v275 = vld [vmem:[#allocation5 + $0x250] sm:$0xff]
    %v276 = vld [vmem:[#allocation5 + $0x258] sm:$0xff]
    %v277 = vld [vmem:[#allocation5 + $0x260] sm:$0xff]
    %v278 = vld [vmem:[#allocation5 + $0x268] sm:$0xff]
    %v279 = vld [vmem:[#allocation5 + $0x270] sm:$0xff]
    %v280 = vld [vmem:[#allocation5 + $0x278] sm:$0xff]
    %v281 = vld [vmem:[#allocation5 + $0x280] sm:$0xff]
    %v282 = vld [vmem:[#allocation5 + $0x288] sm:$0xff]
    %v283 = vld [vmem:[#allocation5 + $0x290] sm:$0xff]
    %v284 = vld [vmem:[#allocation5 + $0x298] sm:$0xff]
    %v285 = vld [vmem:[#allocation5 + $0x2a0] sm:$0xff]
    %v286 = vld [vmem:[#allocation5 + $0x2a8] sm:$0xff]
    %v287 = vld [vmem:[#allocation5 + $0x2b0] sm:$0xff]
    %v288 = vld [vmem:[#allocation5 + $0x2b8] sm:$0xff]
    %v289 = vld [vmem:[#allocation5 + $0x2c0] sm:$0xff]
    %v290 = vld [vmem:[#allocation5 + $0x2c8] sm:$0xff]
    %v291 = vld [vmem:[#allocation5 + $0x2d0] sm:$0xff]
    %v292 = vld [vmem:[#allocation5 + $0x2d8] sm:$0xff]
    %v293 = vld [vmem:[#allocation5 + $0x2e0] sm:$0xff]
    %v294 = vld [vmem:[#allocation5 + $0x2e8] sm:$0xff]
    %v295 = vld [vmem:[#allocation5 + $0x2f0] sm:$0xff]
    %v296 = vld [vmem:[#allocation5 + $0x2f8] sm:$0xff]
    %v297 = vld [vmem:[#allocation5 + $0x300] sm:$0xff]
    %v298 = vld [vmem:[#allocation5 + $0x308] sm:$0xff]
    %v299 = vld [vmem:[#allocation5 + $0x310] sm:$0xff]
    %v300 = vld [vmem:[#allocation5 + $0x318] sm:$0xff]
    %v301 = vld [vmem:[#allocation5 + $0x320] sm:$0xff]
    %v302 = vld [vmem:[#allocation5 + $0x328] sm:$0xff]
    %v303 = vld [vmem:[#allocation5 + $0x330] sm:$0xff]
    %v304 = vld [vmem:[#allocation5 + $0x338] sm:$0xff]
    %v305 = vld [vmem:[#allocation5 + $0x340] sm:$0xff]
    %v306 = vld [vmem:[#allocation5 + $0x348] sm:$0xff]
    %v307 = vld [vmem:[#allocation5 + $0x350] sm:$0xff]
    %v308 = vld [vmem:[#allocation5 + $0x358] sm:$0xff]
    %v309 = vld [vmem:[#allocation5 + $0x360] sm:$0xff]
    %v310 = vld [vmem:[#allocation5 + $0x368] sm:$0xff]
    %v311 = vld [vmem:[#allocation5 + $0x370] sm:$0xff]
    %v312 = vld [vmem:[#allocation5 + $0x378] sm:$0xff]
    %v313 = vld [vmem:[#allocation5 + $0x380] sm:$0xff]
    %v314 = vld [vmem:[#allocation5 + $0x388] sm:$0xff]
    %v315 = vld [vmem:[#allocation5 + $0x390] sm:$0xff]
    %v316 = vld [vmem:[#allocation5 + $0x398] sm:$0xff]
    %v317 = vld [vmem:[#allocation5 + $0x3a0] sm:$0xff]
    %v318 = vld [vmem:[#allocation5 + $0x3a8] sm:$0xff]
    %v319 = vld [vmem:[#allocation5 + $0x3b0] sm:$0xff]
    %v320 = vld [vmem:[#allocation5 + $0x3b8] sm:$0xff]
    %v321 = vld [vmem:[#allocation5 + $0x3c0] sm:$0xff]
    %v322 = vld [vmem:[#allocation5 + $0x3c8] sm:$0xff]
    %v323 = vld [vmem:[#allocation5 + $0x3d0] sm:$0xff]
    %v324 = vld [vmem:[#allocation5 + $0x3d8] sm:$0xff]
    %v325 = vld [vmem:[#allocation5 + $0x3e0] sm:$0xff]
    %v326 = vld [vmem:[#allocation5 + $0x3e8] sm:$0xff]
    %v327 = vld [vmem:[#allocation5 + $0x3f0] sm:$0xff]
    %v328 = vld [vmem:[#allocation5 + $0x3f8] sm:$0xff]
    %v329 = vld [vmem:[#allocation5 + $0x400] sm:$0xff]
    %v330 = vld [vmem:[#allocation5 + $0x408] sm:$0xff]
    %v331 = vld [vmem:[#allocation5 + $0x410] sm:$0xff]
    %v332 = vld [vmem:[#allocation5 + $0x418] sm:$0xff]
    %v333 = vld [vmem:[#allocation5 + $0x420] sm:$0xff]
    %v334 = vld [vmem:[#allocation5 + $0x428] sm:$0xff]
    %v335 = vld [vmem:[#allocation5 + $0x430] sm:$0xff]
    %v336 = vld [vmem:[#allocation5 + $0x438] sm:$0xff]
    %v337 = vld [vmem:[#allocation5 + $0x440] sm:$0xff]
    %v338 = vld [vmem:[#allocation5 + $0x448] sm:$0xff]
    %v339 = vld [vmem:[#allocation5 + $0x450] sm:$0xff]
    %v340 = vld [vmem:[#allocation5 + $0x458] sm:$0xff]
    %v341 = vld [vmem:[#allocation5 + $0x460] sm:$0xff]
    %v342 = vld [vmem:[#allocation5 + $0x468] sm:$0xff]
    %v343 = vld [vmem:[#allocation5 + $0x470] sm:$0xff]
    %v344 = vld [vmem:[#allocation5 + $0x478] sm:$0xff]
    %v345 = vld [vmem:[#allocation5 + $0x480] sm:$0xff]
    %v346 = vld [vmem:[#allocation5 + $0x488] sm:$0xff]
    %v347 = vld [vmem:[#allocation5 + $0x490] sm:$0xff]
    %v348 = vld [vmem:[#allocation5 + $0x498] sm:$0xff]
    %v349 = vld [vmem:[#allocation5 + $0x4a0] sm:$0xff]
    %v350 = vld [vmem:[#allocation5 + $0x4a8] sm:$0xff]
    %v351 = vld [vmem:[#allocation5 + $0x4b0] sm:$0xff]
    %v352 = vld [vmem:[#allocation5 + $0x4b8] sm:$0xff]
    %v353 = vld [vmem:[#allocation5 + $0x4c0] sm:$0xff]
    %v354 = vld [vmem:[#allocation5 + $0x4c8] sm:$0xff]
    %v355 = vld [vmem:[#allocation5 + $0x4d0] sm:$0xff]
    %v356 = vld [vmem:[#allocation5 + $0x4d8] sm:$0xff]
    %v357 = vld [vmem:[#allocation5 + $0x4e0] sm:$0xff]
    %v358 = vld [vmem:[#allocation5 + $0x4e8] sm:$0xff]
    %v359 = vld [vmem:[#allocation5 + $0x4f0] sm:$0xff]
    %v360 = vld [vmem:[#allocation5 + $0x4f8] sm:$0xff]
    %v361 = vld [vmem:[#allocation5 + $0x500] sm:$0xff]
    %v362 = vld [vmem:[#allocation5 + $0x508] sm:$0xff]
    %v363 = vld [vmem:[#allocation5 + $0x510] sm:$0xff]
    %v364 = vld [vmem:[#allocation5 + $0x518] sm:$0xff]
    %v365 = vld [vmem:[#allocation5 + $0x520] sm:$0xff]
    %v366 = vld [vmem:[#allocation5 + $0x528] sm:$0xff]
    %v367 = vld [vmem:[#allocation5 + $0x530] sm:$0xff]
    %v368 = vld [vmem:[#allocation5 + $0x538] sm:$0xff]
    %v369 = vld [vmem:[#allocation5 + $0x540] sm:$0xff]
    %v370 = vld [vmem:[#allocation5 + $0x548] sm:$0xff]
    %v371 = vld [vmem:[#allocation5 + $0x550] sm:$0xff]
    %v372 = vld [vmem:[#allocation5 + $0x558] sm:$0xff]
    %v373 = vld [vmem:[#allocation5 + $0x560] sm:$0xff]
    %v374 = vld [vmem:[#allocation5 + $0x568] sm:$0xff]
    %v375 = vld [vmem:[#allocation5 + $0x570] sm:$0xff]
    %v376 = vld [vmem:[#allocation5 + $0x578] sm:$0xff]
    %v377 = vld [vmem:[#allocation5 + $0x580] sm:$0xff]
    %v378 = vld [vmem:[#allocation5 + $0x588] sm:$0xff]
    %v379 = vld [vmem:[#allocation5 + $0x590] sm:$0xff]
    %v380 = vld [vmem:[#allocation5 + $0x598] sm:$0xff]
    %v381 = vld [vmem:[#allocation5 + $0x5a0] sm:$0xff]
    %v382 = vld [vmem:[#allocation5 + $0x5a8] sm:$0xff]
    %v383 = vld [vmem:[#allocation5 + $0x5b0] sm:$0xff]
    %v384 = vld [vmem:[#allocation5 + $0x5b8] sm:$0xff]
    %v385 = vld [vmem:[#allocation5 + $0x5c0] sm:$0xff]
    %v386 = vld [vmem:[#allocation5 + $0x5c8] sm:$0xff]
    %v387 = vld [vmem:[#allocation5 + $0x5d0] sm:$0xff]
    %v388 = vld [vmem:[#allocation5 + $0x5d8] sm:$0xff]
    %v389 = vld [vmem:[#allocation5 + $0x5e0] sm:$0xff]
    %v390 = vld [vmem:[#allocation5 + $0x5e8] sm:$0xff]
    %v391 = vld [vmem:[#allocation5 + $0x5f0] sm:$0xff]
    %v392 = vld [vmem:[#allocation5 + $0x5f8] sm:$0xff]
    %v393 = vld [vmem:[#allocation5 + $0x600] sm:$0xff]
    %v394 = vld [vmem:[#allocation5 + $0x608] sm:$0xff]
    %v395 = vld [vmem:[#allocation5 + $0x610] sm:$0xff]
    %v396 = vld [vmem:[#allocation5 + $0x618] sm:$0xff]
    %v397 = vld [vmem:[#allocation5 + $0x620] sm:$0xff]
    %v398 = vld [vmem:[#allocation5 + $0x628] sm:$0xff]
    %v399 = vld [vmem:[#allocation5 + $0x630] sm:$0xff]
    %v400 = vld [vmem:[#allocation5 + $0x638] sm:$0xff]
    %v401 = vld [vmem:[#allocation5 + $0x640] sm:$0xff]
    %v402 = vld [vmem:[#allocation5 + $0x648] sm:$0xff]
    %v403 = vld [vmem:[#allocation5 + $0x650] sm:$0xff]
    %v404 = vld [vmem:[#allocation5 + $0x658] sm:$0xff]
    %v405 = vld [vmem:[#allocation5 + $0x660] sm:$0xff]
    %v406 = vld [vmem:[#allocation5 + $0x668] sm:$0xff]
    %v407 = vld [vmem:[#allocation5 + $0x670] sm:$0xff]
    %v408 = vld [vmem:[#allocation5 + $0x678] sm:$0xff]
    %v409 = vld [vmem:[#allocation5 + $0x680] sm:$0xff]
    %v410 = vld [vmem:[#allocation5 + $0x688] sm:$0xff]
    %v411 = vld [vmem:[#allocation5 + $0x690] sm:$0xff]
    %v412 = vld [vmem:[#allocation5 + $0x698] sm:$0xff]
    %v413 = vld [vmem:[#allocation5 + $0x6a0] sm:$0xff]
    %v414 = vld [vmem:[#allocation5 + $0x6a8] sm:$0xff]
    %v415 = vld [vmem:[#allocation5 + $0x6b0] sm:$0xff]
    %v416 = vld [vmem:[#allocation5 + $0x6b8] sm:$0xff]
    %v417 = vld [vmem:[#allocation5 + $0x6c0] sm:$0xff]
    %v418 = vld [vmem:[#allocation5 + $0x6c8] sm:$0xff]
    %v419 = vld [vmem:[#allocation5 + $0x6d0] sm:$0xff]
    %v420 = vld [vmem:[#allocation5 + $0x6d8] sm:$0xff]
    %v421 = vld [vmem:[#allocation5 + $0x6e0] sm:$0xff]
    %v422 = vld [vmem:[#allocation5 + $0x6e8] sm:$0xff]
    %v423 = vld [vmem:[#allocation5 + $0x6f0] sm:$0xff]
    %v424 = vld [vmem:[#allocation5 + $0x6f8] sm:$0xff]
    %v425 = vld [vmem:[#allocation5 + $0x700] sm:$0xff]
    %v426 = vld [vmem:[#allocation5 + $0x708] sm:$0xff]
    %v427 = vld [vmem:[#allocation5 + $0x710] sm:$0xff]
    %v428 = vld [vmem:[#allocation5 + $0x718] sm:$0xff]
    %v429 = vld [vmem:[#allocation5 + $0x720] sm:$0xff]
    %v430 = vld [vmem:[#allocation5 + $0x728] sm:$0xff]
    %v431 = vld [vmem:[#allocation5 + $0x730] sm:$0xff]
    %v432 = vld [vmem:[#allocation5 + $0x738] sm:$0xff]
    %v433 = vld [vmem:[#allocation5 + $0x740] sm:$0xff]
    %v434 = vld [vmem:[#allocation5 + $0x748] sm:$0xff]
    %v435 = vld [vmem:[#allocation5 + $0x750] sm:$0xff]
    %v436 = vld [vmem:[#allocation5 + $0x758] sm:$0xff]
    %v437 = vld [vmem:[#allocation5 + $0x760] sm:$0xff]
    %v438 = vld [vmem:[#allocation5 + $0x768] sm:$0xff]
    %v439 = vld [vmem:[#allocation5 + $0x770] sm:$0xff]
    %v440 = vld [vmem:[#allocation5 + $0x778] sm:$0xff]
    %v441 = vld [vmem:[#allocation5 + $0x780] sm:$0xff]
    %v442 = vld [vmem:[#allocation5 + $0x788] sm:$0xff]
    %v443 = vld [vmem:[#allocation5 + $0x790] sm:$0xff]
    %v444 = vld [vmem:[#allocation5 + $0x798] sm:$0xff]
    %v445 = vld [vmem:[#allocation5 + $0x7a0] sm:$0xff]
    %v446 = vld [vmem:[#allocation5 + $0x7a8] sm:$0xff]
    %v447 = vld [vmem:[#allocation5 + $0x7b0] sm:$0xff]
    %v448 = vld [vmem:[#allocation5 + $0x7b8] sm:$0xff]
    %v449 = vld [vmem:[#allocation5 + $0x7c0] sm:$0xff]
    %v450 = vld [vmem:[#allocation5 + $0x7c8] sm:$0xff]
    %v451 = vld [vmem:[#allocation5 + $0x7d0] sm:$0xff]
    %v452 = vld [vmem:[#allocation5 + $0x7d8] sm:$0xff]
    %v453 = vld [vmem:[#allocation5 + $0x7e0] sm:$0xff]
    %v454 = vld [vmem:[#allocation5 + $0x7e8] sm:$0xff]
    %v455 = vld [vmem:[#allocation5 + $0x7f0] sm:$0xff]
    %v456 = vld [vmem:[#allocation5 + $0x7f8] sm:$0xff]
    %v457 = vld [vmem:[#allocation7] sm:$0xf]
    %v458 = vpack.c.bf16 %v193, %v193
    %v459 = vpack.c.bf16 %v194, %v194
    %v460 = vpack.c.bf16 %v195, %v195
    %v461 = vpack.c.bf16 %v196, %v196
    %v462 = vpack.c.bf16 %v197, %v197
    %v463 = vpack.c.bf16 %v198, %v198
    %v464 = vpack.c.bf16 %v199, %v199
    %v465 = vpack.c.bf16 %v200, %v200
    %v467 = vlaneseq
    %v468 = vshrl.u32 %v467, 7
    %v469 = vsub.s32 0, %v468
    %v470 = vrot.slane %v457, %v469
    %v471 = vlaneseq
    %v472 = vshrl.u32 %v471, 7
    %v473 = vsub.s32 1, %v472
    %v474 = vrot.slane %v457, %v473
    %v475 = vlaneseq
    %v476 = vshrl.u32 %v475, 7
    %v477 = vsub.s32 2, %v476
    %v478 = vrot.slane %v457, %v477
    %v479 = vlaneseq
    %v480 = vshrl.u32 %v479, 7
    %v481 = vsub.s32 3, %v480
    %v482 = vrot.slane %v457, %v481
    %v743 = vunpack.c.l.b16 %v201
    %v744 = vunpack.c.h.b16 %v201
    %v745 = vunpack.c.l.b16 %v202
    %v746 = vunpack.c.h.b16 %v202
    %v747 = vunpack.c.l.b16 %v203
    %v748 = vunpack.c.h.b16 %v203
    %v749 = vunpack.c.l.b16 %v204
    %v750 = vunpack.c.h.b16 %v204
    %v751 = vunpack.c.l.b16 %v205
    %v752 = vunpack.c.h.b16 %v205
    %v753 = vunpack.c.l.b16 %v206
    %v754 = vunpack.c.h.b16 %v206
    %v755 = vunpack.c.l.b16 %v207
    %v756 = vunpack.c.h.b16 %v207
    %v757 = vunpack.c.l.b16 %v208
    %v758 = vunpack.c.h.b16 %v208
    %v759 = vunpack.c.l.b16 %v209
    %v760 = vunpack.c.h.b16 %v209
    %v761 = vunpack.c.l.b16 %v210
    %v762 = vunpack.c.h.b16 %v210
    %v763 = vunpack.c.l.b16 %v211
    %v764 = vunpack.c.h.b16 %v211
    %v765 = vunpack.c.l.b16 %v212
    %v766 = vunpack.c.h.b16 %v212
    %v767 = vunpack.c.l.b16 %v213
    %v768 = vunpack.c.h.b16 %v213
    %v769 = vunpack.c.l.b16 %v214
    %v770 = vunpack.c.h.b16 %v214
    %v771 = vunpack.c.l.b16 %v215
    %v772 = vunpack.c.h.b16 %v215
    %v773 = vunpack.c.l.b16 %v216
    %v774 = vunpack.c.h.b16 %v216
    %v775 = vunpack.c.l.b16 %v217
    %v776 = vunpack.c.h.b16 %v217
    %v777 = vunpack.c.l.b16 %v218
    %v778 = vunpack.c.h.b16 %v218
    %v779 = vunpack.c.l.b16 %v219
    %v780 = vunpack.c.h.b16 %v219
    %v781 = vunpack.c.l.b16 %v220
    %v782 = vunpack.c.h.b16 %v220
    %v783 = vunpack.c.l.b16 %v221
    %v784 = vunpack.c.h.b16 %v221
    %v785 = vunpack.c.l.b16 %v222
    %v786 = vunpack.c.h.b16 %v222
    %v787 = vunpack.c.l.b16 %v223
    %v788 = vunpack.c.h.b16 %v223
    %v789 = vunpack.c.l.b16 %v224
    %v790 = vunpack.c.h.b16 %v224
    %v791 = vunpack.c.l.b16 %v225
    %v792 = vunpack.c.h.b16 %v225
    %v793 = vunpack.c.l.b16 %v226
    %v794 = vunpack.c.h.b16 %v226
    %v795 = vunpack.c.l.b16 %v227
    %v796 = vunpack.c.h.b16 %v227
    %v797 = vunpack.c.l.b16 %v228
    %v798 = vunpack.c.h.b16 %v228
    %v799 = vunpack.c.l.b16 %v229
    %v800 = vunpack.c.h.b16 %v229
    %v801 = vunpack.c.l.b16 %v230
    %v802 = vunpack.c.h.b16 %v230
    %v803 = vunpack.c.l.b16 %v231
    %v804 = vunpack.c.h.b16 %v231
    %v805 = vunpack.c.l.b16 %v232
    %v806 = vunpack.c.h.b16 %v232
    %v807 = vunpack.c.l.b16 %v233
    %v808 = vunpack.c.h.b16 %v233
    %v809 = vunpack.c.l.b16 %v234
    %v810 = vunpack.c.h.b16 %v234
    %v811 = vunpack.c.l.b16 %v235
    %v812 = vunpack.c.h.b16 %v235
    %v813 = vunpack.c.l.b16 %v236
    %v814 = vunpack.c.h.b16 %v236
    %v815 = vunpack.c.l.b16 %v237
    %v816 = vunpack.c.h.b16 %v237
    %v817 = vunpack.c.l.b16 %v238
    %v818 = vunpack.c.h.b16 %v238
    %v819 = vunpack.c.l.b16 %v239
    %v820 = vunpack.c.h.b16 %v239
    %v821 = vunpack.c.l.b16 %v240
    %v822 = vunpack.c.h.b16 %v240
    %v823 = vunpack.c.l.b16 %v241
    %v824 = vunpack.c.h.b16 %v241
    %v825 = vunpack.c.l.b16 %v242
    %v826 = vunpack.c.h.b16 %v242
    %v827 = vunpack.c.l.b16 %v243
    %v828 = vunpack.c.h.b16 %v243
    %v829 = vunpack.c.l.b16 %v244
    %v830 = vunpack.c.h.b16 %v244
    %v831 = vunpack.c.l.b16 %v245
    %v832 = vunpack.c.h.b16 %v245
    %v833 = vunpack.c.l.b16 %v246
    %v834 = vunpack.c.h.b16 %v246
    %v835 = vunpack.c.l.b16 %v247
    %v836 = vunpack.c.h.b16 %v247
    %v837 = vunpack.c.l.b16 %v248
    %v838 = vunpack.c.h.b16 %v248
    %v839 = vunpack.c.l.b16 %v249
    %v840 = vunpack.c.h.b16 %v249
    %v841 = vunpack.c.l.b16 %v250
    %v842 = vunpack.c.h.b16 %v250
    %v843 = vunpack.c.l.b16 %v251
    %v844 = vunpack.c.h.b16 %v251
    %v845 = vunpack.c.l.b16 %v252
    %v846 = vunpack.c.h.b16 %v252
    %v847 = vunpack.c.l.b16 %v253
    %v848 = vunpack.c.h.b16 %v253
    %v849 = vunpack.c.l.b16 %v254
    %v850 = vunpack.c.h.b16 %v254
    %v851 = vunpack.c.l.b16 %v255
    %v852 = vunpack.c.h.b16 %v255
    %v853 = vunpack.c.l.b16 %v256
    %v854 = vunpack.c.h.b16 %v256
    %v855 = vunpack.c.l.b16 %v257
    %v856 = vunpack.c.h.b16 %v257
    %v857 = vunpack.c.l.b16 %v258
    %v858 = vunpack.c.h.b16 %v258
    %v859 = vunpack.c.l.b16 %v259
    %v860 = vunpack.c.h.b16 %v259
    %v861 = vunpack.c.l.b16 %v260
    %v862 = vunpack.c.h.b16 %v260
    %v863 = vunpack.c.l.b16 %v261
    %v864 = vunpack.c.h.b16 %v261
    %v865 = vunpack.c.l.b16 %v262
    %v866 = vunpack.c.h.b16 %v262
    %v867 = vunpack.c.l.b16 %v263
    %v868 = vunpack.c.h.b16 %v263
    %v869 = vunpack.c.l.b16 %v264
    %v870 = vunpack.c.h.b16 %v264
    %v871 = vunpack.c.l.b16 %v265
    %v872 = vunpack.c.h.b16 %v265
    %v873 = vunpack.c.l.b16 %v266
    %v874 = vunpack.c.h.b16 %v266
    %v875 = vunpack.c.l.b16 %v267
    %v876 = vunpack.c.h.b16 %v267
    %v877 = vunpack.c.l.b16 %v268
    %v878 = vunpack.c.h.b16 %v268
    %v879 = vunpack.c.l.b16 %v269
    %v880 = vunpack.c.h.b16 %v269
    %v881 = vunpack.c.l.b16 %v270
    %v882 = vunpack.c.h.b16 %v270
    %v883 = vunpack.c.l.b16 %v271
    %v884 = vunpack.c.h.b16 %v271
    %v885 = vunpack.c.l.b16 %v272
    %v886 = vunpack.c.h.b16 %v272
    %v887 = vunpack.c.l.b16 %v273
    %v888 = vunpack.c.h.b16 %v273
    %v889 = vunpack.c.l.b16 %v274
    %v890 = vunpack.c.h.b16 %v274
    %v891 = vunpack.c.l.b16 %v275
    %v892 = vunpack.c.h.b16 %v275
    %v893 = vunpack.c.l.b16 %v276
    %v894 = vunpack.c.h.b16 %v276
    %v895 = vunpack.c.l.b16 %v277
    %v896 = vunpack.c.h.b16 %v277
    %v897 = vunpack.c.l.b16 %v278
    %v898 = vunpack.c.h.b16 %v278
    %v899 = vunpack.c.l.b16 %v279
    %v900 = vunpack.c.h.b16 %v279
    %v901 = vunpack.c.l.b16 %v280
    %v902 = vunpack.c.h.b16 %v280
    %v903 = vunpack.c.l.b16 %v281
    %v904 = vunpack.c.h.b16 %v281
    %v905 = vunpack.c.l.b16 %v282
    %v906 = vunpack.c.h.b16 %v282
    %v907 = vunpack.c.l.b16 %v283
    %v908 = vunpack.c.h.b16 %v283
    %v909 = vunpack.c.l.b16 %v284
    %v910 = vunpack.c.h.b16 %v284
    %v911 = vunpack.c.l.b16 %v285
    %v912 = vunpack.c.h.b16 %v285
    %v913 = vunpack.c.l.b16 %v286
    %v914 = vunpack.c.h.b16 %v286
    %v915 = vunpack.c.l.b16 %v287
    %v916 = vunpack.c.h.b16 %v287
    %v917 = vunpack.c.l.b16 %v288
    %v918 = vunpack.c.h.b16 %v288
    %v919 = vunpack.c.l.b16 %v289
    %v920 = vunpack.c.h.b16 %v289
    %v921 = vunpack.c.l.b16 %v290
    %v922 = vunpack.c.h.b16 %v290
    %v923 = vunpack.c.l.b16 %v291
    %v924 = vunpack.c.h.b16 %v291
    %v925 = vunpack.c.l.b16 %v292
    %v926 = vunpack.c.h.b16 %v292
    %v927 = vunpack.c.l.b16 %v293
    %v928 = vunpack.c.h.b16 %v293
    %v929 = vunpack.c.l.b16 %v294
    %v930 = vunpack.c.h.b16 %v294
    %v931 = vunpack.c.l.b16 %v295
    %v932 = vunpack.c.h.b16 %v295
    %v933 = vunpack.c.l.b16 %v296
    %v934 = vunpack.c.h.b16 %v296
    %v935 = vunpack.c.l.b16 %v297
    %v936 = vunpack.c.h.b16 %v297
    %v937 = vunpack.c.l.b16 %v298
    %v938 = vunpack.c.h.b16 %v298
    %v939 = vunpack.c.l.b16 %v299
    %v940 = vunpack.c.h.b16 %v299
    %v941 = vunpack.c.l.b16 %v300
    %v942 = vunpack.c.h.b16 %v300
    %v943 = vunpack.c.l.b16 %v301
    %v944 = vunpack.c.h.b16 %v301
    %v945 = vunpack.c.l.b16 %v302
    %v946 = vunpack.c.h.b16 %v302
    %v947 = vunpack.c.l.b16 %v303
    %v948 = vunpack.c.h.b16 %v303
    %v949 = vunpack.c.l.b16 %v304
    %v950 = vunpack.c.h.b16 %v304
    %v951 = vunpack.c.l.b16 %v305
    %v952 = vunpack.c.h.b16 %v305
    %v953 = vunpack.c.l.b16 %v306
    %v954 = vunpack.c.h.b16 %v306
    %v955 = vunpack.c.l.b16 %v307
    %v956 = vunpack.c.h.b16 %v307
    %v957 = vunpack.c.l.b16 %v308
    %v958 = vunpack.c.h.b16 %v308
    %v959 = vunpack.c.l.b16 %v309
    %v960 = vunpack.c.h.b16 %v309
    %v961 = vunpack.c.l.b16 %v310
    %v962 = vunpack.c.h.b16 %v310
    %v963 = vunpack.c.l.b16 %v311
    %v964 = vunpack.c.h.b16 %v311
    %v965 = vunpack.c.l.b16 %v312
    %v966 = vunpack.c.h.b16 %v312
    %v967 = vunpack.c.l.b16 %v313
    %v968 = vunpack.c.h.b16 %v313
    %v969 = vunpack.c.l.b16 %v314
    %v970 = vunpack.c.h.b16 %v314
    %v971 = vunpack.c.l.b16 %v315
    %v972 = vunpack.c.h.b16 %v315
    %v973 = vunpack.c.l.b16 %v316
    %v974 = vunpack.c.h.b16 %v316
    %v975 = vunpack.c.l.b16 %v317
    %v976 = vunpack.c.h.b16 %v317
    %v977 = vunpack.c.l.b16 %v318
    %v978 = vunpack.c.h.b16 %v318
    %v979 = vunpack.c.l.b16 %v319
    %v980 = vunpack.c.h.b16 %v319
    %v981 = vunpack.c.l.b16 %v320
    %v982 = vunpack.c.h.b16 %v320
    %v983 = vunpack.c.l.b16 %v321
    %v984 = vunpack.c.h.b16 %v321
    %v985 = vunpack.c.l.b16 %v322
    %v986 = vunpack.c.h.b16 %v322
    %v987 = vunpack.c.l.b16 %v323
    %v988 = vunpack.c.h.b16 %v323
    %v989 = vunpack.c.l.b16 %v324
    %v990 = vunpack.c.h.b16 %v324
    %v991 = vunpack.c.l.b16 %v325
    %v992 = vunpack.c.h.b16 %v325
    %v993 = vunpack.c.l.b16 %v326
    %v994 = vunpack.c.h.b16 %v326
    %v995 = vunpack.c.l.b16 %v327
    %v996 = vunpack.c.h.b16 %v327
    %v997 = vunpack.c.l.b16 %v328
    %v998 = vunpack.c.h.b16 %v328
    %v999 = vunpack.c.l.b16 %v329
    %v1000 = vunpack.c.h.b16 %v329
    %v1001 = vunpack.c.l.b16 %v330
    %v1002 = vunpack.c.h.b16 %v330
    %v1003 = vunpack.c.l.b16 %v331
    %v1004 = vunpack.c.h.b16 %v331
    %v1005 = vunpack.c.l.b16 %v332
    %v1006 = vunpack.c.h.b16 %v332
    %v1007 = vunpack.c.l.b16 %v333
    %v1008 = vunpack.c.h.b16 %v333
    %v1009 = vunpack.c.l.b16 %v334
    %v1010 = vunpack.c.h.b16 %v334
    %v1011 = vunpack.c.l.b16 %v335
    %v1012 = vunpack.c.h.b16 %v335
    %v1013 = vunpack.c.l.b16 %v336
    %v1014 = vunpack.c.h.b16 %v336
    %v1015 = vunpack.c.l.b16 %v337
    %v1016 = vunpack.c.h.b16 %v337
    %v1017 = vunpack.c.l.b16 %v338
    %v1018 = vunpack.c.h.b16 %v338
    %v1019 = vunpack.c.l.b16 %v339
    %v1020 = vunpack.c.h.b16 %v339
    %v1021 = vunpack.c.l.b16 %v340
    %v1022 = vunpack.c.h.b16 %v340
    %v1023 = vunpack.c.l.b16 %v341
    %v1024 = vunpack.c.h.b16 %v341
    %v1025 = vunpack.c.l.b16 %v342
    %v1026 = vunpack.c.h.b16 %v342
    %v1027 = vunpack.c.l.b16 %v343
    %v1028 = vunpack.c.h.b16 %v343
    %v1029 = vunpack.c.l.b16 %v344
    %v1030 = vunpack.c.h.b16 %v344
    %v1031 = vunpack.c.l.b16 %v345
    %v1032 = vunpack.c.h.b16 %v345
    %v1033 = vunpack.c.l.b16 %v346
    %v1034 = vunpack.c.h.b16 %v346
    %v1035 = vunpack.c.l.b16 %v347
    %v1036 = vunpack.c.h.b16 %v347
    %v1037 = vunpack.c.l.b16 %v348
    %v1038 = vunpack.c.h.b16 %v348
    %v1039 = vunpack.c.l.b16 %v349
    %v1040 = vunpack.c.h.b16 %v349
    %v1041 = vunpack.c.l.b16 %v350
    %v1042 = vunpack.c.h.b16 %v350
    %v1043 = vunpack.c.l.b16 %v351
    %v1044 = vunpack.c.h.b16 %v351
    %v1045 = vunpack.c.l.b16 %v352
    %v1046 = vunpack.c.h.b16 %v352
    %v1047 = vunpack.c.l.b16 %v353
    %v1048 = vunpack.c.h.b16 %v353
    %v1049 = vunpack.c.l.b16 %v354
    %v1050 = vunpack.c.h.b16 %v354
    %v1051 = vunpack.c.l.b16 %v355
    %v1052 = vunpack.c.h.b16 %v355
    %v1053 = vunpack.c.l.b16 %v356
    %v1054 = vunpack.c.h.b16 %v356
    %v1055 = vunpack.c.l.b16 %v357
    %v1056 = vunpack.c.h.b16 %v357
    %v1057 = vunpack.c.l.b16 %v358
    %v1058 = vunpack.c.h.b16 %v358
    %v1059 = vunpack.c.l.b16 %v359
    %v1060 = vunpack.c.h.b16 %v359
    %v1061 = vunpack.c.l.b16 %v360
    %v1062 = vunpack.c.h.b16 %v360
    %v1063 = vunpack.c.l.b16 %v361
    %v1064 = vunpack.c.h.b16 %v361
    %v1065 = vunpack.c.l.b16 %v362
    %v1066 = vunpack.c.h.b16 %v362
    %v1067 = vunpack.c.l.b16 %v363
    %v1068 = vunpack.c.h.b16 %v363
    %v1069 = vunpack.c.l.b16 %v364
    %v1070 = vunpack.c.h.b16 %v364
    %v1071 = vunpack.c.l.b16 %v365
    %v1072 = vunpack.c.h.b16 %v365
    %v1073 = vunpack.c.l.b16 %v366
    %v1074 = vunpack.c.h.b16 %v366
    %v1075 = vunpack.c.l.b16 %v367
    %v1076 = vunpack.c.h.b16 %v367
    %v1077 = vunpack.c.l.b16 %v368
    %v1078 = vunpack.c.h.b16 %v368
    %v1079 = vunpack.c.l.b16 %v369
    %v1080 = vunpack.c.h.b16 %v369
    %v1081 = vunpack.c.l.b16 %v370
    %v1082 = vunpack.c.h.b16 %v370
    %v1083 = vunpack.c.l.b16 %v371
    %v1084 = vunpack.c.h.b16 %v371
    %v1085 = vunpack.c.l.b16 %v372
    %v1086 = vunpack.c.h.b16 %v372
    %v1087 = vunpack.c.l.b16 %v373
    %v1088 = vunpack.c.h.b16 %v373
    %v1089 = vunpack.c.l.b16 %v374
    %v1090 = vunpack.c.h.b16 %v374
    %v1091 = vunpack.c.l.b16 %v375
    %v1092 = vunpack.c.h.b16 %v375
    %v1093 = vunpack.c.l.b16 %v376
    %v1094 = vunpack.c.h.b16 %v376
    %v1095 = vunpack.c.l.b16 %v377
    %v1096 = vunpack.c.h.b16 %v377
    %v1097 = vunpack.c.l.b16 %v378
    %v1098 = vunpack.c.h.b16 %v378
    %v1099 = vunpack.c.l.b16 %v379
    %v1100 = vunpack.c.h.b16 %v379
    %v1101 = vunpack.c.l.b16 %v380
    %v1102 = vunpack.c.h.b16 %v380
    %v1103 = vunpack.c.l.b16 %v381
    %v1104 = vunpack.c.h.b16 %v381
    %v1105 = vunpack.c.l.b16 %v382
    %v1106 = vunpack.c.h.b16 %v382
    %v1107 = vunpack.c.l.b16 %v383
    %v1108 = vunpack.c.h.b16 %v383
    %v1109 = vunpack.c.l.b16 %v384
    %v1110 = vunpack.c.h.b16 %v384
    %v1111 = vunpack.c.l.b16 %v385
    %v1112 = vunpack.c.h.b16 %v385
    %v1113 = vunpack.c.l.b16 %v386
    %v1114 = vunpack.c.h.b16 %v386
    %v1115 = vunpack.c.l.b16 %v387
    %v1116 = vunpack.c.h.b16 %v387
    %v1117 = vunpack.c.l.b16 %v388
    %v1118 = vunpack.c.h.b16 %v388
    %v1119 = vunpack.c.l.b16 %v389
    %v1120 = vunpack.c.h.b16 %v389
    %v1121 = vunpack.c.l.b16 %v390
    %v1122 = vunpack.c.h.b16 %v390
    %v1123 = vunpack.c.l.b16 %v391
    %v1124 = vunpack.c.h.b16 %v391
    %v1125 = vunpack.c.l.b16 %v392
    %v1126 = vunpack.c.h.b16 %v392
    %v1127 = vunpack.c.l.b16 %v393
    %v1128 = vunpack.c.h.b16 %v393
    %v1129 = vunpack.c.l.b16 %v394
    %v1130 = vunpack.c.h.b16 %v394
    %v1131 = vunpack.c.l.b16 %v395
    %v1132 = vunpack.c.h.b16 %v395
    %v1133 = vunpack.c.l.b16 %v396
    %v1134 = vunpack.c.h.b16 %v396
    %v1135 = vunpack.c.l.b16 %v397
    %v1136 = vunpack.c.h.b16 %v397
    %v1137 = vunpack.c.l.b16 %v398
    %v1138 = vunpack.c.h.b16 %v398
    %v1139 = vunpack.c.l.b16 %v399
    %v1140 = vunpack.c.h.b16 %v399
    %v1141 = vunpack.c.l.b16 %v400
    %v1142 = vunpack.c.h.b16 %v400
    %v1143 = vunpack.c.l.b16 %v401
    %v1144 = vunpack.c.h.b16 %v401
    %v1145 = vunpack.c.l.b16 %v402
    %v1146 = vunpack.c.h.b16 %v402
    %v1147 = vunpack.c.l.b16 %v403
    %v1148 = vunpack.c.h.b16 %v403
    %v1149 = vunpack.c.l.b16 %v404
    %v1150 = vunpack.c.h.b16 %v404
    %v1151 = vunpack.c.l.b16 %v405
    %v1152 = vunpack.c.h.b16 %v405
    %v1153 = vunpack.c.l.b16 %v406
    %v1154 = vunpack.c.h.b16 %v406
    %v1155 = vunpack.c.l.b16 %v407
    %v1156 = vunpack.c.h.b16 %v407
    %v1157 = vunpack.c.l.b16 %v408
    %v1158 = vunpack.c.h.b16 %v408
    %v1159 = vunpack.c.l.b16 %v409
    %v1160 = vunpack.c.h.b16 %v409
    %v1161 = vunpack.c.l.b16 %v410
    %v1162 = vunpack.c.h.b16 %v410
    %v1163 = vunpack.c.l.b16 %v411
    %v1164 = vunpack.c.h.b16 %v411
    %v1165 = vunpack.c.l.b16 %v412
    %v1166 = vunpack.c.h.b16 %v412
    %v1167 = vunpack.c.l.b16 %v413
    %v1168 = vunpack.c.h.b16 %v413
    %v1169 = vunpack.c.l.b16 %v414
    %v1170 = vunpack.c.h.b16 %v414
    %v1171 = vunpack.c.l.b16 %v415
    %v1172 = vunpack.c.h.b16 %v415
    %v1173 = vunpack.c.l.b16 %v416
    %v1174 = vunpack.c.h.b16 %v416
    %v1175 = vunpack.c.l.b16 %v417
    %v1176 = vunpack.c.h.b16 %v417
    %v1177 = vunpack.c.l.b16 %v418
    %v1178 = vunpack.c.h.b16 %v418
    %v1179 = vunpack.c.l.b16 %v419
    %v1180 = vunpack.c.h.b16 %v419
    %v1181 = vunpack.c.l.b16 %v420
    %v1182 = vunpack.c.h.b16 %v420
    %v1183 = vunpack.c.l.b16 %v421
    %v1184 = vunpack.c.h.b16 %v421
    %v1185 = vunpack.c.l.b16 %v422
    %v1186 = vunpack.c.h.b16 %v422
    %v1187 = vunpack.c.l.b16 %v423
    %v1188 = vunpack.c.h.b16 %v423
    %v1189 = vunpack.c.l.b16 %v424
    %v1190 = vunpack.c.h.b16 %v424
    %v1191 = vunpack.c.l.b16 %v425
    %v1192 = vunpack.c.h.b16 %v425
    %v1193 = vunpack.c.l.b16 %v426
    %v1194 = vunpack.c.h.b16 %v426
    %v1195 = vunpack.c.l.b16 %v427
    %v1196 = vunpack.c.h.b16 %v427
    %v1197 = vunpack.c.l.b16 %v428
    %v1198 = vunpack.c.h.b16 %v428
    %v1199 = vunpack.c.l.b16 %v429
    %v1200 = vunpack.c.h.b16 %v429
    %v1201 = vunpack.c.l.b16 %v430
    %v1202 = vunpack.c.h.b16 %v430
    %v1203 = vunpack.c.l.b16 %v431
    %v1204 = vunpack.c.h.b16 %v431
    %v1205 = vunpack.c.l.b16 %v432
    %v1206 = vunpack.c.h.b16 %v432
    %v1207 = vunpack.c.l.b16 %v433
    %v1208 = vunpack.c.h.b16 %v433
    %v1209 = vunpack.c.l.b16 %v434
    %v1210 = vunpack.c.h.b16 %v434
    %v1211 = vunpack.c.l.b16 %v435
    %v1212 = vunpack.c.h.b16 %v435
    %v1213 = vunpack.c.l.b16 %v436
    %v1214 = vunpack.c.h.b16 %v436
    %v1215 = vunpack.c.l.b16 %v437
    %v1216 = vunpack.c.h.b16 %v437
    %v1217 = vunpack.c.l.b16 %v438
    %v1218 = vunpack.c.h.b16 %v438
    %v1219 = vunpack.c.l.b16 %v439
    %v1220 = vunpack.c.h.b16 %v439
    %v1221 = vunpack.c.l.b16 %v440
    %v1222 = vunpack.c.h.b16 %v440
    %v1223 = vunpack.c.l.b16 %v441
    %v1224 = vunpack.c.h.b16 %v441
    %v1225 = vunpack.c.l.b16 %v442
    %v1226 = vunpack.c.h.b16 %v442
    %v1227 = vunpack.c.l.b16 %v443
    %v1228 = vunpack.c.h.b16 %v443
    %v1229 = vunpack.c.l.b16 %v444
    %v1230 = vunpack.c.h.b16 %v444
    %v1231 = vunpack.c.l.b16 %v445
    %v1232 = vunpack.c.h.b16 %v445
    %v1233 = vunpack.c.l.b16 %v446
    %v1234 = vunpack.c.h.b16 %v446
    %v1235 = vunpack.c.l.b16 %v447
    %v1236 = vunpack.c.h.b16 %v447
    %v1237 = vunpack.c.l.b16 %v448
    %v1238 = vunpack.c.h.b16 %v448
    %v1239 = vunpack.c.l.b16 %v449
    %v1240 = vunpack.c.h.b16 %v449
    %v1241 = vunpack.c.l.b16 %v450
    %v1242 = vunpack.c.h.b16 %v450
    %v1243 = vunpack.c.l.b16 %v451
    %v1244 = vunpack.c.h.b16 %v451
    %v1245 = vunpack.c.l.b16 %v452
    %v1246 = vunpack.c.h.b16 %v452
    %v1247 = vunpack.c.l.b16 %v453
    %v1248 = vunpack.c.h.b16 %v453
    %v1249 = vunpack.c.l.b16 %v454
    %v1250 = vunpack.c.h.b16 %v454
    %v1251 = vunpack.c.l.b16 %v455
    %v1252 = vunpack.c.h.b16 %v455
    %v1253 = vunpack.c.l.b16 %v456
    %v1254 = vunpack.c.h.b16 %v456
    %v1255 = vpack.c.b16 %v747, %v743
    %v1256 = vpack.c.b16 %v748, %v744
    %v1257 = vpack.c.b16 %v749, %v745
    %v1258 = vpack.c.b16 %v750, %v746
    %v1259 = vpack.c.b16 %v755, %v751
    %v1260 = vpack.c.b16 %v756, %v752
    %v1261 = vpack.c.b16 %v757, %v753
    %v1262 = vpack.c.b16 %v758, %v754
    %v1263 = vpack.c.b16 %v763, %v759
    %v1264 = vpack.c.b16 %v764, %v760
    %v1265 = vpack.c.b16 %v765, %v761
    %v1266 = vpack.c.b16 %v766, %v762
    %v1267 = vpack.c.b16 %v771, %v767
    %v1268 = vpack.c.b16 %v772, %v768
    %v1269 = vpack.c.b16 %v773, %v769
    %v1270 = vpack.c.b16 %v774, %v770
    %v1271 = vpack.c.b16 %v779, %v775
    %v1272 = vpack.c.b16 %v780, %v776
    %v1273 = vpack.c.b16 %v781, %v777
    %v1274 = vpack.c.b16 %v782, %v778
    %v1275 = vpack.c.b16 %v787, %v783
    %v1276 = vpack.c.b16 %v788, %v784
    %v1277 = vpack.c.b16 %v789, %v785
    %v1278 = vpack.c.b16 %v790, %v786
    %v1279 = vpack.c.b16 %v795, %v791
    %v1280 = vpack.c.b16 %v796, %v792
    %v1281 = vpack.c.b16 %v797, %v793
    %v1282 = vpack.c.b16 %v798, %v794
    %v1283 = vpack.c.b16 %v803, %v799
    %v1284 = vpack.c.b16 %v804, %v800
    %v1285 = vpack.c.b16 %v805, %v801
    %v1286 = vpack.c.b16 %v806, %v802
    %v1287 = vpack.c.b16 %v811, %v807
    %v1288 = vpack.c.b16 %v812, %v808
    %v1289 = vpack.c.b16 %v813, %v809
    %v1290 = vpack.c.b16 %v814, %v810
    %v1291 = vpack.c.b16 %v819, %v815
    %v1292 = vpack.c.b16 %v820, %v816
    %v1293 = vpack.c.b16 %v821, %v817
    %v1294 = vpack.c.b16 %v822, %v818
    %v1295 = vpack.c.b16 %v827, %v823
    %v1296 = vpack.c.b16 %v828, %v824
    %v1297 = vpack.c.b16 %v829, %v825
    %v1298 = vpack.c.b16 %v830, %v826
    %v1299 = vpack.c.b16 %v835, %v831
    %v1300 = vpack.c.b16 %v836, %v832
    %v1301 = vpack.c.b16 %v837, %v833
    %v1302 = vpack.c.b16 %v838, %v834
    %v1303 = vpack.c.b16 %v843, %v839
    %v1304 = vpack.c.b16 %v844, %v840
    %v1305 = vpack.c.b16 %v845, %v841
    %v1306 = vpack.c.b16 %v846, %v842
    %v1307 = vpack.c.b16 %v851, %v847
    %v1308 = vpack.c.b16 %v852, %v848
    %v1309 = vpack.c.b16 %v853, %v849
    %v1310 = vpack.c.b16 %v854, %v850
    %v1311 = vpack.c.b16 %v859, %v855
    %v1312 = vpack.c.b16 %v860, %v856
    %v1313 = vpack.c.b16 %v861, %v857
    %v1314 = vpack.c.b16 %v862, %v858
    %v1315 = vpack.c.b16 %v867, %v863
    %v1316 = vpack.c.b16 %v868, %v864
    %v1317 = vpack.c.b16 %v869, %v865
    %v1318 = vpack.c.b16 %v870, %v866
    %v1319 = vpack.c.b16 %v875, %v871
    %v1320 = vpack.c.b16 %v876, %v872
    %v1321 = vpack.c.b16 %v877, %v873
    %v1322 = vpack.c.b16 %v878, %v874
    %v1323 = vpack.c.b16 %v883, %v879
    %v1324 = vpack.c.b16 %v884, %v880
    %v1325 = vpack.c.b16 %v885, %v881
    %v1326 = vpack.c.b16 %v886, %v882
    %v1327 = vpack.c.b16 %v891, %v887
    %v1328 = vpack.c.b16 %v892, %v888
    %v1329 = vpack.c.b16 %v893, %v889
    %v1330 = vpack.c.b16 %v894, %v890
    %v1331 = vpack.c.b16 %v899, %v895
    %v1332 = vpack.c.b16 %v900, %v896
    %v1333 = vpack.c.b16 %v901, %v897
    %v1334 = vpack.c.b16 %v902, %v898
    %v1335 = vpack.c.b16 %v907, %v903
    %v1336 = vpack.c.b16 %v908, %v904
    %v1337 = vpack.c.b16 %v909, %v905
    %v1338 = vpack.c.b16 %v910, %v906
    %v1339 = vpack.c.b16 %v915, %v911
    %v1340 = vpack.c.b16 %v916, %v912
    %v1341 = vpack.c.b16 %v917, %v913
    %v1342 = vpack.c.b16 %v918, %v914
    %v1343 = vpack.c.b16 %v923, %v919
    %v1344 = vpack.c.b16 %v924, %v920
    %v1345 = vpack.c.b16 %v925, %v921
    %v1346 = vpack.c.b16 %v926, %v922
    %v1347 = vpack.c.b16 %v931, %v927
    %v1348 = vpack.c.b16 %v932, %v928
    %v1349 = vpack.c.b16 %v933, %v929
    %v1350 = vpack.c.b16 %v934, %v930
    %v1351 = vpack.c.b16 %v939, %v935
    %v1352 = vpack.c.b16 %v940, %v936
    %v1353 = vpack.c.b16 %v941, %v937
    %v1354 = vpack.c.b16 %v942, %v938
    %v1355 = vpack.c.b16 %v947, %v943
    %v1356 = vpack.c.b16 %v948, %v944
    %v1357 = vpack.c.b16 %v949, %v945
    %v1358 = vpack.c.b16 %v950, %v946
    %v1359 = vpack.c.b16 %v955, %v951
    %v1360 = vpack.c.b16 %v956, %v952
    %v1361 = vpack.c.b16 %v957, %v953
    %v1362 = vpack.c.b16 %v958, %v954
    %v1363 = vpack.c.b16 %v963, %v959
    %v1364 = vpack.c.b16 %v964, %v960
    %v1365 = vpack.c.b16 %v965, %v961
    %v1366 = vpack.c.b16 %v966, %v962
    %v1367 = vpack.c.b16 %v971, %v967
    %v1368 = vpack.c.b16 %v972, %v968
    %v1369 = vpack.c.b16 %v973, %v969
    %v1370 = vpack.c.b16 %v974, %v970
    %v1371 = vpack.c.b16 %v979, %v975
    %v1372 = vpack.c.b16 %v980, %v976
    %v1373 = vpack.c.b16 %v981, %v977
    %v1374 = vpack.c.b16 %v982, %v978
    %v1375 = vpack.c.b16 %v987, %v983
    %v1376 = vpack.c.b16 %v988, %v984
    %v1377 = vpack.c.b16 %v989, %v985
    %v1378 = vpack.c.b16 %v990, %v986
    %v1379 = vpack.c.b16 %v995, %v991
    %v1380 = vpack.c.b16 %v996, %v992
    %v1381 = vpack.c.b16 %v997, %v993
    %v1382 = vpack.c.b16 %v998, %v994
    %v1383 = vpack.c.b16 %v1003, %v999
    %v1384 = vpack.c.b16 %v1004, %v1000
    %v1385 = vpack.c.b16 %v1005, %v1001
    %v1386 = vpack.c.b16 %v1006, %v1002
    %v1387 = vpack.c.b16 %v1011, %v1007
    %v1388 = vpack.c.b16 %v1012, %v1008
    %v1389 = vpack.c.b16 %v1013, %v1009
    %v1390 = vpack.c.b16 %v1014, %v1010
    %v1391 = vpack.c.b16 %v1019, %v1015
    %v1392 = vpack.c.b16 %v1020, %v1016
    %v1393 = vpack.c.b16 %v1021, %v1017
    %v1394 = vpack.c.b16 %v1022, %v1018
    %v1395 = vpack.c.b16 %v1027, %v1023
    %v1396 = vpack.c.b16 %v1028, %v1024
    %v1397 = vpack.c.b16 %v1029, %v1025
    %v1398 = vpack.c.b16 %v1030, %v1026
    %v1399 = vpack.c.b16 %v1035, %v1031
    %v1400 = vpack.c.b16 %v1036, %v1032
    %v1401 = vpack.c.b16 %v1037, %v1033
    %v1402 = vpack.c.b16 %v1038, %v1034
    %v1403 = vpack.c.b16 %v1043, %v1039
    %v1404 = vpack.c.b16 %v1044, %v1040
    %v1405 = vpack.c.b16 %v1045, %v1041
    %v1406 = vpack.c.b16 %v1046, %v1042
    %v1407 = vpack.c.b16 %v1051, %v1047
    %v1408 = vpack.c.b16 %v1052, %v1048
    %v1409 = vpack.c.b16 %v1053, %v1049
    %v1410 = vpack.c.b16 %v1054, %v1050
    %v1411 = vpack.c.b16 %v1059, %v1055
    %v1412 = vpack.c.b16 %v1060, %v1056
    %v1413 = vpack.c.b16 %v1061, %v1057
    %v1414 = vpack.c.b16 %v1062, %v1058
    %v1415 = vpack.c.b16 %v1067, %v1063
    %v1416 = vpack.c.b16 %v1068, %v1064
    %v1417 = vpack.c.b16 %v1069, %v1065
    %v1418 = vpack.c.b16 %v1070, %v1066
    %v1419 = vpack.c.b16 %v1075, %v1071
    %v1420 = vpack.c.b16 %v1076, %v1072
    %v1421 = vpack.c.b16 %v1077, %v1073
    %v1422 = vpack.c.b16 %v1078, %v1074
    %v1423 = vpack.c.b16 %v1083, %v1079
    %v1424 = vpack.c.b16 %v1084, %v1080
    %v1425 = vpack.c.b16 %v1085, %v1081
    %v1426 = vpack.c.b16 %v1086, %v1082
    %v1427 = vpack.c.b16 %v1091, %v1087
    %v1428 = vpack.c.b16 %v1092, %v1088
    %v1429 = vpack.c.b16 %v1093, %v1089
    %v1430 = vpack.c.b16 %v1094, %v1090
    %v1431 = vpack.c.b16 %v1099, %v1095
    %v1432 = vpack.c.b16 %v1100, %v1096
    %v1433 = vpack.c.b16 %v1101, %v1097
    %v1434 = vpack.c.b16 %v1102, %v1098
    %v1435 = vpack.c.b16 %v1107, %v1103
    %v1436 = vpack.c.b16 %v1108, %v1104
    %v1437 = vpack.c.b16 %v1109, %v1105
    %v1438 = vpack.c.b16 %v1110, %v1106
    %v1439 = vpack.c.b16 %v1115, %v1111
    %v1440 = vpack.c.b16 %v1116, %v1112
    %v1441 = vpack.c.b16 %v1117, %v1113
    %v1442 = vpack.c.b16 %v1118, %v1114
    %v1443 = vpack.c.b16 %v1123, %v1119
    %v1444 = vpack.c.b16 %v1124, %v1120
    %v1445 = vpack.c.b16 %v1125, %v1121
    %v1446 = vpack.c.b16 %v1126, %v1122
    %v1447 = vpack.c.b16 %v1131, %v1127
    %v1448 = vpack.c.b16 %v1132, %v1128
    %v1449 = vpack.c.b16 %v1133, %v1129
    %v1450 = vpack.c.b16 %v1134, %v1130
    %v1451 = vpack.c.b16 %v1139, %v1135
    %v1452 = vpack.c.b16 %v1140, %v1136
    %v1453 = vpack.c.b16 %v1141, %v1137
    %v1454 = vpack.c.b16 %v1142, %v1138
    %v1455 = vpack.c.b16 %v1147, %v1143
    %v1456 = vpack.c.b16 %v1148, %v1144
    %v1457 = vpack.c.b16 %v1149, %v1145
    %v1458 = vpack.c.b16 %v1150, %v1146
    %v1459 = vpack.c.b16 %v1155, %v1151
    %v1460 = vpack.c.b16 %v1156, %v1152
    %v1461 = vpack.c.b16 %v1157, %v1153
    %v1462 = vpack.c.b16 %v1158, %v1154
    %v1463 = vpack.c.b16 %v1163, %v1159
    %v1464 = vpack.c.b16 %v1164, %v1160
    %v1465 = vpack.c.b16 %v1165, %v1161
    %v1466 = vpack.c.b16 %v1166, %v1162
    %v1467 = vpack.c.b16 %v1171, %v1167
    %v1468 = vpack.c.b16 %v1172, %v1168
    %v1469 = vpack.c.b16 %v1173, %v1169
    %v1470 = vpack.c.b16 %v1174, %v1170
    %v1471 = vpack.c.b16 %v1179, %v1175
    %v1472 = vpack.c.b16 %v1180, %v1176
    %v1473 = vpack.c.b16 %v1181, %v1177
    %v1474 = vpack.c.b16 %v1182, %v1178
    %v1475 = vpack.c.b16 %v1187, %v1183
    %v1476 = vpack.c.b16 %v1188, %v1184
    %v1477 = vpack.c.b16 %v1189, %v1185
    %v1478 = vpack.c.b16 %v1190, %v1186
    %v1479 = vpack.c.b16 %v1195, %v1191
    %v1480 = vpack.c.b16 %v1196, %v1192
    %v1481 = vpack.c.b16 %v1197, %v1193
    %v1482 = vpack.c.b16 %v1198, %v1194
    %v1483 = vpack.c.b16 %v1203, %v1199
    %v1484 = vpack.c.b16 %v1204, %v1200
    %v1485 = vpack.c.b16 %v1205, %v1201
    %v1486 = vpack.c.b16 %v1206, %v1202
    %v1487 = vpack.c.b16 %v1211, %v1207
    %v1488 = vpack.c.b16 %v1212, %v1208
    %v1489 = vpack.c.b16 %v1213, %v1209
    %v1490 = vpack.c.b16 %v1214, %v1210
    %v1491 = vpack.c.b16 %v1219, %v1215
    %v1492 = vpack.c.b16 %v1220, %v1216
    %v1493 = vpack.c.b16 %v1221, %v1217
    %v1494 = vpack.c.b16 %v1222, %v1218
    %v1495 = vpack.c.b16 %v1227, %v1223
    %v1496 = vpack.c.b16 %v1228, %v1224
    %v1497 = vpack.c.b16 %v1229, %v1225
    %v1498 = vpack.c.b16 %v1230, %v1226
    %v1499 = vpack.c.b16 %v1235, %v1231
    %v1500 = vpack.c.b16 %v1236, %v1232
    %v1501 = vpack.c.b16 %v1237, %v1233
    %v1502 = vpack.c.b16 %v1238, %v1234
    %v1503 = vpack.c.b16 %v1243, %v1239
    %v1504 = vpack.c.b16 %v1244, %v1240
    %v1505 = vpack.c.b16 %v1245, %v1241
    %v1506 = vpack.c.b16 %v1246, %v1242
    %v1507 = vpack.c.b16 %v1251, %v1247
    %v1508 = vpack.c.b16 %v1252, %v1248
    %v1509 = vpack.c.b16 %v1253, %v1249
    %v1510 = vpack.c.b16 %v1254, %v1250
    %1767 = vmatprep.subr.bf16.mxu0 %v1284
    %1768 = vmatpush1.bf16.msra.mxu0 %v1283
    %1769 = vmatprep.subr.bf16.mxu0 %v1280
    %1770 = vmatpush1.bf16.msra.mxu0 %v1279
    %1771 = vmatprep.subr.bf16.mxu0 %v1276
    %1772 = vmatpush1.bf16.msra.mxu0 %v1275
    %1773 = vmatprep.subr.bf16.mxu0 %v1272
    %1774 = vmatpush1.bf16.msra.mxu0 %v1271
    %1775 = vmatprep.subr.bf16.mxu0 %v1268
    %1776 = vmatpush1.bf16.msra.mxu0 %v1267
    %1777 = vmatprep.subr.bf16.mxu0 %v1264
    %1778 = vmatpush1.bf16.msra.mxu0 %v1263
    %1779 = vmatprep.subr.bf16.mxu0 %v1260
    %1780 = vmatpush1.bf16.msra.mxu0 %v1259
    %1781 = vmatprep.subr.bf16.mxu0 %v1256
    %1782 = vmatpush1.bf16.msra.mxu0 %v1255
    %1783 = vmatprep.subr.bf16.mxu0 %v1316
    %1784 = vmatpush2.bf16.msra.mxu0 %v1315
    %1785 = vmatprep.subr.bf16.mxu0 %v1312
    %1786 = vmatpush2.bf16.msra.mxu0 %v1311
    %1787 = vmatprep.subr.bf16.mxu0 %v1308
    %1788 = vmatpush2.bf16.msra.mxu0 %v1307
    %1789 = vmatprep.subr.bf16.mxu0 %v1304
    %1790 = vmatpush2.bf16.msra.mxu0 %v1303
    %1791 = vmatprep.subr.bf16.mxu0 %v1300
    %1792 = vmatpush2.bf16.msra.mxu0 %v1299
    %1793 = vmatprep.subr.bf16.mxu0 %v1296
    %1794 = vmatpush2.bf16.msra.mxu0 %v1295
    %1795 = vmatprep.subr.bf16.mxu0 %v1292
    %1796 = vmatpush2.bf16.msra.mxu0 %v1291
    %1797 = vmatprep.subr.bf16.mxu0 %v1288
    %1798 = vmatpush2.bf16.msra.mxu0 %v1287
    %1799 = vmatprep.mubr.bf16.mxu0 %v459
    %1800 = vmatmul.mubr.bf16.gmra.mxu0 %v458
    %v1801 = vpop.f32.mrf.mxu0
    %v1802 = vadd.f32 %v470, %v1801
    %v1803 = vpop.f32.mrf.mxu0
    %v1804 = vadd.f32 %v474, %v1803
    %v1805 = vpop.f32.mrf.mxu0
    %v1806 = vpop.f32.mrf.mxu0
    %1807 = vdwg.mxu0
    %1808 = vmatprep.subr.bf16.mxu0 %v1348
    %1809 = vmatpush1.bf16.msra.mxu0 %v1347
    %1810 = vmatprep.subr.bf16.mxu0 %v1344
    %1811 = vmatpush1.bf16.msra.mxu0 %v1343
    %1812 = vmatprep.subr.bf16.mxu0 %v1340
    %1813 = vmatpush1.bf16.msra.mxu0 %v1339
    %1814 = vmatprep.subr.bf16.mxu0 %v1336
    %1815 = vmatpush1.bf16.msra.mxu0 %v1335
    %1816 = vmatprep.subr.bf16.mxu0 %v1332
    %1817 = vmatpush1.bf16.msra.mxu0 %v1331
    %1818 = vmatprep.subr.bf16.mxu0 %v1328
    %1819 = vmatpush1.bf16.msra.mxu0 %v1327
    %1820 = vmatprep.subr.bf16.mxu0 %v1324
    %1821 = vmatpush1.bf16.msra.mxu0 %v1323
    %1822 = vmatprep.subr.bf16.mxu0 %v1320
    %1823 = vmatpush1.bf16.msra.mxu0 %v1319
    %1824 = vmatprep.subr.bf16.mxu0 %v1380
    %1825 = vmatpush2.bf16.msra.mxu0 %v1379
    %1826 = vmatprep.subr.bf16.mxu0 %v1376
    %1827 = vmatpush2.bf16.msra.mxu0 %v1375
    %1828 = vmatprep.subr.bf16.mxu0 %v1372
    %1829 = vmatpush2.bf16.msra.mxu0 %v1371
    %1830 = vmatprep.subr.bf16.mxu0 %v1368
    %1831 = vmatpush2.bf16.msra.mxu0 %v1367
    %1832 = vmatprep.subr.bf16.mxu0 %v1364
    %1833 = vmatpush2.bf16.msra.mxu0 %v1363
    %1834 = vmatprep.subr.bf16.mxu0 %v1360
    %1835 = vmatpush2.bf16.msra.mxu0 %v1359
    %1836 = vmatprep.subr.bf16.mxu0 %v1356
    %1837 = vmatpush2.bf16.msra.mxu0 %v1355
    %1838 = vmatprep.subr.bf16.mxu0 %v1352
    %1839 = vmatpush2.bf16.msra.mxu0 %v1351
    %1840 = vmatprep.mubr.bf16.mxu0 %v461
    %1841 = vmatmul.mubr.bf16.gmra.mxu0 %v460
    %v1842 = vpop.f32.mrf.mxu0
    %v1843 = vadd.f32 %v1802, %v1842
    %v1844 = vpop.f32.mrf.mxu0
    %v1845 = vadd.f32 %v1804, %v1844
    %v1846 = vpop.f32.mrf.mxu0
    %v1847 = vpop.f32.mrf.mxu0
    %1848 = vdwg.mxu0
    %1849 = vmatprep.subr.bf16.mxu0 %v1412
    %1850 = vmatpush1.bf16.msra.mxu0 %v1411
    %1851 = vmatprep.subr.bf16.mxu0 %v1408
    %1852 = vmatpush1.bf16.msra.mxu0 %v1407
    %1853 = vmatprep.subr.bf16.mxu0 %v1404
    %1854 = vmatpush1.bf16.msra.mxu0 %v1403
    %1855 = vmatprep.subr.bf16.mxu0 %v1400
    %1856 = vmatpush1.bf16.msra.mxu0 %v1399
    %1857 = vmatprep.subr.bf16.mxu0 %v1396
    %1858 = vmatpush1.bf16.msra.mxu0 %v1395
    %1859 = vmatprep.subr.bf16.mxu0 %v1392
    %1860 = vmatpush1.bf16.msra.mxu0 %v1391
    %1861 = vmatprep.subr.bf16.mxu0 %v1388
    %1862 = vmatpush1.bf16.msra.mxu0 %v1387
    %1863 = vmatprep.subr.bf16.mxu0 %v1384
    %1864 = vmatpush1.bf16.msra.mxu0 %v1383
    %1865 = vmatprep.subr.bf16.mxu0 %v1444
    %1866 = vmatpush2.bf16.msra.mxu0 %v1443
    %1867 = vmatprep.subr.bf16.mxu0 %v1440
    %1868 = vmatpush2.bf16.msra.mxu0 %v1439
    %1869 = vmatprep.subr.bf16.mxu0 %v1436
    %1870 = vmatpush2.bf16.msra.mxu0 %v1435
    %1871 = vmatprep.subr.bf16.mxu0 %v1432
    %1872 = vmatpush2.bf16.msra.mxu0 %v1431
    %1873 = vmatprep.subr.bf16.mxu0 %v1428
    %1874 = vmatpush2.bf16.msra.mxu0 %v1427
    %1875 = vmatprep.subr.bf16.mxu0 %v1424
    %1876 = vmatpush2.bf16.msra.mxu0 %v1423
    %1877 = vmatprep.subr.bf16.mxu0 %v1420
    %1878 = vmatpush2.bf16.msra.mxu0 %v1419
    %1879 = vmatprep.subr.bf16.mxu0 %v1416
    %1880 = vmatpush2.bf16.msra.mxu0 %v1415
    %1881 = vmatprep.mubr.bf16.mxu0 %v463
    %1882 = vmatmul.mubr.bf16.gmra.mxu0 %v462
    %v1883 = vpop.f32.mrf.mxu0
    %v1884 = vadd.f32 %v1843, %v1883
    %v1885 = vpop.f32.mrf.mxu0
    %v1886 = vadd.f32 %v1845, %v1885
    %v1887 = vpop.f32.mrf.mxu0
    %v1888 = vpop.f32.mrf.mxu0
    %1889 = vdwg.mxu0
    %1890 = vmatprep.subr.bf16.mxu0 %v1476
    %1891 = vmatpush1.bf16.msra.mxu0 %v1475
    %1892 = vmatprep.subr.bf16.mxu0 %v1472
    %1893 = vmatpush1.bf16.msra.mxu0 %v1471
    %1894 = vmatprep.subr.bf16.mxu0 %v1468
    %1895 = vmatpush1.bf16.msra.mxu0 %v1467
    %1896 = vmatprep.subr.bf16.mxu0 %v1464
    %1897 = vmatpush1.bf16.msra.mxu0 %v1463
    %1898 = vmatprep.subr.bf16.mxu0 %v1460
    %1899 = vmatpush1.bf16.msra.mxu0 %v1459
    %1900 = vmatprep.subr.bf16.mxu0 %v1456
    %1901 = vmatpush1.bf16.msra.mxu0 %v1455
    %1902 = vmatprep.subr.bf16.mxu0 %v1452
    %1903 = vmatpush1.bf16.msra.mxu0 %v1451
    %1904 = vmatprep.subr.bf16.mxu0 %v1448
    %1905 = vmatpush1.bf16.msra.mxu0 %v1447
    %1906 = vmatprep.subr.bf16.mxu0 %v1508
    %1907 = vmatpush2.bf16.msra.mxu0 %v1507
    %1908 = vmatprep.subr.bf16.mxu0 %v1504
    %1909 = vmatpush2.bf16.msra.mxu0 %v1503
    %1910 = vmatprep.subr.bf16.mxu0 %v1500
    %1911 = vmatpush2.bf16.msra.mxu0 %v1499
    %1912 = vmatprep.subr.bf16.mxu0 %v1496
    %1913 = vmatpush2.bf16.msra.mxu0 %v1495
    %1914 = vmatprep.subr.bf16.mxu0 %v1492
    %1915 = vmatpush2.bf16.msra.mxu0 %v1491
    %1916 = vmatprep.subr.bf16.mxu0 %v1488
    %1917 = vmatpush2.bf16.msra.mxu0 %v1487
    %1918 = vmatprep.subr.bf16.mxu0 %v1484
    %1919 = vmatpush2.bf16.msra.mxu0 %v1483
    %1920 = vmatprep.subr.bf16.mxu0 %v1480
    %1921 = vmatpush2.bf16.msra.mxu0 %v1479
    %1922 = vmatprep.mubr.bf16.mxu0 %v465
    %1923 = vmatmul.mubr.bf16.gmra.mxu0 %v464
    %v1924 = vpop.f32.mrf.mxu0
    %v1925 = vadd.f32 %v1884, %v1924
    %v1926 = vpop.f32.mrf.mxu0
    %v1927 = vadd.f32 %v1886, %v1926
    %v1928 = vpop.f32.mrf.mxu0
    %v1929 = vpop.f32.mrf.mxu0
    %1930 = vdwg.mxu0
    %1931 = vmatprep.subr.bf16.mxu0 %v1286
    %1932 = vmatpush1.bf16.msra.mxu0 %v1285
    %1933 = vmatprep.subr.bf16.mxu0 %v1282
    %1934 = vmatpush1.bf16.msra.mxu0 %v1281
    %1935 = vmatprep.subr.bf16.mxu0 %v1278
    %1936 = vmatpush1.bf16.msra.mxu0 %v1277
    %1937 = vmatprep.subr.bf16.mxu0 %v1274
    %1938 = vmatpush1.bf16.msra.mxu0 %v1273
    %1939 = vmatprep.subr.bf16.mxu0 %v1270
    %1940 = vmatpush1.bf16.msra.mxu0 %v1269
    %1941 = vmatprep.subr.bf16.mxu0 %v1266
    %1942 = vmatpush1.bf16.msra.mxu0 %v1265
    %1943 = vmatprep.subr.bf16.mxu0 %v1262
    %1944 = vmatpush1.bf16.msra.mxu0 %v1261
    %1945 = vmatprep.subr.bf16.mxu0 %v1258
    %1946 = vmatpush1.bf16.msra.mxu0 %v1257
    %1947 = vmatprep.subr.bf16.mxu0 %v1318
    %1948 = vmatpush2.bf16.msra.mxu0 %v1317
    %1949 = vmatprep.subr.bf16.mxu0 %v1314
    %1950 = vmatpush2.bf16.msra.mxu0 %v1313
    %1951 = vmatprep.subr.bf16.mxu0 %v1310
    %1952 = vmatpush2.bf16.msra.mxu0 %v1309
    %1953 = vmatprep.subr.bf16.mxu0 %v1306
    %1954 = vmatpush2.bf16.msra.mxu0 %v1305
    %1955 = vmatprep.subr.bf16.mxu0 %v1302
    %1956 = vmatpush2.bf16.msra.mxu0 %v1301
    %1957 = vmatprep.subr.bf16.mxu0 %v1298
    %1958 = vmatpush2.bf16.msra.mxu0 %v1297
    %1959 = vmatprep.subr.bf16.mxu0 %v1294
    %1960 = vmatpush2.bf16.msra.mxu0 %v1293
    %1961 = vmatprep.subr.bf16.mxu0 %v1290
    %1962 = vmatpush2.bf16.msra.mxu0 %v1289
    %1963 = vmatprep.mubr.bf16.mxu0 %v459
    %1964 = vmatmul.mubr.bf16.gmra.mxu0 %v458
    %v1965 = vpop.f32.mrf.mxu0
    %v1966 = vadd.f32 %v478, %v1965
    %v1967 = vpop.f32.mrf.mxu0
    %v1968 = vadd.f32 %v482, %v1967
    %v1969 = vpop.f32.mrf.mxu0
    %v1970 = vpop.f32.mrf.mxu0
    %1971 = vdwg.mxu0
    %1972 = vmatprep.subr.bf16.mxu0 %v1350
    %1973 = vmatpush1.bf16.msra.mxu0 %v1349
    %1974 = vmatprep.subr.bf16.mxu0 %v1346
    %1975 = vmatpush1.bf16.msra.mxu0 %v1345
    %1976 = vmatprep.subr.bf16.mxu0 %v1342
    %1977 = vmatpush1.bf16.msra.mxu0 %v1341
    %1978 = vmatprep.subr.bf16.mxu0 %v1338
    %1979 = vmatpush1.bf16.msra.mxu0 %v1337
    %1980 = vmatprep.subr.bf16.mxu0 %v1334
    %1981 = vmatpush1.bf16.msra.mxu0 %v1333
    %1982 = vmatprep.subr.bf16.mxu0 %v1330
    %1983 = vmatpush1.bf16.msra.mxu0 %v1329
    %1984 = vmatprep.subr.bf16.mxu0 %v1326
    %1985 = vmatpush1.bf16.msra.mxu0 %v1325
    %1986 = vmatprep.subr.bf16.mxu0 %v1322
    %1987 = vmatpush1.bf16.msra.mxu0 %v1321
    %1988 = vmatprep.subr.bf16.mxu0 %v1382
    %1989 = vmatpush2.bf16.msra.mxu0 %v1381
    %1990 = vmatprep.subr.bf16.mxu0 %v1378
    %1991 = vmatpush2.bf16.msra.mxu0 %v1377
    %1992 = vmatprep.subr.bf16.mxu0 %v1374
    %1993 = vmatpush2.bf16.msra.mxu0 %v1373
    %1994 = vmatprep.subr.bf16.mxu0 %v1370
    %1995 = vmatpush2.bf16.msra.mxu0 %v1369
    %1996 = vmatprep.subr.bf16.mxu0 %v1366
    %1997 = vmatpush2.bf16.msra.mxu0 %v1365
    %1998 = vmatprep.subr.bf16.mxu0 %v1362
    %1999 = vmatpush2.bf16.msra.mxu0 %v1361
    %2000 = vmatprep.subr.bf16.mxu0 %v1358
    %2001 = vmatpush2.bf16.msra.mxu0 %v1357
    %2002 = vmatprep.subr.bf16.mxu0 %v1354
    %2003 = vmatpush2.bf16.msra.mxu0 %v1353
    %2004 = vmatprep.mubr.bf16.mxu0 %v461
    %2005 = vmatmul.mubr.bf16.gmra.mxu0 %v460
    %v2006 = vpop.f32.mrf.mxu0
    %v2007 = vadd.f32 %v1966, %v2006
    %v2008 = vpop.f32.mrf.mxu0
    %v2009 = vadd.f32 %v1968, %v2008
    %v2010 = vpop.f32.mrf.mxu0
    %v2011 = vpop.f32.mrf.mxu0
    %2012 = vdwg.mxu0
    %2013 = vmatprep.subr.bf16.mxu0 %v1414
    %2014 = vmatpush1.bf16.msra.mxu0 %v1413
    %2015 = vmatprep.subr.bf16.mxu0 %v1410
    %2016 = vmatpush1.bf16.msra.mxu0 %v1409
    %2017 = vmatprep.subr.bf16.mxu0 %v1406
    %2018 = vmatpush1.bf16.msra.mxu0 %v1405
    %2019 = vmatprep.subr.bf16.mxu0 %v1402
    %2020 = vmatpush1.bf16.msra.mxu0 %v1401
    %2021 = vmatprep.subr.bf16.mxu0 %v1398
    %2022 = vmatpush1.bf16.msra.mxu0 %v1397
    %2023 = vmatprep.subr.bf16.mxu0 %v1394
    %2024 = vmatpush1.bf16.msra.mxu0 %v1393
    %2025 = vmatprep.subr.bf16.mxu0 %v1390
    %2026 = vmatpush1.bf16.msra.mxu0 %v1389
    %2027 = vmatprep.subr.bf16.mxu0 %v1386
    %2028 = vmatpush1.bf16.msra.mxu0 %v1385
    %2029 = vmatprep.subr.bf16.mxu0 %v1446
    %2030 = vmatpush2.bf16.msra.mxu0 %v1445
    %2031 = vmatprep.subr.bf16.mxu0 %v1442
    %2032 = vmatpush2.bf16.msra.mxu0 %v1441
    %2033 = vmatprep.subr.bf16.mxu0 %v1438
    %2034 = vmatpush2.bf16.msra.mxu0 %v1437
    %2035 = vmatprep.subr.bf16.mxu0 %v1434
    %2036 = vmatpush2.bf16.msra.mxu0 %v1433
    %2037 = vmatprep.subr.bf16.mxu0 %v1430
    %2038 = vmatpush2.bf16.msra.mxu0 %v1429
    %2039 = vmatprep.subr.bf16.mxu0 %v1426
    %2040 = vmatpush2.bf16.msra.mxu0 %v1425
    %2041 = vmatprep.subr.bf16.mxu0 %v1422
    %2042 = vmatpush2.bf16.msra.mxu0 %v1421
    %2043 = vmatprep.subr.bf16.mxu0 %v1418
    %2044 = vmatpush2.bf16.msra.mxu0 %v1417
    %2045 = vmatprep.mubr.bf16.mxu0 %v463
    %2046 = vmatmul.mubr.bf16.gmra.mxu0 %v462
    %v2047 = vpop.f32.mrf.mxu0
    %v2048 = vadd.f32 %v2007, %v2047
    %v2049 = vpop.f32.mrf.mxu0
    %v2050 = vadd.f32 %v2009, %v2049
    %v2051 = vpop.f32.mrf.mxu0
    %v2052 = vpop.f32.mrf.mxu0
    %2053 = vdwg.mxu0
    %2054 = vmatprep.subr.bf16.mxu0 %v1478
    %2055 = vmatpush1.bf16.msra.mxu0 %v1477
    %2056 = vmatprep.subr.bf16.mxu0 %v1474
    %2057 = vmatpush1.bf16.msra.mxu0 %v1473
    %2058 = vmatprep.subr.bf16.mxu0 %v1470
    %2059 = vmatpush1.bf16.msra.mxu0 %v1469
    %2060 = vmatprep.subr.bf16.mxu0 %v1466
    %2061 = vmatpush1.bf16.msra.mxu0 %v1465
    %2062 = vmatprep.subr.bf16.mxu0 %v1462
    %2063 = vmatpush1.bf16.msra.mxu0 %v1461
    %2064 = vmatprep.subr.bf16.mxu0 %v1458
    %2065 = vmatpush1.bf16.msra.mxu0 %v1457
    %2066 = vmatprep.subr.bf16.mxu0 %v1454
    %2067 = vmatpush1.bf16.msra.mxu0 %v1453
    %2068 = vmatprep.subr.bf16.mxu0 %v1450
    %2069 = vmatpush1.bf16.msra.mxu0 %v1449
    %2070 = vmatprep.subr.bf16.mxu0 %v1510
    %2071 = vmatpush2.bf16.msra.mxu0 %v1509
    %2072 = vmatprep.subr.bf16.mxu0 %v1506
    %2073 = vmatpush2.bf16.msra.mxu0 %v1505
    %2074 = vmatprep.subr.bf16.mxu0 %v1502
    %2075 = vmatpush2.bf16.msra.mxu0 %v1501
    %2076 = vmatprep.subr.bf16.mxu0 %v1498
    %2077 = vmatpush2.bf16.msra.mxu0 %v1497
    %2078 = vmatprep.subr.bf16.mxu0 %v1494
    %2079 = vmatpush2.bf16.msra.mxu0 %v1493
    %2080 = vmatprep.subr.bf16.mxu0 %v1490
    %2081 = vmatpush2.bf16.msra.mxu0 %v1489
    %2082 = vmatprep.subr.bf16.mxu0 %v1486
    %2083 = vmatpush2.bf16.msra.mxu0 %v1485
    %2084 = vmatprep.subr.bf16.mxu0 %v1482
    %2085 = vmatpush2.bf16.msra.mxu0 %v1481
    %2086 = vmatprep.mubr.bf16.mxu0 %v465
    %2087 = vmatmul.mubr.bf16.gmra.mxu0 %v464
    %v2088 = vpop.f32.mrf.mxu0
    %v2089 = vadd.f32 %v2048, %v2088
    %v2090 = vpop.f32.mrf.mxu0
    %v2091 = vadd.f32 %v2050, %v2090
    %v2092 = vpop.f32.mrf.mxu0
    %v2093 = vpop.f32.mrf.mxu0
    %2094 = vdwg.mxu0
    %v2095 = vmax.f32 %v1925, 0.0
    %v2096 = vmax.f32 %v1927, 0.0
    %v2097 = vmax.f32 %v2089, 0.0
    %v2098 = vmax.f32 %v2091, 0.0
    %v2099 = vld [vmem:[#allocation8] sm:$0xff]
    %v2100 = vld [vmem:[#allocation8 + $0x8] sm:$0xff]
    %v2101 = vld [vmem:[#allocation8 + $0x10] sm:$0xff]
    %v2102 = vld [vmem:[#allocation8 + $0x18] sm:$0xff]
    %v2103 = vld [vmem:[#allocation8 + $0x20] sm:$0xff]
    %v2104 = vld [vmem:[#allocation8 + $0x28] sm:$0xff]
    %v2105 = vld [vmem:[#allocation8 + $0x30] sm:$0xff]
    %v2106 = vld [vmem:[#allocation8 + $0x38] sm:$0xff]
    %v2107 = vld [vmem:[#allocation8 + $0x40] sm:$0xff]
    %v2108 = vld [vmem:[#allocation8 + $0x48] sm:$0xff]
    %v2109 = vld [vmem:[#allocation8 + $0x50] sm:$0xff]
    %v2110 = vld [vmem:[#allocation8 + $0x58] sm:$0xff]
    %v2111 = vld [vmem:[#allocation8 + $0x60] sm:$0xff]
    %v2112 = vld [vmem:[#allocation8 + $0x68] sm:$0xff]
    %v2113 = vld [vmem:[#allocation8 + $0x70] sm:$0xff]
    %v2114 = vld [vmem:[#allocation8 + $0x78] sm:$0xff]
    %v2115 = vld [vmem:[#allocation8 + $0x80] sm:$0xff]
    %v2116 = vld [vmem:[#allocation8 + $0x88] sm:$0xff]
    %v2117 = vld [vmem:[#allocation8 + $0x90] sm:$0xff]
    %v2118 = vld [vmem:[#allocation8 + $0x98] sm:$0xff]
    %v2119 = vld [vmem:[#allocation8 + $0xa0] sm:$0xff]
    %v2120 = vld [vmem:[#allocation8 + $0xa8] sm:$0xff]
    %v2121 = vld [vmem:[#allocation8 + $0xb0] sm:$0xff]
    %v2122 = vld [vmem:[#allocation8 + $0xb8] sm:$0xff]
    %v2123 = vld [vmem:[#allocation8 + $0xc0] sm:$0xff]
    %v2124 = vld [vmem:[#allocation8 + $0xc8] sm:$0xff]
    %v2125 = vld [vmem:[#allocation8 + $0xd0] sm:$0xff]
    %v2126 = vld [vmem:[#allocation8 + $0xd8] sm:$0xff]
    %v2127 = vld [vmem:[#allocation8 + $0xe0] sm:$0xff]
    %v2128 = vld [vmem:[#allocation8 + $0xe8] sm:$0xff]
    %v2129 = vld [vmem:[#allocation8 + $0xf0] sm:$0xff]
    %v2130 = vld [vmem:[#allocation8 + $0xf8] sm:$0xff]
    %v2131 = vld [vmem:[#allocation8 + $0x100] sm:$0xff]
    %v2132 = vld [vmem:[#allocation8 + $0x108] sm:$0xff]
    %v2133 = vld [vmem:[#allocation8 + $0x110] sm:$0xff]
    %v2134 = vld [vmem:[#allocation8 + $0x118] sm:$0xff]
    %v2135 = vld [vmem:[#allocation8 + $0x120] sm:$0xff]
    %v2136 = vld [vmem:[#allocation8 + $0x128] sm:$0xff]
    %v2137 = vld [vmem:[#allocation8 + $0x130] sm:$0xff]
    %v2138 = vld [vmem:[#allocation8 + $0x138] sm:$0xff]
    %v2139 = vld [vmem:[#allocation8 + $0x140] sm:$0xff]
    %v2140 = vld [vmem:[#allocation8 + $0x148] sm:$0xff]
    %v2141 = vld [vmem:[#allocation8 + $0x150] sm:$0xff]
    %v2142 = vld [vmem:[#allocation8 + $0x158] sm:$0xff]
    %v2143 = vld [vmem:[#allocation8 + $0x160] sm:$0xff]
    %v2144 = vld [vmem:[#allocation8 + $0x168] sm:$0xff]
    %v2145 = vld [vmem:[#allocation8 + $0x170] sm:$0xff]
    %v2146 = vld [vmem:[#allocation8 + $0x178] sm:$0xff]
    %v2147 = vld [vmem:[#allocation8 + $0x180] sm:$0xff]
    %v2148 = vld [vmem:[#allocation8 + $0x188] sm:$0xff]
    %v2149 = vld [vmem:[#allocation8 + $0x190] sm:$0xff]
    %v2150 = vld [vmem:[#allocation8 + $0x198] sm:$0xff]
    %v2151 = vld [vmem:[#allocation8 + $0x1a0] sm:$0xff]
    %v2152 = vld [vmem:[#allocation8 + $0x1a8] sm:$0xff]
    %v2153 = vld [vmem:[#allocation8 + $0x1b0] sm:$0xff]
    %v2154 = vld [vmem:[#allocation8 + $0x1b8] sm:$0xff]
    %v2155 = vld [vmem:[#allocation8 + $0x1c0] sm:$0xff]
    %v2156 = vld [vmem:[#allocation8 + $0x1c8] sm:$0xff]
    %v2157 = vld [vmem:[#allocation8 + $0x1d0] sm:$0xff]
    %v2158 = vld [vmem:[#allocation8 + $0x1d8] sm:$0xff]
    %v2159 = vld [vmem:[#allocation8 + $0x1e0] sm:$0xff]
    %v2160 = vld [vmem:[#allocation8 + $0x1e8] sm:$0xff]
    %v2161 = vld [vmem:[#allocation8 + $0x1f0] sm:$0xff]
    %v2162 = vld [vmem:[#allocation8 + $0x1f8] sm:$0xff]
    %v2163 = vld [vmem:[%s4] sm:$0x3]
    %v2164 = vpack.c.bf16 %v2095, %v2095
    %v2165 = vpack.c.bf16 %v2096, %v2096
    %v2166 = vpack.c.bf16 %v2097, %v2097
    %v2167 = vpack.c.bf16 %v2098, %v2098
    %v2169 = vlaneseq
    %v2170 = vshrl.u32 %v2169, 7
    %v2171 = vsub.s32 0, %v2170
    %v2172 = vrot.slane %v2163, %v2171
    %v2173 = vlaneseq
    %v2174 = vshrl.u32 %v2173, 7
    %v2175 = vsub.s32 1, %v2174
    %v2176 = vrot.slane %v2163, %v2175
    %v2243 = vunpack.c.l.b16 %v2099
    %v2244 = vunpack.c.h.b16 %v2099
    %v2245 = vunpack.c.l.b16 %v2100
    %v2246 = vunpack.c.h.b16 %v2100
    %v2247 = vunpack.c.l.b16 %v2101
    %v2248 = vunpack.c.h.b16 %v2101
    %v2249 = vunpack.c.l.b16 %v2102
    %v2250 = vunpack.c.h.b16 %v2102
    %v2251 = vunpack.c.l.b16 %v2103
    %v2252 = vunpack.c.h.b16 %v2103
    %v2253 = vunpack.c.l.b16 %v2104
    %v2254 = vunpack.c.h.b16 %v2104
    %v2255 = vunpack.c.l.b16 %v2105
    %v2256 = vunpack.c.h.b16 %v2105
    %v2257 = vunpack.c.l.b16 %v2106
    %v2258 = vunpack.c.h.b16 %v2106
    %v2259 = vunpack.c.l.b16 %v2107
    %v2260 = vunpack.c.h.b16 %v2107
    %v2261 = vunpack.c.l.b16 %v2108
    %v2262 = vunpack.c.h.b16 %v2108
    %v2263 = vunpack.c.l.b16 %v2109
    %v2264 = vunpack.c.h.b16 %v2109
    %v2265 = vunpack.c.l.b16 %v2110
    %v2266 = vunpack.c.h.b16 %v2110
    %v2267 = vunpack.c.l.b16 %v2111
    %v2268 = vunpack.c.h.b16 %v2111
    %v2269 = vunpack.c.l.b16 %v2112
    %v2270 = vunpack.c.h.b16 %v2112
    %v2271 = vunpack.c.l.b16 %v2113
    %v2272 = vunpack.c.h.b16 %v2113
    %v2273 = vunpack.c.l.b16 %v2114
    %v2274 = vunpack.c.h.b16 %v2114
    %v2275 = vunpack.c.l.b16 %v2115
    %v2276 = vunpack.c.h.b16 %v2115
    %v2277 = vunpack.c.l.b16 %v2116
    %v2278 = vunpack.c.h.b16 %v2116
    %v2279 = vunpack.c.l.b16 %v2117
    %v2280 = vunpack.c.h.b16 %v2117
    %v2281 = vunpack.c.l.b16 %v2118
    %v2282 = vunpack.c.h.b16 %v2118
    %v2283 = vunpack.c.l.b16 %v2119
    %v2284 = vunpack.c.h.b16 %v2119
    %v2285 = vunpack.c.l.b16 %v2120
    %v2286 = vunpack.c.h.b16 %v2120
    %v2287 = vunpack.c.l.b16 %v2121
    %v2288 = vunpack.c.h.b16 %v2121
    %v2289 = vunpack.c.l.b16 %v2122
    %v2290 = vunpack.c.h.b16 %v2122
    %v2291 = vunpack.c.l.b16 %v2123
    %v2292 = vunpack.c.h.b16 %v2123
    %v2293 = vunpack.c.l.b16 %v2124
    %v2294 = vunpack.c.h.b16 %v2124
    %v2295 = vunpack.c.l.b16 %v2125
    %v2296 = vunpack.c.h.b16 %v2125
    %v2297 = vunpack.c.l.b16 %v2126
    %v2298 = vunpack.c.h.b16 %v2126
    %v2299 = vunpack.c.l.b16 %v2127
    %v2300 = vunpack.c.h.b16 %v2127
    %v2301 = vunpack.c.l.b16 %v2128
    %v2302 = vunpack.c.h.b16 %v2128
    %v2303 = vunpack.c.l.b16 %v2129
    %v2304 = vunpack.c.h.b16 %v2129
    %v2305 = vunpack.c.l.b16 %v2130
    %v2306 = vunpack.c.h.b16 %v2130
    %v2307 = vunpack.c.l.b16 %v2131
    %v2308 = vunpack.c.h.b16 %v2131
    %v2309 = vunpack.c.l.b16 %v2132
    %v2310 = vunpack.c.h.b16 %v2132
    %v2311 = vunpack.c.l.b16 %v2133
    %v2312 = vunpack.c.h.b16 %v2133
    %v2313 = vunpack.c.l.b16 %v2134
    %v2314 = vunpack.c.h.b16 %v2134
    %v2315 = vunpack.c.l.b16 %v2135
    %v2316 = vunpack.c.h.b16 %v2135
    %v2317 = vunpack.c.l.b16 %v2136
    %v2318 = vunpack.c.h.b16 %v2136
    %v2319 = vunpack.c.l.b16 %v2137
    %v2320 = vunpack.c.h.b16 %v2137
    %v2321 = vunpack.c.l.b16 %v2138
    %v2322 = vunpack.c.h.b16 %v2138
    %v2323 = vunpack.c.l.b16 %v2139
    %v2324 = vunpack.c.h.b16 %v2139
    %v2325 = vunpack.c.l.b16 %v2140
    %v2326 = vunpack.c.h.b16 %v2140
    %v2327 = vunpack.c.l.b16 %v2141
    %v2328 = vunpack.c.h.b16 %v2141
    %v2329 = vunpack.c.l.b16 %v2142
    %v2330 = vunpack.c.h.b16 %v2142
    %v2331 = vunpack.c.l.b16 %v2143
    %v2332 = vunpack.c.h.b16 %v2143
    %v2333 = vunpack.c.l.b16 %v2144
    %v2334 = vunpack.c.h.b16 %v2144
    %v2335 = vunpack.c.l.b16 %v2145
    %v2336 = vunpack.c.h.b16 %v2145
    %v2337 = vunpack.c.l.b16 %v2146
    %v2338 = vunpack.c.h.b16 %v2146
    %v2339 = vunpack.c.l.b16 %v2147
    %v2340 = vunpack.c.h.b16 %v2147
    %v2341 = vunpack.c.l.b16 %v2148
    %v2342 = vunpack.c.h.b16 %v2148
    %v2343 = vunpack.c.l.b16 %v2149
    %v2344 = vunpack.c.h.b16 %v2149
    %v2345 = vunpack.c.l.b16 %v2150
    %v2346 = vunpack.c.h.b16 %v2150
    %v2347 = vunpack.c.l.b16 %v2151
    %v2348 = vunpack.c.h.b16 %v2151
    %v2349 = vunpack.c.l.b16 %v2152
    %v2350 = vunpack.c.h.b16 %v2152
    %v2351 = vunpack.c.l.b16 %v2153
    %v2352 = vunpack.c.h.b16 %v2153
    %v2353 = vunpack.c.l.b16 %v2154
    %v2354 = vunpack.c.h.b16 %v2154
    %v2355 = vunpack.c.l.b16 %v2155
    %v2356 = vunpack.c.h.b16 %v2155
    %v2357 = vunpack.c.l.b16 %v2156
    %v2358 = vunpack.c.h.b16 %v2156
    %v2359 = vunpack.c.l.b16 %v2157
    %v2360 = vunpack.c.h.b16 %v2157
    %v2361 = vunpack.c.l.b16 %v2158
    %v2362 = vunpack.c.h.b16 %v2158
    %v2363 = vunpack.c.l.b16 %v2159
    %v2364 = vunpack.c.h.b16 %v2159
    %v2365 = vunpack.c.l.b16 %v2160
    %v2366 = vunpack.c.h.b16 %v2160
    %v2367 = vunpack.c.l.b16 %v2161
    %v2368 = vunpack.c.h.b16 %v2161
    %v2369 = vunpack.c.l.b16 %v2162
    %v2370 = vunpack.c.h.b16 %v2162
    %v2371 = vpack.c.b16 %v2245, %v2243
    %v2372 = vpack.c.b16 %v2246, %v2244
    %v2373 = vpack.c.b16 %v2249, %v2247
    %v2374 = vpack.c.b16 %v2250, %v2248
    %v2375 = vpack.c.b16 %v2253, %v2251
    %v2376 = vpack.c.b16 %v2254, %v2252
    %v2377 = vpack.c.b16 %v2257, %v2255
    %v2378 = vpack.c.b16 %v2258, %v2256
    %v2379 = vpack.c.b16 %v2261, %v2259
    %v2380 = vpack.c.b16 %v2262, %v2260
    %v2381 = vpack.c.b16 %v2265, %v2263
    %v2382 = vpack.c.b16 %v2266, %v2264
    %v2383 = vpack.c.b16 %v2269, %v2267
    %v2384 = vpack.c.b16 %v2270, %v2268
    %v2385 = vpack.c.b16 %v2273, %v2271
    %v2386 = vpack.c.b16 %v2274, %v2272
    %v2387 = vpack.c.b16 %v2277, %v2275
    %v2388 = vpack.c.b16 %v2278, %v2276
    %v2389 = vpack.c.b16 %v2281, %v2279
    %v2390 = vpack.c.b16 %v2282, %v2280
    %v2391 = vpack.c.b16 %v2285, %v2283
    %v2392 = vpack.c.b16 %v2286, %v2284
    %v2393 = vpack.c.b16 %v2289, %v2287
    %v2394 = vpack.c.b16 %v2290, %v2288
    %v2395 = vpack.c.b16 %v2293, %v2291
    %v2396 = vpack.c.b16 %v2294, %v2292
    %v2397 = vpack.c.b16 %v2297, %v2295
    %v2398 = vpack.c.b16 %v2298, %v2296
    %v2399 = vpack.c.b16 %v2301, %v2299
    %v2400 = vpack.c.b16 %v2302, %v2300
    %v2401 = vpack.c.b16 %v2305, %v2303
    %v2402 = vpack.c.b16 %v2306, %v2304
    %v2403 = vpack.c.b16 %v2309, %v2307
    %v2404 = vpack.c.b16 %v2310, %v2308
    %v2405 = vpack.c.b16 %v2313, %v2311
    %v2406 = vpack.c.b16 %v2314, %v2312
    %v2407 = vpack.c.b16 %v2317, %v2315
    %v2408 = vpack.c.b16 %v2318, %v2316
    %v2409 = vpack.c.b16 %v2321, %v2319
    %v2410 = vpack.c.b16 %v2322, %v2320
    %v2411 = vpack.c.b16 %v2325, %v2323
    %v2412 = vpack.c.b16 %v2326, %v2324
    %v2413 = vpack.c.b16 %v2329, %v2327
    %v2414 = vpack.c.b16 %v2330, %v2328
    %v2415 = vpack.c.b16 %v2333, %v2331
    %v2416 = vpack.c.b16 %v2334, %v2332
    %v2417 = vpack.c.b16 %v2337, %v2335
    %v2418 = vpack.c.b16 %v2338, %v2336
    %v2419 = vpack.c.b16 %v2341, %v2339
    %v2420 = vpack.c.b16 %v2342, %v2340
    %v2421 = vpack.c.b16 %v2345, %v2343
    %v2422 = vpack.c.b16 %v2346, %v2344
    %v2423 = vpack.c.b16 %v2349, %v2347
    %v2424 = vpack.c.b16 %v2350, %v2348
    %v2425 = vpack.c.b16 %v2353, %v2351
    %v2426 = vpack.c.b16 %v2354, %v2352
    %v2427 = vpack.c.b16 %v2357, %v2355
    %v2428 = vpack.c.b16 %v2358, %v2356
    %v2429 = vpack.c.b16 %v2361, %v2359
    %v2430 = vpack.c.b16 %v2362, %v2360
    %v2431 = vpack.c.b16 %v2365, %v2363
    %v2432 = vpack.c.b16 %v2366, %v2364
    %v2433 = vpack.c.b16 %v2369, %v2367
    %v2434 = vpack.c.b16 %v2370, %v2368
    %2499 = vmatprep.subr.bf16.mxu0 %v2386
    %2500 = vmatpush1.bf16.msra.mxu0 %v2385
    %2501 = vmatprep.subr.bf16.mxu0 %v2384
    %2502 = vmatpush1.bf16.msra.mxu0 %v2383
    %2503 = vmatprep.subr.bf16.mxu0 %v2382
    %2504 = vmatpush1.bf16.msra.mxu0 %v2381
    %2505 = vmatprep.subr.bf16.mxu0 %v2380
    %2506 = vmatpush1.bf16.msra.mxu0 %v2379
    %2507 = vmatprep.subr.bf16.mxu0 %v2378
    %2508 = vmatpush1.bf16.msra.mxu0 %v2377
    %2509 = vmatprep.subr.bf16.mxu0 %v2376
    %2510 = vmatpush1.bf16.msra.mxu0 %v2375
    %2511 = vmatprep.subr.bf16.mxu0 %v2374
    %2512 = vmatpush1.bf16.msra.mxu0 %v2373
    %2513 = vmatprep.subr.bf16.mxu0 %v2372
    %2514 = vmatpush1.bf16.msra.mxu0 %v2371
    %2515 = vmatprep.subr.bf16.mxu0 %v2402
    %2516 = vmatpush2.bf16.msra.mxu0 %v2401
    %2517 = vmatprep.subr.bf16.mxu0 %v2400
    %2518 = vmatpush2.bf16.msra.mxu0 %v2399
    %2519 = vmatprep.subr.bf16.mxu0 %v2398
    %2520 = vmatpush2.bf16.msra.mxu0 %v2397
    %2521 = vmatprep.subr.bf16.mxu0 %v2396
    %2522 = vmatpush2.bf16.msra.mxu0 %v2395
    %2523 = vmatprep.subr.bf16.mxu0 %v2394
    %2524 = vmatpush2.bf16.msra.mxu0 %v2393
    %2525 = vmatprep.subr.bf16.mxu0 %v2392
    %2526 = vmatpush2.bf16.msra.mxu0 %v2391
    %2527 = vmatprep.subr.bf16.mxu0 %v2390
    %2528 = vmatpush2.bf16.msra.mxu0 %v2389
    %2529 = vmatprep.subr.bf16.mxu0 %v2388
    %2530 = vmatpush2.bf16.msra.mxu0 %v2387
    %2531 = vmatprep.mubr.bf16.mxu0 %v2165
    %2532 = vmatmul.mubr.bf16.gmra.mxu0 %v2164
    %v2533 = vpop.f32.mrf.mxu0
    %v2534 = vadd.f32 %v2172, %v2533
    %v2535 = vpop.f32.mrf.mxu0
    %v2536 = vadd.f32 %v2176, %v2535
    %v2537 = vpop.f32.mrf.mxu0
    %v2538 = vpop.f32.mrf.mxu0
    %2539 = vdwg.mxu0
    %2540 = vmatprep.subr.bf16.mxu0 %v2418
    %2541 = vmatpush1.bf16.msra.mxu0 %v2417
    %2542 = vmatprep.subr.bf16.mxu0 %v2416
    %2543 = vmatpush1.bf16.msra.mxu0 %v2415
    %2544 = vmatprep.subr.bf16.mxu0 %v2414
    %2545 = vmatpush1.bf16.msra.mxu0 %v2413
    %2546 = vmatprep.subr.bf16.mxu0 %v2412
    %2547 = vmatpush1.bf16.msra.mxu0 %v2411
    %2548 = vmatprep.subr.bf16.mxu0 %v2410
    %2549 = vmatpush1.bf16.msra.mxu0 %v2409
    %2550 = vmatprep.subr.bf16.mxu0 %v2408
    %2551 = vmatpush1.bf16.msra.mxu0 %v2407
    %2552 = vmatprep.subr.bf16.mxu0 %v2406
    %2553 = vmatpush1.bf16.msra.mxu0 %v2405
    %2554 = vmatprep.subr.bf16.mxu0 %v2404
    %2555 = vmatpush1.bf16.msra.mxu0 %v2403
    %2556 = vmatprep.subr.bf16.mxu0 %v2434
    %2557 = vmatpush2.bf16.msra.mxu0 %v2433
    %2558 = vmatprep.subr.bf16.mxu0 %v2432
    %2559 = vmatpush2.bf16.msra.mxu0 %v2431
    %2560 = vmatprep.subr.bf16.mxu0 %v2430
    %2561 = vmatpush2.bf16.msra.mxu0 %v2429
    %2562 = vmatprep.subr.bf16.mxu0 %v2428
    %2563 = vmatpush2.bf16.msra.mxu0 %v2427
    %2564 = vmatprep.subr.bf16.mxu0 %v2426
    %2565 = vmatpush2.bf16.msra.mxu0 %v2425
    %2566 = vmatprep.subr.bf16.mxu0 %v2424
    %2567 = vmatpush2.bf16.msra.mxu0 %v2423
    %2568 = vmatprep.subr.bf16.mxu0 %v2422
    %2569 = vmatpush2.bf16.msra.mxu0 %v2421
    %2570 = vmatprep.subr.bf16.mxu0 %v2420
    %2571 = vmatpush2.bf16.msra.mxu0 %v2419
    %2572 = vmatprep.mubr.bf16.mxu0 %v2167
    %2573 = vmatmul.mubr.bf16.gmra.mxu0 %v2166
    %v2574 = vpop.f32.mrf.mxu0
    %v2575 = vadd.f32 %v2534, %v2574
    %v2576 = vpop.f32.mrf.mxu0
    %v2577 = vadd.f32 %v2536, %v2576
    %v2578 = vpop.f32.mrf.mxu0
    %v2579 = vpop.f32.mrf.mxu0
    %2580 = vdwg.mxu0
    %v2581 = vmax.f32 %v2575, 0.0
    %v2582 = vmax.f32 %v2577, 0.0
    %v2583 = vld [vmem:[#allocation10] sm:$0xf]
    %v2584 = vld [vmem:[#allocation10 + $0x4] sm:$0xf]
    %v2585 = vld [vmem:[#allocation10 + $0x8] sm:$0xf]
    %v2586 = vld [vmem:[#allocation10 + $0xc] sm:$0xf]
    %v2587 = vld [vmem:[#allocation10 + $0x10] sm:$0xf]
    %v2588 = vld [vmem:[#allocation10 + $0x14] sm:$0xf]
    %v2589 = vld [vmem:[#allocation10 + $0x18] sm:$0xf]
    %v2590 = vld [vmem:[#allocation10 + $0x1c] sm:$0xf]
    %v2591 = vld [vmem:[#allocation10 + $0x20] sm:$0xf]
    %v2592 = vld [vmem:[#allocation10 + $0x24] sm:$0xf]
    %v2593 = vld [vmem:[#allocation10 + $0x28] sm:$0xf]
    %v2594 = vld [vmem:[#allocation10 + $0x2c] sm:$0xf]
    %v2595 = vld [vmem:[#allocation10 + $0x30] sm:$0xf]
    %v2596 = vld [vmem:[#allocation10 + $0x34] sm:$0xf]
    %v2597 = vld [vmem:[#allocation10 + $0x38] sm:$0xf]
    %v2598 = vld [vmem:[#allocation10 + $0x3c] sm:$0xf]
    %v2599 = vld [vmem:[#allocation10 + $0x40] sm:$0xf]
    %v2600 = vld [vmem:[#allocation10 + $0x44] sm:$0xf]
    %v2601 = vld [vmem:[#allocation10 + $0x48] sm:$0xf]
    %v2602 = vld [vmem:[#allocation10 + $0x4c] sm:$0xf]
    %v2603 = vld [vmem:[#allocation10 + $0x50] sm:$0xf]
    %v2604 = vld [vmem:[#allocation10 + $0x54] sm:$0xf]
    %v2605 = vld [vmem:[#allocation10 + $0x58] sm:$0xf]
    %v2606 = vld [vmem:[#allocation10 + $0x5c] sm:$0xf]
    %v2607 = vld [vmem:[#allocation10 + $0x60] sm:$0xf]
    %v2608 = vld [vmem:[#allocation10 + $0x64] sm:$0xf]
    %v2609 = vld [vmem:[#allocation10 + $0x68] sm:$0xf]
    %v2610 = vld [vmem:[#allocation10 + $0x6c] sm:$0xf]
    %v2611 = vld [vmem:[#allocation10 + $0x70] sm:$0xf]
    %v2612 = vld [vmem:[#allocation10 + $0x74] sm:$0xf]
    %v2613 = vld [vmem:[#allocation10 + $0x78] sm:$0xf]
    %v2614 = vld [vmem:[#allocation10 + $0x7c] sm:$0xf]
    %v2615 = vld [vmem:[#allocation11] sm:$0x1]
    %v2616 = vpack.c.bf16 %v2581, %v2581
    %v2617 = vpack.c.bf16 %v2582, %v2582
    %v2619 = vlaneseq
    %v2620 = vshrl.u32 %v2619, 7
    %v2621 = vsub.s32 0, %v2620
    %v2622 = vrot.slane %v2615, %v2621
    %v2656 = vunpack.c.l.b16 %v2583
    %v2657 = vunpack.c.l.b16 %v2584
    %v2658 = vunpack.c.l.b16 %v2585
    %v2659 = vunpack.c.l.b16 %v2586
    %v2660 = vunpack.c.l.b16 %v2587
    %v2661 = vunpack.c.l.b16 %v2588
    %v2662 = vunpack.c.l.b16 %v2589
    %v2663 = vunpack.c.l.b16 %v2590
    %v2664 = vunpack.c.l.b16 %v2591
    %v2665 = vunpack.c.l.b16 %v2592
    %v2666 = vunpack.c.l.b16 %v2593
    %v2667 = vunpack.c.l.b16 %v2594
    %v2668 = vunpack.c.l.b16 %v2595
    %v2669 = vunpack.c.l.b16 %v2596
    %v2670 = vunpack.c.l.b16 %v2597
    %v2671 = vunpack.c.l.b16 %v2598
    %v2672 = vunpack.c.l.b16 %v2599
    %v2673 = vunpack.c.l.b16 %v2600
    %v2674 = vunpack.c.l.b16 %v2601
    %v2675 = vunpack.c.l.b16 %v2602
    %v2676 = vunpack.c.l.b16 %v2603
    %v2677 = vunpack.c.l.b16 %v2604
    %v2678 = vunpack.c.l.b16 %v2605
    %v2679 = vunpack.c.l.b16 %v2606
    %v2680 = vunpack.c.l.b16 %v2607
    %v2681 = vunpack.c.l.b16 %v2608
    %v2682 = vunpack.c.l.b16 %v2609
    %v2683 = vunpack.c.l.b16 %v2610
    %v2684 = vunpack.c.l.b16 %v2611
    %v2685 = vunpack.c.l.b16 %v2612
    %v2686 = vunpack.c.l.b16 %v2613
    %v2687 = vunpack.c.l.b16 %v2614
    %v2688 = vpack.c.b16 %v2657, %v2656
    %v2689 = vpack.c.b16 %v2659, %v2658
    %v2690 = vpack.c.b16 %v2661, %v2660
    %v2691 = vpack.c.b16 %v2663, %v2662
    %v2692 = vpack.c.b16 %v2665, %v2664
    %v2693 = vpack.c.b16 %v2667, %v2666
    %v2694 = vpack.c.b16 %v2669, %v2668
    %v2695 = vpack.c.b16 %v2671, %v2670
    %v2696 = vpack.c.b16 %v2673, %v2672
    %v2697 = vpack.c.b16 %v2675, %v2674
    %v2698 = vpack.c.b16 %v2677, %v2676
    %v2699 = vpack.c.b16 %v2679, %v2678
    %v2700 = vpack.c.b16 %v2681, %v2680
    %v2701 = vpack.c.b16 %v2683, %v2682
    %v2702 = vpack.c.b16 %v2685, %v2684
    %v2703 = vpack.c.b16 %v2687, %v2686
    %2720 = vmatprep.subr.bf16.mxu0 0
    %2721 = vmatpush1.bf16.msra.mxu0 %v2695
    %2722 = vmatprep.subr.bf16.mxu0 0
    %2723 = vmatpush1.bf16.msra.mxu0 %v2694
    %2724 = vmatprep.subr.bf16.mxu0 0
    %2725 = vmatpush1.bf16.msra.mxu0 %v2693
    %2726 = vmatprep.subr.bf16.mxu0 0
    %2727 = vmatpush1.bf16.msra.mxu0 %v2692
    %2728 = vmatprep.subr.bf16.mxu0 0
    %2729 = vmatpush1.bf16.msra.mxu0 %v2691
    %2730 = vmatprep.subr.bf16.mxu0 0
    %2731 = vmatpush1.bf16.msra.mxu0 %v2690
    %2732 = vmatprep.subr.bf16.mxu0 0
    %2733 = vmatpush1.bf16.msra.mxu0 %v2689
    %2734 = vmatprep.subr.bf16.mxu0 0
    %2735 = vmatpush1.bf16.msra.mxu0 %v2688
    %2736 = vmatprep.subr.bf16.mxu0 0
    %2737 = vmatpush2.bf16.msra.mxu0 %v2703
    %2738 = vmatprep.subr.bf16.mxu0 0
    %2739 = vmatpush2.bf16.msra.mxu0 %v2702
    %2740 = vmatprep.subr.bf16.mxu0 0
    %2741 = vmatpush2.bf16.msra.mxu0 %v2701
    %2742 = vmatprep.subr.bf16.mxu0 0
    %2743 = vmatpush2.bf16.msra.mxu0 %v2700
    %2744 = vmatprep.subr.bf16.mxu0 0
    %2745 = vmatpush2.bf16.msra.mxu0 %v2699
    %2746 = vmatprep.subr.bf16.mxu0 0
    %2747 = vmatpush2.bf16.msra.mxu0 %v2698
    %2748 = vmatprep.subr.bf16.mxu0 0
    %2749 = vmatpush2.bf16.msra.mxu0 %v2697
    %2750 = vmatprep.subr.bf16.mxu0 0
    %2751 = vmatpush2.bf16.msra.mxu0 %v2696
    %2752 = vmatprep.mubr.bf16.mxu0 %v2617
    %2753 = vmatmul.mubr.bf16.gmra.mxu0 %v2616
    %v2754 = vpop.f32.mrf.mxu0
    %v2755 = vadd.f32 %v2622, %v2754
    %v2756 = vpop.f32.mrf.mxu0
    %v2757 = vpop.f32.mrf.mxu0
    %v2758 = vpop.f32.mrf.mxu0
    %2759 = vdwg.mxu0
    %v2760 = vmax.f32 %v2755, 0.0
    %v2761 = vld [vmem:[#allocation13] sm:$0xf]
    %v2762 = vld [vmem:[#allocation13 + $0x4] sm:$0xf]
    %v2763 = vld [vmem:[#allocation13 + $0x8] sm:$0xf]
    %v2764 = vld [vmem:[#allocation13 + $0xc] sm:$0xf]
    %v2765 = vld [vmem:[#allocation13 + $0x10] sm:$0xf]
    %v2766 = vld [vmem:[#allocation13 + $0x14] sm:$0xf]
    %v2767 = vld [vmem:[#allocation13 + $0x18] sm:$0xf]
    %v2768 = vld [vmem:[#allocation13 + $0x1c] sm:$0xf]
    %v2769 = vld [vmem:[#allocation13 + $0x20] sm:$0xf]
    %v2770 = vld [vmem:[#allocation13 + $0x24] sm:$0xf]
    %v2771 = vld [vmem:[#allocation13 + $0x28] sm:$0xf]
    %v2772 = vld [vmem:[#allocation13 + $0x2c] sm:$0xf]
    %v2773 = vld [vmem:[#allocation13 + $0x30] sm:$0xf]
    %v2774 = vld [vmem:[#allocation13 + $0x34] sm:$0xf]
    %v2775 = vld [vmem:[#allocation13 + $0x38] sm:$0xf]
    %v2776 = vld [vmem:[#allocation13 + $0x3c] sm:$0xf]
    %v2777 = vld [vmem:[#allocation14] sm:$0x1]
    %v2778 = vpack.c.bf16 %v2760, %v2760
    %v2780 = vlaneseq
    %v2781 = vshrl.u32 %v2780, 7
    %v2782 = vsub.s32 0, %v2781
    %v2783 = vrot.slane %v2777, %v2782
    %v2801 = vunpack.c.l.b16 %v2761
    %v2802 = vunpack.c.l.b16 %v2762
    %v2803 = vunpack.c.l.b16 %v2763
    %v2804 = vunpack.c.l.b16 %v2764
    %v2805 = vunpack.c.l.b16 %v2765
    %v2806 = vunpack.c.l.b16 %v2766
    %v2807 = vunpack.c.l.b16 %v2767
    %v2808 = vunpack.c.l.b16 %v2768
    %v2809 = vunpack.c.l.b16 %v2769
    %v2810 = vunpack.c.l.b16 %v2770
    %v2811 = vunpack.c.l.b16 %v2771
    %v2812 = vunpack.c.l.b16 %v2772
    %v2813 = vunpack.c.l.b16 %v2773
    %v2814 = vunpack.c.l.b16 %v2774
    %v2815 = vunpack.c.l.b16 %v2775
    %v2816 = vunpack.c.l.b16 %v2776
    %v2817 = vpack.c.b16 %v2802, %v2801
    %v2818 = vpack.c.b16 %v2804, %v2803
    %v2819 = vpack.c.b16 %v2806, %v2805
    %v2820 = vpack.c.b16 %v2808, %v2807
    %v2821 = vpack.c.b16 %v2810, %v2809
    %v2822 = vpack.c.b16 %v2812, %v2811
    %v2823 = vpack.c.b16 %v2814, %v2813
    %v2824 = vpack.c.b16 %v2816, %v2815
    %2833 = vmatprep.subr.bf16.mxu0 0
    %2834 = vmatpush1.bf16.msra.mxu0 %v2824
    %2835 = vmatprep.subr.bf16.mxu0 0
    %2836 = vmatpush1.bf16.msra.mxu0 %v2823
    %2837 = vmatprep.subr.bf16.mxu0 0
    %2838 = vmatpush1.bf16.msra.mxu0 %v2822
    %2839 = vmatprep.subr.bf16.mxu0 0
    %2840 = vmatpush1.bf16.msra.mxu0 %v2821
    %2841 = vmatprep.subr.bf16.mxu0 0
    %2842 = vmatpush1.bf16.msra.mxu0 %v2820
    %2843 = vmatprep.subr.bf16.mxu0 0
    %2844 = vmatpush1.bf16.msra.mxu0 %v2819
    %2845 = vmatprep.subr.bf16.mxu0 0
    %2846 = vmatpush1.bf16.msra.mxu0 %v2818
    %2847 = vmatprep.subr.bf16.mxu0 0
    %2848 = vmatpush1.bf16.msra.mxu0 %v2817
    %2849 = vmatprep.subr.bf16.mxu0 0
    %2850 = vmatpush2.bf16.msra.mxu0 0
    %2851 = vmatprep.subr.bf16.mxu0 0
    %2852 = vmatpush2.bf16.msra.mxu0 0
    %2853 = vmatprep.subr.bf16.mxu0 0
    %2854 = vmatpush2.bf16.msra.mxu0 0
    %2855 = vmatprep.subr.bf16.mxu0 0
    %2856 = vmatpush2.bf16.msra.mxu0 0
    %2857 = vmatprep.subr.bf16.mxu0 0
    %2858 = vmatpush2.bf16.msra.mxu0 0
    %2859 = vmatprep.subr.bf16.mxu0 0
    %2860 = vmatpush2.bf16.msra.mxu0 0
    %2861 = vmatprep.subr.bf16.mxu0 0
    %2862 = vmatpush2.bf16.msra.mxu0 0
    %2863 = vmatprep.subr.bf16.mxu0 0
    %2864 = vmatpush2.bf16.msra.mxu0 0
    %2865 = vmatprep.mubr.bf16.mxu0 0
    %2866 = vmatmul.mubr.bf16.gmra.mxu0 %v2778
    %v2867 = vpop.f32.mrf.mxu0
    %v2868 = vadd.f32 %v2783, %v2867
    %v2869 = vpop.f32.mrf.mxu0
    %v2870 = vpop.f32.mrf.mxu0
    %v2871 = vpop.f32.mrf.mxu0
    %2872 = vdwg.mxu0
    %v2873 = vmax.f32 %v2868, 0.0
    %v2874 = vld [vmem:[#allocation16] sm:$0xff]
    %v2875 = vld [vmem:[#allocation16 + $0x8] sm:$0xff]
    %v2876 = vld [vmem:[#allocation16 + $0x10] sm:$0xff]
    %v2877 = vld [vmem:[#allocation16 + $0x18] sm:$0xff]
    %v2878 = vld [vmem:[#allocation16 + $0x20] sm:$0xff]
    %v2879 = vld [vmem:[#allocation16 + $0x28] sm:$0xff]
    %v2880 = vld [vmem:[#allocation16 + $0x30] sm:$0xff]
    %v2881 = vld [vmem:[#allocation16 + $0x38] sm:$0xff]
    %v2882 = vld [vmem:[#allocation16 + $0x40] sm:$0xff]
    %v2883 = vld [vmem:[#allocation16 + $0x48] sm:$0xff]
    %v2884 = vld [vmem:[#allocation16 + $0x50] sm:$0xff]
    %v2885 = vld [vmem:[#allocation16 + $0x58] sm:$0xff]
    %v2886 = vld [vmem:[#allocation16 + $0x60] sm:$0xff]
    %v2887 = vld [vmem:[#allocation16 + $0x68] sm:$0xff]
    %v2888 = vld [vmem:[#allocation16 + $0x70] sm:$0xff]
    %v2889 = vld [vmem:[#allocation16 + $0x78] sm:$0xff]
    %v2890 = vld [vmem:[%s10] sm:$0x3]
    %v2891 = vpack.c.bf16 %v2873, %v2873
    %v2893 = vlaneseq
    %v2894 = vshrl.u32 %v2893, 7
    %v2895 = vsub.s32 0, %v2894
    %v2896 = vrot.slane %v2890, %v2895
    %v2897 = vlaneseq
    %v2898 = vshrl.u32 %v2897, 7
    %v2899 = vsub.s32 1, %v2898
    %v2900 = vrot.slane %v2890, %v2899
    %v2919 = vunpack.c.l.b16 %v2874
    %v2920 = vunpack.c.h.b16 %v2874
    %v2921 = vunpack.c.l.b16 %v2875
    %v2922 = vunpack.c.h.b16 %v2875
    %v2923 = vunpack.c.l.b16 %v2876
    %v2924 = vunpack.c.h.b16 %v2876
    %v2925 = vunpack.c.l.b16 %v2877
    %v2926 = vunpack.c.h.b16 %v2877
    %v2927 = vunpack.c.l.b16 %v2878
    %v2928 = vunpack.c.h.b16 %v2878
    %v2929 = vunpack.c.l.b16 %v2879
    %v2930 = vunpack.c.h.b16 %v2879
    %v2931 = vunpack.c.l.b16 %v2880
    %v2932 = vunpack.c.h.b16 %v2880
    %v2933 = vunpack.c.l.b16 %v2881
    %v2934 = vunpack.c.h.b16 %v2881
    %v2935 = vunpack.c.l.b16 %v2882
    %v2936 = vunpack.c.h.b16 %v2882
    %v2937 = vunpack.c.l.b16 %v2883
    %v2938 = vunpack.c.h.b16 %v2883
    %v2939 = vunpack.c.l.b16 %v2884
    %v2940 = vunpack.c.h.b16 %v2884
    %v2941 = vunpack.c.l.b16 %v2885
    %v2942 = vunpack.c.h.b16 %v2885
    %v2943 = vunpack.c.l.b16 %v2886
    %v2944 = vunpack.c.h.b16 %v2886
    %v2945 = vunpack.c.l.b16 %v2887
    %v2946 = vunpack.c.h.b16 %v2887
    %v2947 = vunpack.c.l.b16 %v2888
    %v2948 = vunpack.c.h.b16 %v2888
    %v2949 = vunpack.c.l.b16 %v2889
    %v2950 = vunpack.c.h.b16 %v2889
    %v2951 = vpack.c.b16 %v2921, %v2919
    %v2952 = vpack.c.b16 %v2922, %v2920
    %v2953 = vpack.c.b16 %v2925, %v2923
    %v2954 = vpack.c.b16 %v2926, %v2924
    %v2955 = vpack.c.b16 %v2929, %v2927
    %v2956 = vpack.c.b16 %v2930, %v2928
    %v2957 = vpack.c.b16 %v2933, %v2931
    %v2958 = vpack.c.b16 %v2934, %v2932
    %v2959 = vpack.c.b16 %v2937, %v2935
    %v2960 = vpack.c.b16 %v2938, %v2936
    %v2961 = vpack.c.b16 %v2941, %v2939
    %v2962 = vpack.c.b16 %v2942, %v2940
    %v2963 = vpack.c.b16 %v2945, %v2943
    %v2964 = vpack.c.b16 %v2946, %v2944
    %v2965 = vpack.c.b16 %v2949, %v2947
    %v2966 = vpack.c.b16 %v2950, %v2948
    %2983 = vmatprep.subr.bf16.mxu0 %v2966
    %2984 = vmatpush1.bf16.msra.mxu0 %v2965
    %2985 = vmatprep.subr.bf16.mxu0 %v2964
    %2986 = vmatpush1.bf16.msra.mxu0 %v2963
    %2987 = vmatprep.subr.bf16.mxu0 %v2962
    %2988 = vmatpush1.bf16.msra.mxu0 %v2961
    %2989 = vmatprep.subr.bf16.mxu0 %v2960
    %2990 = vmatpush1.bf16.msra.mxu0 %v2959
    %2991 = vmatprep.subr.bf16.mxu0 %v2958
    %2992 = vmatpush1.bf16.msra.mxu0 %v2957
    %2993 = vmatprep.subr.bf16.mxu0 %v2956
    %2994 = vmatpush1.bf16.msra.mxu0 %v2955
    %2995 = vmatprep.subr.bf16.mxu0 %v2954
    %2996 = vmatpush1.bf16.msra.mxu0 %v2953
    %2997 = vmatprep.subr.bf16.mxu0 %v2952
    %2998 = vmatpush1.bf16.msra.mxu0 %v2951
    %2999 = vmatprep.subr.bf16.mxu0 0
    %3000 = vmatpush2.bf16.msra.mxu0 0
    %3001 = vmatprep.subr.bf16.mxu0 0
    %3002 = vmatpush2.bf16.msra.mxu0 0
    %3003 = vmatprep.subr.bf16.mxu0 0
    %3004 = vmatpush2.bf16.msra.mxu0 0
    %3005 = vmatprep.subr.bf16.mxu0 0
    %3006 = vmatpush2.bf16.msra.mxu0 0
    %3007 = vmatprep.subr.bf16.mxu0 0
    %3008 = vmatpush2.bf16.msra.mxu0 0
    %3009 = vmatprep.subr.bf16.mxu0 0
    %3010 = vmatpush2.bf16.msra.mxu0 0
    %3011 = vmatprep.subr.bf16.mxu0 0
    %3012 = vmatpush2.bf16.msra.mxu0 0
    %3013 = vmatprep.subr.bf16.mxu0 0
    %3014 = vmatpush2.bf16.msra.mxu0 0
    %3015 = vmatprep.mubr.bf16.mxu0 0
    %3016 = vmatmul.mubr.bf16.gmra.mxu0 %v2891
    %v3017 = vpop.f32.mrf.mxu0
    %v3018 = vadd.f32 %v2896, %v3017
    %v3019 = vpop.f32.mrf.mxu0
    %v3020 = vadd.f32 %v2900, %v3019
    %v3021 = vpop.f32.mrf.mxu0
    %v3022 = vpop.f32.mrf.mxu0
    %3023 = vdwg.mxu0
    %v3024 = vmax.f32 %v3018, 0.0
    %v3025 = vmax.f32 %v3020, 0.0
    %v3026 = vld [vmem:[#allocation17] sm:$0xff]
    %v3027 = vld [vmem:[#allocation17 + $0x8] sm:$0xff]
    %v3028 = vld [vmem:[#allocation17 + $0x10] sm:$0xff]
    %v3029 = vld [vmem:[#allocation17 + $0x18] sm:$0xff]
    %v3030 = vld [vmem:[#allocation17 + $0x20] sm:$0xff]
    %v3031 = vld [vmem:[#allocation17 + $0x28] sm:$0xff]
    %v3032 = vld [vmem:[#allocation17 + $0x30] sm:$0xff]
    %v3033 = vld [vmem:[#allocation17 + $0x38] sm:$0xff]
    %v3034 = vld [vmem:[#allocation17 + $0x40] sm:$0xff]
    %v3035 = vld [vmem:[#allocation17 + $0x48] sm:$0xff]
    %v3036 = vld [vmem:[#allocation17 + $0x50] sm:$0xff]
    %v3037 = vld [vmem:[#allocation17 + $0x58] sm:$0xff]
    %v3038 = vld [vmem:[#allocation17 + $0x60] sm:$0xff]
    %v3039 = vld [vmem:[#allocation17 + $0x68] sm:$0xff]
    %v3040 = vld [vmem:[#allocation17 + $0x70] sm:$0xff]
    %v3041 = vld [vmem:[#allocation17 + $0x78] sm:$0xff]
    %v3042 = vld [vmem:[#allocation17 + $0x80] sm:$0xff]
    %v3043 = vld [vmem:[#allocation17 + $0x88] sm:$0xff]
    %v3044 = vld [vmem:[#allocation17 + $0x90] sm:$0xff]
    %v3045 = vld [vmem:[#allocation17 + $0x98] sm:$0xff]
    %v3046 = vld [vmem:[#allocation17 + $0xa0] sm:$0xff]
    %v3047 = vld [vmem:[#allocation17 + $0xa8] sm:$0xff]
    %v3048 = vld [vmem:[#allocation17 + $0xb0] sm:$0xff]
    %v3049 = vld [vmem:[#allocation17 + $0xb8] sm:$0xff]
    %v3050 = vld [vmem:[#allocation17 + $0xc0] sm:$0xff]
    %v3051 = vld [vmem:[#allocation17 + $0xc8] sm:$0xff]
    %v3052 = vld [vmem:[#allocation17 + $0xd0] sm:$0xff]
    %v3053 = vld [vmem:[#allocation17 + $0xd8] sm:$0xff]
    %v3054 = vld [vmem:[#allocation17 + $0xe0] sm:$0xff]
    %v3055 = vld [vmem:[#allocation17 + $0xe8] sm:$0xff]
    %v3056 = vld [vmem:[#allocation17 + $0xf0] sm:$0xff]
    %v3057 = vld [vmem:[#allocation17 + $0xf8] sm:$0xff]
    %v3058 = vld [vmem:[#allocation17 + $0x100] sm:$0xff]
    %v3059 = vld [vmem:[#allocation17 + $0x108] sm:$0xff]
    %v3060 = vld [vmem:[#allocation17 + $0x110] sm:$0xff]
    %v3061 = vld [vmem:[#allocation17 + $0x118] sm:$0xff]
    %v3062 = vld [vmem:[#allocation17 + $0x120] sm:$0xff]
    %v3063 = vld [vmem:[#allocation17 + $0x128] sm:$0xff]
    %v3064 = vld [vmem:[#allocation17 + $0x130] sm:$0xff]
    %v3065 = vld [vmem:[#allocation17 + $0x138] sm:$0xff]
    %v3066 = vld [vmem:[#allocation17 + $0x140] sm:$0xff]
    %v3067 = vld [vmem:[#allocation17 + $0x148] sm:$0xff]
    %v3068 = vld [vmem:[#allocation17 + $0x150] sm:$0xff]
    %v3069 = vld [vmem:[#allocation17 + $0x158] sm:$0xff]
    %v3070 = vld [vmem:[#allocation17 + $0x160] sm:$0xff]
    %v3071 = vld [vmem:[#allocation17 + $0x168] sm:$0xff]
    %v3072 = vld [vmem:[#allocation17 + $0x170] sm:$0xff]
    %v3073 = vld [vmem:[#allocation17 + $0x178] sm:$0xff]
    %v3074 = vld [vmem:[#allocation17 + $0x180] sm:$0xff]
    %v3075 = vld [vmem:[#allocation17 + $0x188] sm:$0xff]
    %v3076 = vld [vmem:[#allocation17 + $0x190] sm:$0xff]
    %v3077 = vld [vmem:[#allocation17 + $0x198] sm:$0xff]
    %v3078 = vld [vmem:[#allocation17 + $0x1a0] sm:$0xff]
    %v3079 = vld [vmem:[#allocation17 + $0x1a8] sm:$0xff]
    %v3080 = vld [vmem:[#allocation17 + $0x1b0] sm:$0xff]
    %v3081 = vld [vmem:[#allocation17 + $0x1b8] sm:$0xff]
    %v3082 = vld [vmem:[#allocation17 + $0x1c0] sm:$0xff]
    %v3083 = vld [vmem:[#allocation17 + $0x1c8] sm:$0xff]
    %v3084 = vld [vmem:[#allocation17 + $0x1d0] sm:$0xff]
    %v3085 = vld [vmem:[#allocation17 + $0x1d8] sm:$0xff]
    %v3086 = vld [vmem:[#allocation17 + $0x1e0] sm:$0xff]
    %v3087 = vld [vmem:[#allocation17 + $0x1e8] sm:$0xff]
    %v3088 = vld [vmem:[#allocation17 + $0x1f0] sm:$0xff]
    %v3089 = vld [vmem:[#allocation17 + $0x1f8] sm:$0xff]
    %v3090 = vld [vmem:[%s12] sm:$0xf]
    %v3091 = vpack.c.bf16 %v3024, %v3024
    %v3092 = vpack.c.bf16 %v3025, %v3025
    %v3094 = vlaneseq
    %v3095 = vshrl.u32 %v3094, 7
    %v3096 = vsub.s32 0, %v3095
    %v3097 = vrot.slane %v3090, %v3096
    %v3098 = vlaneseq
    %v3099 = vshrl.u32 %v3098, 7
    %v3100 = vsub.s32 1, %v3099
    %v3101 = vrot.slane %v3090, %v3100
    %v3102 = vlaneseq
    %v3103 = vshrl.u32 %v3102, 7
    %v3104 = vsub.s32 2, %v3103
    %v3105 = vrot.slane %v3090, %v3104
    %v3106 = vlaneseq
    %v3107 = vshrl.u32 %v3106, 7
    %v3108 = vsub.s32 3, %v3107
    %v3109 = vrot.slane %v3090, %v3108
    %v3178 = vunpack.c.l.b16 %v3026
    %v3179 = vunpack.c.h.b16 %v3026
    %v3180 = vunpack.c.l.b16 %v3027
    %v3181 = vunpack.c.h.b16 %v3027
    %v3182 = vunpack.c.l.b16 %v3028
    %v3183 = vunpack.c.h.b16 %v3028
    %v3184 = vunpack.c.l.b16 %v3029
    %v3185 = vunpack.c.h.b16 %v3029
    %v3186 = vunpack.c.l.b16 %v3030
    %v3187 = vunpack.c.h.b16 %v3030
    %v3188 = vunpack.c.l.b16 %v3031
    %v3189 = vunpack.c.h.b16 %v3031
    %v3190 = vunpack.c.l.b16 %v3032
    %v3191 = vunpack.c.h.b16 %v3032
    %v3192 = vunpack.c.l.b16 %v3033
    %v3193 = vunpack.c.h.b16 %v3033
    %v3194 = vunpack.c.l.b16 %v3034
    %v3195 = vunpack.c.h.b16 %v3034
    %v3196 = vunpack.c.l.b16 %v3035
    %v3197 = vunpack.c.h.b16 %v3035
    %v3198 = vunpack.c.l.b16 %v3036
    %v3199 = vunpack.c.h.b16 %v3036
    %v3200 = vunpack.c.l.b16 %v3037
    %v3201 = vunpack.c.h.b16 %v3037
    %v3202 = vunpack.c.l.b16 %v3038
    %v3203 = vunpack.c.h.b16 %v3038
    %v3204 = vunpack.c.l.b16 %v3039
    %v3205 = vunpack.c.h.b16 %v3039
    %v3206 = vunpack.c.l.b16 %v3040
    %v3207 = vunpack.c.h.b16 %v3040
    %v3208 = vunpack.c.l.b16 %v3041
    %v3209 = vunpack.c.h.b16 %v3041
    %v3210 = vunpack.c.l.b16 %v3042
    %v3211 = vunpack.c.h.b16 %v3042
    %v3212 = vunpack.c.l.b16 %v3043
    %v3213 = vunpack.c.h.b16 %v3043
    %v3214 = vunpack.c.l.b16 %v3044
    %v3215 = vunpack.c.h.b16 %v3044
    %v3216 = vunpack.c.l.b16 %v3045
    %v3217 = vunpack.c.h.b16 %v3045
    %v3218 = vunpack.c.l.b16 %v3046
    %v3219 = vunpack.c.h.b16 %v3046
    %v3220 = vunpack.c.l.b16 %v3047
    %v3221 = vunpack.c.h.b16 %v3047
    %v3222 = vunpack.c.l.b16 %v3048
    %v3223 = vunpack.c.h.b16 %v3048
    %v3224 = vunpack.c.l.b16 %v3049
    %v3225 = vunpack.c.h.b16 %v3049
    %v3226 = vunpack.c.l.b16 %v3050
    %v3227 = vunpack.c.h.b16 %v3050
    %v3228 = vunpack.c.l.b16 %v3051
    %v3229 = vunpack.c.h.b16 %v3051
    %v3230 = vunpack.c.l.b16 %v3052
    %v3231 = vunpack.c.h.b16 %v3052
    %v3232 = vunpack.c.l.b16 %v3053
    %v3233 = vunpack.c.h.b16 %v3053
    %v3234 = vunpack.c.l.b16 %v3054
    %v3235 = vunpack.c.h.b16 %v3054
    %v3236 = vunpack.c.l.b16 %v3055
    %v3237 = vunpack.c.h.b16 %v3055
    %v3238 = vunpack.c.l.b16 %v3056
    %v3239 = vunpack.c.h.b16 %v3056
    %v3240 = vunpack.c.l.b16 %v3057
    %v3241 = vunpack.c.h.b16 %v3057
    %v3242 = vunpack.c.l.b16 %v3058
    %v3243 = vunpack.c.h.b16 %v3058
    %v3244 = vunpack.c.l.b16 %v3059
    %v3245 = vunpack.c.h.b16 %v3059
    %v3246 = vunpack.c.l.b16 %v3060
    %v3247 = vunpack.c.h.b16 %v3060
    %v3248 = vunpack.c.l.b16 %v3061
    %v3249 = vunpack.c.h.b16 %v3061
    %v3250 = vunpack.c.l.b16 %v3062
    %v3251 = vunpack.c.h.b16 %v3062
    %v3252 = vunpack.c.l.b16 %v3063
    %v3253 = vunpack.c.h.b16 %v3063
    %v3254 = vunpack.c.l.b16 %v3064
    %v3255 = vunpack.c.h.b16 %v3064
    %v3256 = vunpack.c.l.b16 %v3065
    %v3257 = vunpack.c.h.b16 %v3065
    %v3258 = vunpack.c.l.b16 %v3066
    %v3259 = vunpack.c.h.b16 %v3066
    %v3260 = vunpack.c.l.b16 %v3067
    %v3261 = vunpack.c.h.b16 %v3067
    %v3262 = vunpack.c.l.b16 %v3068
    %v3263 = vunpack.c.h.b16 %v3068
    %v3264 = vunpack.c.l.b16 %v3069
    %v3265 = vunpack.c.h.b16 %v3069
    %v3266 = vunpack.c.l.b16 %v3070
    %v3267 = vunpack.c.h.b16 %v3070
    %v3268 = vunpack.c.l.b16 %v3071
    %v3269 = vunpack.c.h.b16 %v3071
    %v3270 = vunpack.c.l.b16 %v3072
    %v3271 = vunpack.c.h.b16 %v3072
    %v3272 = vunpack.c.l.b16 %v3073
    %v3273 = vunpack.c.h.b16 %v3073
    %v3274 = vunpack.c.l.b16 %v3074
    %v3275 = vunpack.c.h.b16 %v3074
    %v3276 = vunpack.c.l.b16 %v3075
    %v3277 = vunpack.c.h.b16 %v3075
    %v3278 = vunpack.c.l.b16 %v3076
    %v3279 = vunpack.c.h.b16 %v3076
    %v3280 = vunpack.c.l.b16 %v3077
    %v3281 = vunpack.c.h.b16 %v3077
    %v3282 = vunpack.c.l.b16 %v3078
    %v3283 = vunpack.c.h.b16 %v3078
    %v3284 = vunpack.c.l.b16 %v3079
    %v3285 = vunpack.c.h.b16 %v3079
    %v3286 = vunpack.c.l.b16 %v3080
    %v3287 = vunpack.c.h.b16 %v3080
    %v3288 = vunpack.c.l.b16 %v3081
    %v3289 = vunpack.c.h.b16 %v3081
    %v3290 = vunpack.c.l.b16 %v3082
    %v3291 = vunpack.c.h.b16 %v3082
    %v3292 = vunpack.c.l.b16 %v3083
    %v3293 = vunpack.c.h.b16 %v3083
    %v3294 = vunpack.c.l.b16 %v3084
    %v3295 = vunpack.c.h.b16 %v3084
    %v3296 = vunpack.c.l.b16 %v3085
    %v3297 = vunpack.c.h.b16 %v3085
    %v3298 = vunpack.c.l.b16 %v3086
    %v3299 = vunpack.c.h.b16 %v3086
    %v3300 = vunpack.c.l.b16 %v3087
    %v3301 = vunpack.c.h.b16 %v3087
    %v3302 = vunpack.c.l.b16 %v3088
    %v3303 = vunpack.c.h.b16 %v3088
    %v3304 = vunpack.c.l.b16 %v3089
    %v3305 = vunpack.c.h.b16 %v3089
    %v3306 = vpack.c.b16 %v3182, %v3178
    %v3307 = vpack.c.b16 %v3183, %v3179
    %v3308 = vpack.c.b16 %v3184, %v3180
    %v3309 = vpack.c.b16 %v3185, %v3181
    %v3310 = vpack.c.b16 %v3190, %v3186
    %v3311 = vpack.c.b16 %v3191, %v3187
    %v3312 = vpack.c.b16 %v3192, %v3188
    %v3313 = vpack.c.b16 %v3193, %v3189
    %v3314 = vpack.c.b16 %v3198, %v3194
    %v3315 = vpack.c.b16 %v3199, %v3195
    %v3316 = vpack.c.b16 %v3200, %v3196
    %v3317 = vpack.c.b16 %v3201, %v3197
    %v3318 = vpack.c.b16 %v3206, %v3202
    %v3319 = vpack.c.b16 %v3207, %v3203
    %v3320 = vpack.c.b16 %v3208, %v3204
    %v3321 = vpack.c.b16 %v3209, %v3205
    %v3322 = vpack.c.b16 %v3214, %v3210
    %v3323 = vpack.c.b16 %v3215, %v3211
    %v3324 = vpack.c.b16 %v3216, %v3212
    %v3325 = vpack.c.b16 %v3217, %v3213
    %v3326 = vpack.c.b16 %v3222, %v3218
    %v3327 = vpack.c.b16 %v3223, %v3219
    %v3328 = vpack.c.b16 %v3224, %v3220
    %v3329 = vpack.c.b16 %v3225, %v3221
    %v3330 = vpack.c.b16 %v3230, %v3226
    %v3331 = vpack.c.b16 %v3231, %v3227
    %v3332 = vpack.c.b16 %v3232, %v3228
    %v3333 = vpack.c.b16 %v3233, %v3229
    %v3334 = vpack.c.b16 %v3238, %v3234
    %v3335 = vpack.c.b16 %v3239, %v3235
    %v3336 = vpack.c.b16 %v3240, %v3236
    %v3337 = vpack.c.b16 %v3241, %v3237
    %v3338 = vpack.c.b16 %v3246, %v3242
    %v3339 = vpack.c.b16 %v3247, %v3243
    %v3340 = vpack.c.b16 %v3248, %v3244
    %v3341 = vpack.c.b16 %v3249, %v3245
    %v3342 = vpack.c.b16 %v3254, %v3250
    %v3343 = vpack.c.b16 %v3255, %v3251
    %v3344 = vpack.c.b16 %v3256, %v3252
    %v3345 = vpack.c.b16 %v3257, %v3253
    %v3346 = vpack.c.b16 %v3262, %v3258
    %v3347 = vpack.c.b16 %v3263, %v3259
    %v3348 = vpack.c.b16 %v3264, %v3260
    %v3349 = vpack.c.b16 %v3265, %v3261
    %v3350 = vpack.c.b16 %v3270, %v3266
    %v3351 = vpack.c.b16 %v3271, %v3267
    %v3352 = vpack.c.b16 %v3272, %v3268
    %v3353 = vpack.c.b16 %v3273, %v3269
    %v3354 = vpack.c.b16 %v3278, %v3274
    %v3355 = vpack.c.b16 %v3279, %v3275
    %v3356 = vpack.c.b16 %v3280, %v3276
    %v3357 = vpack.c.b16 %v3281, %v3277
    %v3358 = vpack.c.b16 %v3286, %v3282
    %v3359 = vpack.c.b16 %v3287, %v3283
    %v3360 = vpack.c.b16 %v3288, %v3284
    %v3361 = vpack.c.b16 %v3289, %v3285
    %v3362 = vpack.c.b16 %v3294, %v3290
    %v3363 = vpack.c.b16 %v3295, %v3291
    %v3364 = vpack.c.b16 %v3296, %v3292
    %v3365 = vpack.c.b16 %v3297, %v3293
    %v3366 = vpack.c.b16 %v3302, %v3298
    %v3367 = vpack.c.b16 %v3303, %v3299
    %v3368 = vpack.c.b16 %v3304, %v3300
    %v3369 = vpack.c.b16 %v3305, %v3301
    %3434 = vmatprep.subr.bf16.mxu0 %v3335
    %3435 = vmatpush1.bf16.msra.mxu0 %v3334
    %3436 = vmatprep.subr.bf16.mxu0 %v3331
    %3437 = vmatpush1.bf16.msra.mxu0 %v3330
    %3438 = vmatprep.subr.bf16.mxu0 %v3327
    %3439 = vmatpush1.bf16.msra.mxu0 %v3326
    %3440 = vmatprep.subr.bf16.mxu0 %v3323
    %3441 = vmatpush1.bf16.msra.mxu0 %v3322
    %3442 = vmatprep.subr.bf16.mxu0 %v3319
    %3443 = vmatpush1.bf16.msra.mxu0 %v3318
    %3444 = vmatprep.subr.bf16.mxu0 %v3315
    %3445 = vmatpush1.bf16.msra.mxu0 %v3314
    %3446 = vmatprep.subr.bf16.mxu0 %v3311
    %3447 = vmatpush1.bf16.msra.mxu0 %v3310
    %3448 = vmatprep.subr.bf16.mxu0 %v3307
    %3449 = vmatpush1.bf16.msra.mxu0 %v3306
    %3450 = vmatprep.subr.bf16.mxu0 %v3367
    %3451 = vmatpush2.bf16.msra.mxu0 %v3366
    %3452 = vmatprep.subr.bf16.mxu0 %v3363
    %3453 = vmatpush2.bf16.msra.mxu0 %v3362
    %3454 = vmatprep.subr.bf16.mxu0 %v3359
    %3455 = vmatpush2.bf16.msra.mxu0 %v3358
    %3456 = vmatprep.subr.bf16.mxu0 %v3355
    %3457 = vmatpush2.bf16.msra.mxu0 %v3354
    %3458 = vmatprep.subr.bf16.mxu0 %v3351
    %3459 = vmatpush2.bf16.msra.mxu0 %v3350
    %3460 = vmatprep.subr.bf16.mxu0 %v3347
    %3461 = vmatpush2.bf16.msra.mxu0 %v3346
    %3462 = vmatprep.subr.bf16.mxu0 %v3343
    %3463 = vmatpush2.bf16.msra.mxu0 %v3342
    %3464 = vmatprep.subr.bf16.mxu0 %v3339
    %3465 = vmatpush2.bf16.msra.mxu0 %v3338
    %3466 = vmatprep.mubr.bf16.mxu0 %v3092
    %3467 = vmatmul.mubr.bf16.gmra.mxu0 %v3091
    %v3468 = vpop.f32.mrf.mxu0
    %v3469 = vadd.f32 %v3097, %v3468
    %v3470 = vpop.f32.mrf.mxu0
    %v3471 = vadd.f32 %v3101, %v3470
    %v3472 = vpop.f32.mrf.mxu0
    %v3473 = vpop.f32.mrf.mxu0
    %3474 = vdwg.mxu0
    %3475 = vmatprep.subr.bf16.mxu0 %v3337
    %3476 = vmatpush1.bf16.msra.mxu0 %v3336
    %3477 = vmatprep.subr.bf16.mxu0 %v3333
    %3478 = vmatpush1.bf16.msra.mxu0 %v3332
    %3479 = vmatprep.subr.bf16.mxu0 %v3329
    %3480 = vmatpush1.bf16.msra.mxu0 %v3328
    %3481 = vmatprep.subr.bf16.mxu0 %v3325
    %3482 = vmatpush1.bf16.msra.mxu0 %v3324
    %3483 = vmatprep.subr.bf16.mxu0 %v3321
    %3484 = vmatpush1.bf16.msra.mxu0 %v3320
    %3485 = vmatprep.subr.bf16.mxu0 %v3317
    %3486 = vmatpush1.bf16.msra.mxu0 %v3316
    %3487 = vmatprep.subr.bf16.mxu0 %v3313
    %3488 = vmatpush1.bf16.msra.mxu0 %v3312
    %3489 = vmatprep.subr.bf16.mxu0 %v3309
    %3490 = vmatpush1.bf16.msra.mxu0 %v3308
    %3491 = vmatprep.subr.bf16.mxu0 %v3369
    %3492 = vmatpush2.bf16.msra.mxu0 %v3368
    %3493 = vmatprep.subr.bf16.mxu0 %v3365
    %3494 = vmatpush2.bf16.msra.mxu0 %v3364
    %3495 = vmatprep.subr.bf16.mxu0 %v3361
    %3496 = vmatpush2.bf16.msra.mxu0 %v3360
    %3497 = vmatprep.subr.bf16.mxu0 %v3357
    %3498 = vmatpush2.bf16.msra.mxu0 %v3356
    %3499 = vmatprep.subr.bf16.mxu0 %v3353
    %3500 = vmatpush2.bf16.msra.mxu0 %v3352
    %3501 = vmatprep.subr.bf16.mxu0 %v3349
    %3502 = vmatpush2.bf16.msra.mxu0 %v3348
    %3503 = vmatprep.subr.bf16.mxu0 %v3345
    %3504 = vmatpush2.bf16.msra.mxu0 %v3344
    %3505 = vmatprep.subr.bf16.mxu0 %v3341
    %3506 = vmatpush2.bf16.msra.mxu0 %v3340
    %3507 = vmatprep.mubr.bf16.mxu0 %v3092
    %3508 = vmatmul.mubr.bf16.gmra.mxu0 %v3091
    %v3509 = vpop.f32.mrf.mxu0
    %v3510 = vadd.f32 %v3105, %v3509
    %v3511 = vpop.f32.mrf.mxu0
    %v3512 = vadd.f32 %v3109, %v3511
    %v3513 = vpop.f32.mrf.mxu0
    %v3514 = vpop.f32.mrf.mxu0
    %3515 = vdwg.mxu0
    %v3516 = vmax.f32 %v3469, 0.0
    %v3517 = vmax.f32 %v3471, 0.0
    %v3518 = vmax.f32 %v3510, 0.0
    %v3519 = vmax.f32 %v3512, 0.0
    %v3520 = vld [vmem:[#allocation19] sm:$0xff]
    %v3521 = vld [vmem:[#allocation19 + $0x8] sm:$0xff]
    %v3522 = vld [vmem:[#allocation19 + $0x10] sm:$0xff]
    %v3523 = vld [vmem:[#allocation19 + $0x18] sm:$0xff]
    %v3524 = vld [vmem:[#allocation19 + $0x20] sm:$0xff]
    %v3525 = vld [vmem:[#allocation19 + $0x28] sm:$0xff]
    %v3526 = vld [vmem:[#allocation19 + $0x30] sm:$0xff]
    %v3527 = vld [vmem:[#allocation19 + $0x38] sm:$0xff]
    %v3528 = vld [vmem:[#allocation19 + $0x40] sm:$0xff]
    %v3529 = vld [vmem:[#allocation19 + $0x48] sm:$0xff]
    %v3530 = vld [vmem:[#allocation19 + $0x50] sm:$0xff]
    %v3531 = vld [vmem:[#allocation19 + $0x58] sm:$0xff]
    %v3532 = vld [vmem:[#allocation19 + $0x60] sm:$0xff]
    %v3533 = vld [vmem:[#allocation19 + $0x68] sm:$0xff]
    %v3534 = vld [vmem:[#allocation19 + $0x70] sm:$0xff]
    %v3535 = vld [vmem:[#allocation19 + $0x78] sm:$0xff]
    %v3536 = vld [vmem:[#allocation19 + $0x80] sm:$0xff]
    %v3537 = vld [vmem:[#allocation19 + $0x88] sm:$0xff]
    %v3538 = vld [vmem:[#allocation19 + $0x90] sm:$0xff]
    %v3539 = vld [vmem:[#allocation19 + $0x98] sm:$0xff]
    %v3540 = vld [vmem:[#allocation19 + $0xa0] sm:$0xff]
    %v3541 = vld [vmem:[#allocation19 + $0xa8] sm:$0xff]
    %v3542 = vld [vmem:[#allocation19 + $0xb0] sm:$0xff]
    %v3543 = vld [vmem:[#allocation19 + $0xb8] sm:$0xff]
    %v3544 = vld [vmem:[#allocation19 + $0xc0] sm:$0xff]
    %v3545 = vld [vmem:[#allocation19 + $0xc8] sm:$0xff]
    %v3546 = vld [vmem:[#allocation19 + $0xd0] sm:$0xff]
    %v3547 = vld [vmem:[#allocation19 + $0xd8] sm:$0xff]
    %v3548 = vld [vmem:[#allocation19 + $0xe0] sm:$0xff]
    %v3549 = vld [vmem:[#allocation19 + $0xe8] sm:$0xff]
    %v3550 = vld [vmem:[#allocation19 + $0xf0] sm:$0xff]
    %v3551 = vld [vmem:[#allocation19 + $0xf8] sm:$0xff]
    %v3552 = vld [vmem:[#allocation19 + $0x100] sm:$0xff]
    %v3553 = vld [vmem:[#allocation19 + $0x108] sm:$0xff]
    %v3554 = vld [vmem:[#allocation19 + $0x110] sm:$0xff]
    %v3555 = vld [vmem:[#allocation19 + $0x118] sm:$0xff]
    %v3556 = vld [vmem:[#allocation19 + $0x120] sm:$0xff]
    %v3557 = vld [vmem:[#allocation19 + $0x128] sm:$0xff]
    %v3558 = vld [vmem:[#allocation19 + $0x130] sm:$0xff]
    %v3559 = vld [vmem:[#allocation19 + $0x138] sm:$0xff]
    %v3560 = vld [vmem:[#allocation19 + $0x140] sm:$0xff]
    %v3561 = vld [vmem:[#allocation19 + $0x148] sm:$0xff]
    %v3562 = vld [vmem:[#allocation19 + $0x150] sm:$0xff]
    %v3563 = vld [vmem:[#allocation19 + $0x158] sm:$0xff]
    %v3564 = vld [vmem:[#allocation19 + $0x160] sm:$0xff]
    %v3565 = vld [vmem:[#allocation19 + $0x168] sm:$0xff]
    %v3566 = vld [vmem:[#allocation19 + $0x170] sm:$0xff]
    %v3567 = vld [vmem:[#allocation19 + $0x178] sm:$0xff]
    %v3568 = vld [vmem:[#allocation19 + $0x180] sm:$0xff]
    %v3569 = vld [vmem:[#allocation19 + $0x188] sm:$0xff]
    %v3570 = vld [vmem:[#allocation19 + $0x190] sm:$0xff]
    %v3571 = vld [vmem:[#allocation19 + $0x198] sm:$0xff]
    %v3572 = vld [vmem:[#allocation19 + $0x1a0] sm:$0xff]
    %v3573 = vld [vmem:[#allocation19 + $0x1a8] sm:$0xff]
    %v3574 = vld [vmem:[#allocation19 + $0x1b0] sm:$0xff]
    %v3575 = vld [vmem:[#allocation19 + $0x1b8] sm:$0xff]
    %v3576 = vld [vmem:[#allocation19 + $0x1c0] sm:$0xff]
    %v3577 = vld [vmem:[#allocation19 + $0x1c8] sm:$0xff]
    %v3578 = vld [vmem:[#allocation19 + $0x1d0] sm:$0xff]
    %v3579 = vld [vmem:[#allocation19 + $0x1d8] sm:$0xff]
    %v3580 = vld [vmem:[#allocation19 + $0x1e0] sm:$0xff]
    %v3581 = vld [vmem:[#allocation19 + $0x1e8] sm:$0xff]
    %v3582 = vld [vmem:[#allocation19 + $0x1f0] sm:$0xff]
    %v3583 = vld [vmem:[#allocation19 + $0x1f8] sm:$0xff]
    %v3584 = vld [vmem:[#allocation19 + $0x200] sm:$0xff]
    %v3585 = vld [vmem:[#allocation19 + $0x208] sm:$0xff]
    %v3586 = vld [vmem:[#allocation19 + $0x210] sm:$0xff]
    %v3587 = vld [vmem:[#allocation19 + $0x218] sm:$0xff]
    %v3588 = vld [vmem:[#allocation19 + $0x220] sm:$0xff]
    %v3589 = vld [vmem:[#allocation19 + $0x228] sm:$0xff]
    %v3590 = vld [vmem:[#allocation19 + $0x230] sm:$0xff]
    %v3591 = vld [vmem:[#allocation19 + $0x238] sm:$0xff]
    %v3592 = vld [vmem:[#allocation19 + $0x240] sm:$0xff]
    %v3593 = vld [vmem:[#allocation19 + $0x248] sm:$0xff]
    %v3594 = vld [vmem:[#allocation19 + $0x250] sm:$0xff]
    %v3595 = vld [vmem:[#allocation19 + $0x258] sm:$0xff]
    %v3596 = vld [vmem:[#allocation19 + $0x260] sm:$0xff]
    %v3597 = vld [vmem:[#allocation19 + $0x268] sm:$0xff]
    %v3598 = vld [vmem:[#allocation19 + $0x270] sm:$0xff]
    %v3599 = vld [vmem:[#allocation19 + $0x278] sm:$0xff]
    %v3600 = vld [vmem:[#allocation19 + $0x280] sm:$0xff]
    %v3601 = vld [vmem:[#allocation19 + $0x288] sm:$0xff]
    %v3602 = vld [vmem:[#allocation19 + $0x290] sm:$0xff]
    %v3603 = vld [vmem:[#allocation19 + $0x298] sm:$0xff]
    %v3604 = vld [vmem:[#allocation19 + $0x2a0] sm:$0xff]
    %v3605 = vld [vmem:[#allocation19 + $0x2a8] sm:$0xff]
    %v3606 = vld [vmem:[#allocation19 + $0x2b0] sm:$0xff]
    %v3607 = vld [vmem:[#allocation19 + $0x2b8] sm:$0xff]
    %v3608 = vld [vmem:[#allocation19 + $0x2c0] sm:$0xff]
    %v3609 = vld [vmem:[#allocation19 + $0x2c8] sm:$0xff]
    %v3610 = vld [vmem:[#allocation19 + $0x2d0] sm:$0xff]
    %v3611 = vld [vmem:[#allocation19 + $0x2d8] sm:$0xff]
    %v3612 = vld [vmem:[#allocation19 + $0x2e0] sm:$0xff]
    %v3613 = vld [vmem:[#allocation19 + $0x2e8] sm:$0xff]
    %v3614 = vld [vmem:[#allocation19 + $0x2f0] sm:$0xff]
    %v3615 = vld [vmem:[#allocation19 + $0x2f8] sm:$0xff]
    %v3616 = vld [vmem:[#allocation19 + $0x300] sm:$0xff]
    %v3617 = vld [vmem:[#allocation19 + $0x308] sm:$0xff]
    %v3618 = vld [vmem:[#allocation19 + $0x310] sm:$0xff]
    %v3619 = vld [vmem:[#allocation19 + $0x318] sm:$0xff]
    %v3620 = vld [vmem:[#allocation19 + $0x320] sm:$0xff]
    %v3621 = vld [vmem:[#allocation19 + $0x328] sm:$0xff]
    %v3622 = vld [vmem:[#allocation19 + $0x330] sm:$0xff]
    %v3623 = vld [vmem:[#allocation19 + $0x338] sm:$0xff]
    %v3624 = vld [vmem:[#allocation19 + $0x340] sm:$0xff]
    %v3625 = vld [vmem:[#allocation19 + $0x348] sm:$0xff]
    %v3626 = vld [vmem:[#allocation19 + $0x350] sm:$0xff]
    %v3627 = vld [vmem:[#allocation19 + $0x358] sm:$0xff]
    %v3628 = vld [vmem:[#allocation19 + $0x360] sm:$0xff]
    %v3629 = vld [vmem:[#allocation19 + $0x368] sm:$0xff]
    %v3630 = vld [vmem:[#allocation19 + $0x370] sm:$0xff]
    %v3631 = vld [vmem:[#allocation19 + $0x378] sm:$0xff]
    %v3632 = vld [vmem:[#allocation19 + $0x380] sm:$0xff]
    %v3633 = vld [vmem:[#allocation19 + $0x388] sm:$0xff]
    %v3634 = vld [vmem:[#allocation19 + $0x390] sm:$0xff]
    %v3635 = vld [vmem:[#allocation19 + $0x398] sm:$0xff]
    %v3636 = vld [vmem:[#allocation19 + $0x3a0] sm:$0xff]
    %v3637 = vld [vmem:[#allocation19 + $0x3a8] sm:$0xff]
    %v3638 = vld [vmem:[#allocation19 + $0x3b0] sm:$0xff]
    %v3639 = vld [vmem:[#allocation19 + $0x3b8] sm:$0xff]
    %v3640 = vld [vmem:[#allocation19 + $0x3c0] sm:$0xff]
    %v3641 = vld [vmem:[#allocation19 + $0x3c8] sm:$0xff]
    %v3642 = vld [vmem:[#allocation19 + $0x3d0] sm:$0xff]
    %v3643 = vld [vmem:[#allocation19 + $0x3d8] sm:$0xff]
    %v3644 = vld [vmem:[#allocation19 + $0x3e0] sm:$0xff]
    %v3645 = vld [vmem:[#allocation19 + $0x3e8] sm:$0xff]
    %v3646 = vld [vmem:[#allocation19 + $0x3f0] sm:$0xff]
    %v3647 = vld [vmem:[#allocation19 + $0x3f8] sm:$0xff]
    %v3648 = vld [vmem:[#allocation19 + $0x400] sm:$0xff]
    %v3649 = vld [vmem:[#allocation19 + $0x408] sm:$0xff]
    %v3650 = vld [vmem:[#allocation19 + $0x410] sm:$0xff]
    %v3651 = vld [vmem:[#allocation19 + $0x418] sm:$0xff]
    %v3652 = vld [vmem:[#allocation19 + $0x420] sm:$0xff]
    %v3653 = vld [vmem:[#allocation19 + $0x428] sm:$0xff]
    %v3654 = vld [vmem:[#allocation19 + $0x430] sm:$0xff]
    %v3655 = vld [vmem:[#allocation19 + $0x438] sm:$0xff]
    %v3656 = vld [vmem:[#allocation19 + $0x440] sm:$0xff]
    %v3657 = vld [vmem:[#allocation19 + $0x448] sm:$0xff]
    %v3658 = vld [vmem:[#allocation19 + $0x450] sm:$0xff]
    %v3659 = vld [vmem:[#allocation19 + $0x458] sm:$0xff]
    %v3660 = vld [vmem:[#allocation19 + $0x460] sm:$0xff]
    %v3661 = vld [vmem:[#allocation19 + $0x468] sm:$0xff]
    %v3662 = vld [vmem:[#allocation19 + $0x470] sm:$0xff]
    %v3663 = vld [vmem:[#allocation19 + $0x478] sm:$0xff]
    %v3664 = vld [vmem:[#allocation19 + $0x480] sm:$0xff]
    %v3665 = vld [vmem:[#allocation19 + $0x488] sm:$0xff]
    %v3666 = vld [vmem:[#allocation19 + $0x490] sm:$0xff]
    %v3667 = vld [vmem:[#allocation19 + $0x498] sm:$0xff]
    %v3668 = vld [vmem:[#allocation19 + $0x4a0] sm:$0xff]
    %v3669 = vld [vmem:[#allocation19 + $0x4a8] sm:$0xff]
    %v3670 = vld [vmem:[#allocation19 + $0x4b0] sm:$0xff]
    %v3671 = vld [vmem:[#allocation19 + $0x4b8] sm:$0xff]
    %v3672 = vld [vmem:[#allocation19 + $0x4c0] sm:$0xff]
    %v3673 = vld [vmem:[#allocation19 + $0x4c8] sm:$0xff]
    %v3674 = vld [vmem:[#allocation19 + $0x4d0] sm:$0xff]
    %v3675 = vld [vmem:[#allocation19 + $0x4d8] sm:$0xff]
    %v3676 = vld [vmem:[#allocation19 + $0x4e0] sm:$0xff]
    %v3677 = vld [vmem:[#allocation19 + $0x4e8] sm:$0xff]
    %v3678 = vld [vmem:[#allocation19 + $0x4f0] sm:$0xff]
    %v3679 = vld [vmem:[#allocation19 + $0x4f8] sm:$0xff]
    %v3680 = vld [vmem:[#allocation19 + $0x500] sm:$0xff]
    %v3681 = vld [vmem:[#allocation19 + $0x508] sm:$0xff]
    %v3682 = vld [vmem:[#allocation19 + $0x510] sm:$0xff]
    %v3683 = vld [vmem:[#allocation19 + $0x518] sm:$0xff]
    %v3684 = vld [vmem:[#allocation19 + $0x520] sm:$0xff]
    %v3685 = vld [vmem:[#allocation19 + $0x528] sm:$0xff]
    %v3686 = vld [vmem:[#allocation19 + $0x530] sm:$0xff]
    %v3687 = vld [vmem:[#allocation19 + $0x538] sm:$0xff]
    %v3688 = vld [vmem:[#allocation19 + $0x540] sm:$0xff]
    %v3689 = vld [vmem:[#allocation19 + $0x548] sm:$0xff]
    %v3690 = vld [vmem:[#allocation19 + $0x550] sm:$0xff]
    %v3691 = vld [vmem:[#allocation19 + $0x558] sm:$0xff]
    %v3692 = vld [vmem:[#allocation19 + $0x560] sm:$0xff]
    %v3693 = vld [vmem:[#allocation19 + $0x568] sm:$0xff]
    %v3694 = vld [vmem:[#allocation19 + $0x570] sm:$0xff]
    %v3695 = vld [vmem:[#allocation19 + $0x578] sm:$0xff]
    %v3696 = vld [vmem:[#allocation19 + $0x580] sm:$0xff]
    %v3697 = vld [vmem:[#allocation19 + $0x588] sm:$0xff]
    %v3698 = vld [vmem:[#allocation19 + $0x590] sm:$0xff]
    %v3699 = vld [vmem:[#allocation19 + $0x598] sm:$0xff]
    %v3700 = vld [vmem:[#allocation19 + $0x5a0] sm:$0xff]
    %v3701 = vld [vmem:[#allocation19 + $0x5a8] sm:$0xff]
    %v3702 = vld [vmem:[#allocation19 + $0x5b0] sm:$0xff]
    %v3703 = vld [vmem:[#allocation19 + $0x5b8] sm:$0xff]
    %v3704 = vld [vmem:[#allocation19 + $0x5c0] sm:$0xff]
    %v3705 = vld [vmem:[#allocation19 + $0x5c8] sm:$0xff]
    %v3706 = vld [vmem:[#allocation19 + $0x5d0] sm:$0xff]
    %v3707 = vld [vmem:[#allocation19 + $0x5d8] sm:$0xff]
    %v3708 = vld [vmem:[#allocation19 + $0x5e0] sm:$0xff]
    %v3709 = vld [vmem:[#allocation19 + $0x5e8] sm:$0xff]
    %v3710 = vld [vmem:[#allocation19 + $0x5f0] sm:$0xff]
    %v3711 = vld [vmem:[#allocation19 + $0x5f8] sm:$0xff]
    %v3712 = vld [vmem:[#allocation19 + $0x600] sm:$0xff]
    %v3713 = vld [vmem:[#allocation19 + $0x608] sm:$0xff]
    %v3714 = vld [vmem:[#allocation19 + $0x610] sm:$0xff]
    %v3715 = vld [vmem:[#allocation19 + $0x618] sm:$0xff]
    %v3716 = vld [vmem:[#allocation19 + $0x620] sm:$0xff]
    %v3717 = vld [vmem:[#allocation19 + $0x628] sm:$0xff]
    %v3718 = vld [vmem:[#allocation19 + $0x630] sm:$0xff]
    %v3719 = vld [vmem:[#allocation19 + $0x638] sm:$0xff]
    %v3720 = vld [vmem:[#allocation19 + $0x640] sm:$0xff]
    %v3721 = vld [vmem:[#allocation19 + $0x648] sm:$0xff]
    %v3722 = vld [vmem:[#allocation19 + $0x650] sm:$0xff]
    %v3723 = vld [vmem:[#allocation19 + $0x658] sm:$0xff]
    %v3724 = vld [vmem:[#allocation19 + $0x660] sm:$0xff]
    %v3725 = vld [vmem:[#allocation19 + $0x668] sm:$0xff]
    %v3726 = vld [vmem:[#allocation19 + $0x670] sm:$0xff]
    %v3727 = vld [vmem:[#allocation19 + $0x678] sm:$0xff]
    %v3728 = vld [vmem:[#allocation19 + $0x680] sm:$0xff]
    %v3729 = vld [vmem:[#allocation19 + $0x688] sm:$0xff]
    %v3730 = vld [vmem:[#allocation19 + $0x690] sm:$0xff]
    %v3731 = vld [vmem:[#allocation19 + $0x698] sm:$0xff]
    %v3732 = vld [vmem:[#allocation19 + $0x6a0] sm:$0xff]
    %v3733 = vld [vmem:[#allocation19 + $0x6a8] sm:$0xff]
    %v3734 = vld [vmem:[#allocation19 + $0x6b0] sm:$0xff]
    %v3735 = vld [vmem:[#allocation19 + $0x6b8] sm:$0xff]
    %v3736 = vld [vmem:[#allocation19 + $0x6c0] sm:$0xff]
    %v3737 = vld [vmem:[#allocation19 + $0x6c8] sm:$0xff]
    %v3738 = vld [vmem:[#allocation19 + $0x6d0] sm:$0xff]
    %v3739 = vld [vmem:[#allocation19 + $0x6d8] sm:$0xff]
    %v3740 = vld [vmem:[#allocation19 + $0x6e0] sm:$0xff]
    %v3741 = vld [vmem:[#allocation19 + $0x6e8] sm:$0xff]
    %v3742 = vld [vmem:[#allocation19 + $0x6f0] sm:$0xff]
    %v3743 = vld [vmem:[#allocation19 + $0x6f8] sm:$0xff]
    %v3744 = vld [vmem:[#allocation19 + $0x700] sm:$0xff]
    %v3745 = vld [vmem:[#allocation19 + $0x708] sm:$0xff]
    %v3746 = vld [vmem:[#allocation19 + $0x710] sm:$0xff]
    %v3747 = vld [vmem:[#allocation19 + $0x718] sm:$0xff]
    %v3748 = vld [vmem:[#allocation19 + $0x720] sm:$0xff]
    %v3749 = vld [vmem:[#allocation19 + $0x728] sm:$0xff]
    %v3750 = vld [vmem:[#allocation19 + $0x730] sm:$0xff]
    %v3751 = vld [vmem:[#allocation19 + $0x738] sm:$0xff]
    %v3752 = vld [vmem:[#allocation19 + $0x740] sm:$0xff]
    %v3753 = vld [vmem:[#allocation19 + $0x748] sm:$0xff]
    %v3754 = vld [vmem:[#allocation19 + $0x750] sm:$0xff]
    %v3755 = vld [vmem:[#allocation19 + $0x758] sm:$0xff]
    %v3756 = vld [vmem:[#allocation19 + $0x760] sm:$0xff]
    %v3757 = vld [vmem:[#allocation19 + $0x768] sm:$0xff]
    %v3758 = vld [vmem:[#allocation19 + $0x770] sm:$0xff]
    %v3759 = vld [vmem:[#allocation19 + $0x778] sm:$0xff]
    %v3760 = vld [vmem:[#allocation19 + $0x780] sm:$0xff]
    %v3761 = vld [vmem:[#allocation19 + $0x788] sm:$0xff]
    %v3762 = vld [vmem:[#allocation19 + $0x790] sm:$0xff]
    %v3763 = vld [vmem:[#allocation19 + $0x798] sm:$0xff]
    %v3764 = vld [vmem:[#allocation19 + $0x7a0] sm:$0xff]
    %v3765 = vld [vmem:[#allocation19 + $0x7a8] sm:$0xff]
    %v3766 = vld [vmem:[#allocation19 + $0x7b0] sm:$0xff]
    %v3767 = vld [vmem:[#allocation19 + $0x7b8] sm:$0xff]
    %v3768 = vld [vmem:[#allocation19 + $0x7c0] sm:$0xff]
    %v3769 = vld [vmem:[#allocation19 + $0x7c8] sm:$0xff]
    %v3770 = vld [vmem:[#allocation19 + $0x7d0] sm:$0xff]
    %v3771 = vld [vmem:[#allocation19 + $0x7d8] sm:$0xff]
    %v3772 = vld [vmem:[#allocation19 + $0x7e0] sm:$0xff]
    %v3773 = vld [vmem:[#allocation19 + $0x7e8] sm:$0xff]
    %v3774 = vld [vmem:[#allocation19 + $0x7f0] sm:$0xff]
    %v3775 = vld [vmem:[#allocation19 + $0x7f8] sm:$0xff]
    %v3776 = vld [vmem:[%s14] sm:$0xff]
    %v3777 = vpack.c.bf16 %v3516, %v3516
    %v3778 = vpack.c.bf16 %v3517, %v3517
    %v3779 = vpack.c.bf16 %v3518, %v3518
    %v3780 = vpack.c.bf16 %v3519, %v3519
    %v3782 = vlaneseq
    %v3783 = vshrl.u32 %v3782, 7
    %v3784 = vsub.s32 0, %v3783
    %v3785 = vrot.slane %v3776, %v3784
    %v3786 = vlaneseq
    %v3787 = vshrl.u32 %v3786, 7
    %v3788 = vsub.s32 1, %v3787
    %v3789 = vrot.slane %v3776, %v3788
    %v3790 = vlaneseq
    %v3791 = vshrl.u32 %v3790, 7
    %v3792 = vsub.s32 2, %v3791
    %v3793 = vrot.slane %v3776, %v3792
    %v3794 = vlaneseq
    %v3795 = vshrl.u32 %v3794, 7
    %v3796 = vsub.s32 3, %v3795
    %v3797 = vrot.slane %v3776, %v3796
    %v3798 = vlaneseq
    %v3799 = vshrl.u32 %v3798, 7
    %v3800 = vsub.s32 4, %v3799
    %v3801 = vrot.slane %v3776, %v3800
    %v3802 = vlaneseq
    %v3803 = vshrl.u32 %v3802, 7
    %v3804 = vsub.s32 5, %v3803
    %v3805 = vrot.slane %v3776, %v3804
    %v3806 = vlaneseq
    %v3807 = vshrl.u32 %v3806, 7
    %v3808 = vsub.s32 6, %v3807
    %v3809 = vrot.slane %v3776, %v3808
    %v3810 = vlaneseq
    %v3811 = vshrl.u32 %v3810, 7
    %v3812 = vsub.s32 7, %v3811
    %v3813 = vrot.slane %v3776, %v3812
    %v4078 = vunpack.c.l.b16 %v3520
    %v4079 = vunpack.c.h.b16 %v3520
    %v4080 = vunpack.c.l.b16 %v3521
    %v4081 = vunpack.c.h.b16 %v3521
    %v4082 = vunpack.c.l.b16 %v3522
    %v4083 = vunpack.c.h.b16 %v3522
    %v4084 = vunpack.c.l.b16 %v3523
    %v4085 = vunpack.c.h.b16 %v3523
    %v4086 = vunpack.c.l.b16 %v3524
    %v4087 = vunpack.c.h.b16 %v3524
    %v4088 = vunpack.c.l.b16 %v3525
    %v4089 = vunpack.c.h.b16 %v3525
    %v4090 = vunpack.c.l.b16 %v3526
    %v4091 = vunpack.c.h.b16 %v3526
    %v4092 = vunpack.c.l.b16 %v3527
    %v4093 = vunpack.c.h.b16 %v3527
    %v4094 = vunpack.c.l.b16 %v3528
    %v4095 = vunpack.c.h.b16 %v3528
    %v4096 = vunpack.c.l.b16 %v3529
    %v4097 = vunpack.c.h.b16 %v3529
    %v4098 = vunpack.c.l.b16 %v3530
    %v4099 = vunpack.c.h.b16 %v3530
    %v4100 = vunpack.c.l.b16 %v3531
    %v4101 = vunpack.c.h.b16 %v3531
    %v4102 = vunpack.c.l.b16 %v3532
    %v4103 = vunpack.c.h.b16 %v3532
    %v4104 = vunpack.c.l.b16 %v3533
    %v4105 = vunpack.c.h.b16 %v3533
    %v4106 = vunpack.c.l.b16 %v3534
    %v4107 = vunpack.c.h.b16 %v3534
    %v4108 = vunpack.c.l.b16 %v3535
    %v4109 = vunpack.c.h.b16 %v3535
    %v4110 = vunpack.c.l.b16 %v3536
    %v4111 = vunpack.c.h.b16 %v3536
    %v4112 = vunpack.c.l.b16 %v3537
    %v4113 = vunpack.c.h.b16 %v3537
    %v4114 = vunpack.c.l.b16 %v3538
    %v4115 = vunpack.c.h.b16 %v3538
    %v4116 = vunpack.c.l.b16 %v3539
    %v4117 = vunpack.c.h.b16 %v3539
    %v4118 = vunpack.c.l.b16 %v3540
    %v4119 = vunpack.c.h.b16 %v3540
    %v4120 = vunpack.c.l.b16 %v3541
    %v4121 = vunpack.c.h.b16 %v3541
    %v4122 = vunpack.c.l.b16 %v3542
    %v4123 = vunpack.c.h.b16 %v3542
    %v4124 = vunpack.c.l.b16 %v3543
    %v4125 = vunpack.c.h.b16 %v3543
    %v4126 = vunpack.c.l.b16 %v3544
    %v4127 = vunpack.c.h.b16 %v3544
    %v4128 = vunpack.c.l.b16 %v3545
    %v4129 = vunpack.c.h.b16 %v3545
    %v4130 = vunpack.c.l.b16 %v3546
    %v4131 = vunpack.c.h.b16 %v3546
    %v4132 = vunpack.c.l.b16 %v3547
    %v4133 = vunpack.c.h.b16 %v3547
    %v4134 = vunpack.c.l.b16 %v3548
    %v4135 = vunpack.c.h.b16 %v3548
    %v4136 = vunpack.c.l.b16 %v3549
    %v4137 = vunpack.c.h.b16 %v3549
    %v4138 = vunpack.c.l.b16 %v3550
    %v4139 = vunpack.c.h.b16 %v3550
    %v4140 = vunpack.c.l.b16 %v3551
    %v4141 = vunpack.c.h.b16 %v3551
    %v4142 = vunpack.c.l.b16 %v3552
    %v4143 = vunpack.c.h.b16 %v3552
    %v4144 = vunpack.c.l.b16 %v3553
    %v4145 = vunpack.c.h.b16 %v3553
    %v4146 = vunpack.c.l.b16 %v3554
    %v4147 = vunpack.c.h.b16 %v3554
    %v4148 = vunpack.c.l.b16 %v3555
    %v4149 = vunpack.c.h.b16 %v3555
    %v4150 = vunpack.c.l.b16 %v3556
    %v4151 = vunpack.c.h.b16 %v3556
    %v4152 = vunpack.c.l.b16 %v3557
    %v4153 = vunpack.c.h.b16 %v3557
    %v4154 = vunpack.c.l.b16 %v3558
    %v4155 = vunpack.c.h.b16 %v3558
    %v4156 = vunpack.c.l.b16 %v3559
    %v4157 = vunpack.c.h.b16 %v3559
    %v4158 = vunpack.c.l.b16 %v3560
    %v4159 = vunpack.c.h.b16 %v3560
    %v4160 = vunpack.c.l.b16 %v3561
    %v4161 = vunpack.c.h.b16 %v3561
    %v4162 = vunpack.c.l.b16 %v3562
    %v4163 = vunpack.c.h.b16 %v3562
    %v4164 = vunpack.c.l.b16 %v3563
    %v4165 = vunpack.c.h.b16 %v3563
    %v4166 = vunpack.c.l.b16 %v3564
    %v4167 = vunpack.c.h.b16 %v3564
    %v4168 = vunpack.c.l.b16 %v3565
    %v4169 = vunpack.c.h.b16 %v3565
    %v4170 = vunpack.c.l.b16 %v3566
    %v4171 = vunpack.c.h.b16 %v3566
    %v4172 = vunpack.c.l.b16 %v3567
    %v4173 = vunpack.c.h.b16 %v3567
    %v4174 = vunpack.c.l.b16 %v3568
    %v4175 = vunpack.c.h.b16 %v3568
    %v4176 = vunpack.c.l.b16 %v3569
    %v4177 = vunpack.c.h.b16 %v3569
    %v4178 = vunpack.c.l.b16 %v3570
    %v4179 = vunpack.c.h.b16 %v3570
    %v4180 = vunpack.c.l.b16 %v3571
    %v4181 = vunpack.c.h.b16 %v3571
    %v4182 = vunpack.c.l.b16 %v3572
    %v4183 = vunpack.c.h.b16 %v3572
    %v4184 = vunpack.c.l.b16 %v3573
    %v4185 = vunpack.c.h.b16 %v3573
    %v4186 = vunpack.c.l.b16 %v3574
    %v4187 = vunpack.c.h.b16 %v3574
    %v4188 = vunpack.c.l.b16 %v3575
    %v4189 = vunpack.c.h.b16 %v3575
    %v4190 = vunpack.c.l.b16 %v3576
    %v4191 = vunpack.c.h.b16 %v3576
    %v4192 = vunpack.c.l.b16 %v3577
    %v4193 = vunpack.c.h.b16 %v3577
    %v4194 = vunpack.c.l.b16 %v3578
    %v4195 = vunpack.c.h.b16 %v3578
    %v4196 = vunpack.c.l.b16 %v3579
    %v4197 = vunpack.c.h.b16 %v3579
    %v4198 = vunpack.c.l.b16 %v3580
    %v4199 = vunpack.c.h.b16 %v3580
    %v4200 = vunpack.c.l.b16 %v3581
    %v4201 = vunpack.c.h.b16 %v3581
    %v4202 = vunpack.c.l.b16 %v3582
    %v4203 = vunpack.c.h.b16 %v3582
    %v4204 = vunpack.c.l.b16 %v3583
    %v4205 = vunpack.c.h.b16 %v3583
    %v4206 = vunpack.c.l.b16 %v3584
    %v4207 = vunpack.c.h.b16 %v3584
    %v4208 = vunpack.c.l.b16 %v3585
    %v4209 = vunpack.c.h.b16 %v3585
    %v4210 = vunpack.c.l.b16 %v3586
    %v4211 = vunpack.c.h.b16 %v3586
    %v4212 = vunpack.c.l.b16 %v3587
    %v4213 = vunpack.c.h.b16 %v3587
    %v4214 = vunpack.c.l.b16 %v3588
    %v4215 = vunpack.c.h.b16 %v3588
    %v4216 = vunpack.c.l.b16 %v3589
    %v4217 = vunpack.c.h.b16 %v3589
    %v4218 = vunpack.c.l.b16 %v3590
    %v4219 = vunpack.c.h.b16 %v3590
    %v4220 = vunpack.c.l.b16 %v3591
    %v4221 = vunpack.c.h.b16 %v3591
    %v4222 = vunpack.c.l.b16 %v3592
    %v4223 = vunpack.c.h.b16 %v3592
    %v4224 = vunpack.c.l.b16 %v3593
    %v4225 = vunpack.c.h.b16 %v3593
    %v4226 = vunpack.c.l.b16 %v3594
    %v4227 = vunpack.c.h.b16 %v3594
    %v4228 = vunpack.c.l.b16 %v3595
    %v4229 = vunpack.c.h.b16 %v3595
    %v4230 = vunpack.c.l.b16 %v3596
    %v4231 = vunpack.c.h.b16 %v3596
    %v4232 = vunpack.c.l.b16 %v3597
    %v4233 = vunpack.c.h.b16 %v3597
    %v4234 = vunpack.c.l.b16 %v3598
    %v4235 = vunpack.c.h.b16 %v3598
    %v4236 = vunpack.c.l.b16 %v3599
    %v4237 = vunpack.c.h.b16 %v3599
    %v4238 = vunpack.c.l.b16 %v3600
    %v4239 = vunpack.c.h.b16 %v3600
    %v4240 = vunpack.c.l.b16 %v3601
    %v4241 = vunpack.c.h.b16 %v3601
    %v4242 = vunpack.c.l.b16 %v3602
    %v4243 = vunpack.c.h.b16 %v3602
    %v4244 = vunpack.c.l.b16 %v3603
    %v4245 = vunpack.c.h.b16 %v3603
    %v4246 = vunpack.c.l.b16 %v3604
    %v4247 = vunpack.c.h.b16 %v3604
    %v4248 = vunpack.c.l.b16 %v3605
    %v4249 = vunpack.c.h.b16 %v3605
    %v4250 = vunpack.c.l.b16 %v3606
    %v4251 = vunpack.c.h.b16 %v3606
    %v4252 = vunpack.c.l.b16 %v3607
    %v4253 = vunpack.c.h.b16 %v3607
    %v4254 = vunpack.c.l.b16 %v3608
    %v4255 = vunpack.c.h.b16 %v3608
    %v4256 = vunpack.c.l.b16 %v3609
    %v4257 = vunpack.c.h.b16 %v3609
    %v4258 = vunpack.c.l.b16 %v3610
    %v4259 = vunpack.c.h.b16 %v3610
    %v4260 = vunpack.c.l.b16 %v3611
    %v4261 = vunpack.c.h.b16 %v3611
    %v4262 = vunpack.c.l.b16 %v3612
    %v4263 = vunpack.c.h.b16 %v3612
    %v4264 = vunpack.c.l.b16 %v3613
    %v4265 = vunpack.c.h.b16 %v3613
    %v4266 = vunpack.c.l.b16 %v3614
    %v4267 = vunpack.c.h.b16 %v3614
    %v4268 = vunpack.c.l.b16 %v3615
    %v4269 = vunpack.c.h.b16 %v3615
    %v4270 = vunpack.c.l.b16 %v3616
    %v4271 = vunpack.c.h.b16 %v3616
    %v4272 = vunpack.c.l.b16 %v3617
    %v4273 = vunpack.c.h.b16 %v3617
    %v4274 = vunpack.c.l.b16 %v3618
    %v4275 = vunpack.c.h.b16 %v3618
    %v4276 = vunpack.c.l.b16 %v3619
    %v4277 = vunpack.c.h.b16 %v3619
    %v4278 = vunpack.c.l.b16 %v3620
    %v4279 = vunpack.c.h.b16 %v3620
    %v4280 = vunpack.c.l.b16 %v3621
    %v4281 = vunpack.c.h.b16 %v3621
    %v4282 = vunpack.c.l.b16 %v3622
    %v4283 = vunpack.c.h.b16 %v3622
    %v4284 = vunpack.c.l.b16 %v3623
    %v4285 = vunpack.c.h.b16 %v3623
    %v4286 = vunpack.c.l.b16 %v3624
    %v4287 = vunpack.c.h.b16 %v3624
    %v4288 = vunpack.c.l.b16 %v3625
    %v4289 = vunpack.c.h.b16 %v3625
    %v4290 = vunpack.c.l.b16 %v3626
    %v4291 = vunpack.c.h.b16 %v3626
    %v4292 = vunpack.c.l.b16 %v3627
    %v4293 = vunpack.c.h.b16 %v3627
    %v4294 = vunpack.c.l.b16 %v3628
    %v4295 = vunpack.c.h.b16 %v3628
    %v4296 = vunpack.c.l.b16 %v3629
    %v4297 = vunpack.c.h.b16 %v3629
    %v4298 = vunpack.c.l.b16 %v3630
    %v4299 = vunpack.c.h.b16 %v3630
    %v4300 = vunpack.c.l.b16 %v3631
    %v4301 = vunpack.c.h.b16 %v3631
    %v4302 = vunpack.c.l.b16 %v3632
    %v4303 = vunpack.c.h.b16 %v3632
    %v4304 = vunpack.c.l.b16 %v3633
    %v4305 = vunpack.c.h.b16 %v3633
    %v4306 = vunpack.c.l.b16 %v3634
    %v4307 = vunpack.c.h.b16 %v3634
    %v4308 = vunpack.c.l.b16 %v3635
    %v4309 = vunpack.c.h.b16 %v3635
    %v4310 = vunpack.c.l.b16 %v3636
    %v4311 = vunpack.c.h.b16 %v3636
    %v4312 = vunpack.c.l.b16 %v3637
    %v4313 = vunpack.c.h.b16 %v3637
    %v4314 = vunpack.c.l.b16 %v3638
    %v4315 = vunpack.c.h.b16 %v3638
    %v4316 = vunpack.c.l.b16 %v3639
    %v4317 = vunpack.c.h.b16 %v3639
    %v4318 = vunpack.c.l.b16 %v3640
    %v4319 = vunpack.c.h.b16 %v3640
    %v4320 = vunpack.c.l.b16 %v3641
    %v4321 = vunpack.c.h.b16 %v3641
    %v4322 = vunpack.c.l.b16 %v3642
    %v4323 = vunpack.c.h.b16 %v3642
    %v4324 = vunpack.c.l.b16 %v3643
    %v4325 = vunpack.c.h.b16 %v3643
    %v4326 = vunpack.c.l.b16 %v3644
    %v4327 = vunpack.c.h.b16 %v3644
    %v4328 = vunpack.c.l.b16 %v3645
    %v4329 = vunpack.c.h.b16 %v3645
    %v4330 = vunpack.c.l.b16 %v3646
    %v4331 = vunpack.c.h.b16 %v3646
    %v4332 = vunpack.c.l.b16 %v3647
    %v4333 = vunpack.c.h.b16 %v3647
    %v4334 = vunpack.c.l.b16 %v3648
    %v4335 = vunpack.c.h.b16 %v3648
    %v4336 = vunpack.c.l.b16 %v3649
    %v4337 = vunpack.c.h.b16 %v3649
    %v4338 = vunpack.c.l.b16 %v3650
    %v4339 = vunpack.c.h.b16 %v3650
    %v4340 = vunpack.c.l.b16 %v3651
    %v4341 = vunpack.c.h.b16 %v3651
    %v4342 = vunpack.c.l.b16 %v3652
    %v4343 = vunpack.c.h.b16 %v3652
    %v4344 = vunpack.c.l.b16 %v3653
    %v4345 = vunpack.c.h.b16 %v3653
    %v4346 = vunpack.c.l.b16 %v3654
    %v4347 = vunpack.c.h.b16 %v3654
    %v4348 = vunpack.c.l.b16 %v3655
    %v4349 = vunpack.c.h.b16 %v3655
    %v4350 = vunpack.c.l.b16 %v3656
    %v4351 = vunpack.c.h.b16 %v3656
    %v4352 = vunpack.c.l.b16 %v3657
    %v4353 = vunpack.c.h.b16 %v3657
    %v4354 = vunpack.c.l.b16 %v3658
    %v4355 = vunpack.c.h.b16 %v3658
    %v4356 = vunpack.c.l.b16 %v3659
    %v4357 = vunpack.c.h.b16 %v3659
    %v4358 = vunpack.c.l.b16 %v3660
    %v4359 = vunpack.c.h.b16 %v3660
    %v4360 = vunpack.c.l.b16 %v3661
    %v4361 = vunpack.c.h.b16 %v3661
    %v4362 = vunpack.c.l.b16 %v3662
    %v4363 = vunpack.c.h.b16 %v3662
    %v4364 = vunpack.c.l.b16 %v3663
    %v4365 = vunpack.c.h.b16 %v3663
    %v4366 = vunpack.c.l.b16 %v3664
    %v4367 = vunpack.c.h.b16 %v3664
    %v4368 = vunpack.c.l.b16 %v3665
    %v4369 = vunpack.c.h.b16 %v3665
    %v4370 = vunpack.c.l.b16 %v3666
    %v4371 = vunpack.c.h.b16 %v3666
    %v4372 = vunpack.c.l.b16 %v3667
    %v4373 = vunpack.c.h.b16 %v3667
    %v4374 = vunpack.c.l.b16 %v3668
    %v4375 = vunpack.c.h.b16 %v3668
    %v4376 = vunpack.c.l.b16 %v3669
    %v4377 = vunpack.c.h.b16 %v3669
    %v4378 = vunpack.c.l.b16 %v3670
    %v4379 = vunpack.c.h.b16 %v3670
    %v4380 = vunpack.c.l.b16 %v3671
    %v4381 = vunpack.c.h.b16 %v3671
    %v4382 = vunpack.c.l.b16 %v3672
    %v4383 = vunpack.c.h.b16 %v3672
    %v4384 = vunpack.c.l.b16 %v3673
    %v4385 = vunpack.c.h.b16 %v3673
    %v4386 = vunpack.c.l.b16 %v3674
    %v4387 = vunpack.c.h.b16 %v3674
    %v4388 = vunpack.c.l.b16 %v3675
    %v4389 = vunpack.c.h.b16 %v3675
    %v4390 = vunpack.c.l.b16 %v3676
    %v4391 = vunpack.c.h.b16 %v3676
    %v4392 = vunpack.c.l.b16 %v3677
    %v4393 = vunpack.c.h.b16 %v3677
    %v4394 = vunpack.c.l.b16 %v3678
    %v4395 = vunpack.c.h.b16 %v3678
    %v4396 = vunpack.c.l.b16 %v3679
    %v4397 = vunpack.c.h.b16 %v3679
    %v4398 = vunpack.c.l.b16 %v3680
    %v4399 = vunpack.c.h.b16 %v3680
    %v4400 = vunpack.c.l.b16 %v3681
    %v4401 = vunpack.c.h.b16 %v3681
    %v4402 = vunpack.c.l.b16 %v3682
    %v4403 = vunpack.c.h.b16 %v3682
    %v4404 = vunpack.c.l.b16 %v3683
    %v4405 = vunpack.c.h.b16 %v3683
    %v4406 = vunpack.c.l.b16 %v3684
    %v4407 = vunpack.c.h.b16 %v3684
    %v4408 = vunpack.c.l.b16 %v3685
    %v4409 = vunpack.c.h.b16 %v3685
    %v4410 = vunpack.c.l.b16 %v3686
    %v4411 = vunpack.c.h.b16 %v3686
    %v4412 = vunpack.c.l.b16 %v3687
    %v4413 = vunpack.c.h.b16 %v3687
    %v4414 = vunpack.c.l.b16 %v3688
    %v4415 = vunpack.c.h.b16 %v3688
    %v4416 = vunpack.c.l.b16 %v3689
    %v4417 = vunpack.c.h.b16 %v3689
    %v4418 = vunpack.c.l.b16 %v3690
    %v4419 = vunpack.c.h.b16 %v3690
    %v4420 = vunpack.c.l.b16 %v3691
    %v4421 = vunpack.c.h.b16 %v3691
    %v4422 = vunpack.c.l.b16 %v3692
    %v4423 = vunpack.c.h.b16 %v3692
    %v4424 = vunpack.c.l.b16 %v3693
    %v4425 = vunpack.c.h.b16 %v3693
    %v4426 = vunpack.c.l.b16 %v3694
    %v4427 = vunpack.c.h.b16 %v3694
    %v4428 = vunpack.c.l.b16 %v3695
    %v4429 = vunpack.c.h.b16 %v3695
    %v4430 = vunpack.c.l.b16 %v3696
    %v4431 = vunpack.c.h.b16 %v3696
    %v4432 = vunpack.c.l.b16 %v3697
    %v4433 = vunpack.c.h.b16 %v3697
    %v4434 = vunpack.c.l.b16 %v3698
    %v4435 = vunpack.c.h.b16 %v3698
    %v4436 = vunpack.c.l.b16 %v3699
    %v4437 = vunpack.c.h.b16 %v3699
    %v4438 = vunpack.c.l.b16 %v3700
    %v4439 = vunpack.c.h.b16 %v3700
    %v4440 = vunpack.c.l.b16 %v3701
    %v4441 = vunpack.c.h.b16 %v3701
    %v4442 = vunpack.c.l.b16 %v3702
    %v4443 = vunpack.c.h.b16 %v3702
    %v4444 = vunpack.c.l.b16 %v3703
    %v4445 = vunpack.c.h.b16 %v3703
    %v4446 = vunpack.c.l.b16 %v3704
    %v4447 = vunpack.c.h.b16 %v3704
    %v4448 = vunpack.c.l.b16 %v3705
    %v4449 = vunpack.c.h.b16 %v3705
    %v4450 = vunpack.c.l.b16 %v3706
    %v4451 = vunpack.c.h.b16 %v3706
    %v4452 = vunpack.c.l.b16 %v3707
    %v4453 = vunpack.c.h.b16 %v3707
    %v4454 = vunpack.c.l.b16 %v3708
    %v4455 = vunpack.c.h.b16 %v3708
    %v4456 = vunpack.c.l.b16 %v3709
    %v4457 = vunpack.c.h.b16 %v3709
    %v4458 = vunpack.c.l.b16 %v3710
    %v4459 = vunpack.c.h.b16 %v3710
    %v4460 = vunpack.c.l.b16 %v3711
    %v4461 = vunpack.c.h.b16 %v3711
    %v4462 = vunpack.c.l.b16 %v3712
    %v4463 = vunpack.c.h.b16 %v3712
    %v4464 = vunpack.c.l.b16 %v3713
    %v4465 = vunpack.c.h.b16 %v3713
    %v4466 = vunpack.c.l.b16 %v3714
    %v4467 = vunpack.c.h.b16 %v3714
    %v4468 = vunpack.c.l.b16 %v3715
    %v4469 = vunpack.c.h.b16 %v3715
    %v4470 = vunpack.c.l.b16 %v3716
    %v4471 = vunpack.c.h.b16 %v3716
    %v4472 = vunpack.c.l.b16 %v3717
    %v4473 = vunpack.c.h.b16 %v3717
    %v4474 = vunpack.c.l.b16 %v3718
    %v4475 = vunpack.c.h.b16 %v3718
    %v4476 = vunpack.c.l.b16 %v3719
    %v4477 = vunpack.c.h.b16 %v3719
    %v4478 = vunpack.c.l.b16 %v3720
    %v4479 = vunpack.c.h.b16 %v3720
    %v4480 = vunpack.c.l.b16 %v3721
    %v4481 = vunpack.c.h.b16 %v3721
    %v4482 = vunpack.c.l.b16 %v3722
    %v4483 = vunpack.c.h.b16 %v3722
    %v4484 = vunpack.c.l.b16 %v3723
    %v4485 = vunpack.c.h.b16 %v3723
    %v4486 = vunpack.c.l.b16 %v3724
    %v4487 = vunpack.c.h.b16 %v3724
    %v4488 = vunpack.c.l.b16 %v3725
    %v4489 = vunpack.c.h.b16 %v3725
    %v4490 = vunpack.c.l.b16 %v3726
    %v4491 = vunpack.c.h.b16 %v3726
    %v4492 = vunpack.c.l.b16 %v3727
    %v4493 = vunpack.c.h.b16 %v3727
    %v4494 = vunpack.c.l.b16 %v3728
    %v4495 = vunpack.c.h.b16 %v3728
    %v4496 = vunpack.c.l.b16 %v3729
    %v4497 = vunpack.c.h.b16 %v3729
    %v4498 = vunpack.c.l.b16 %v3730
    %v4499 = vunpack.c.h.b16 %v3730
    %v4500 = vunpack.c.l.b16 %v3731
    %v4501 = vunpack.c.h.b16 %v3731
    %v4502 = vunpack.c.l.b16 %v3732
    %v4503 = vunpack.c.h.b16 %v3732
    %v4504 = vunpack.c.l.b16 %v3733
    %v4505 = vunpack.c.h.b16 %v3733
    %v4506 = vunpack.c.l.b16 %v3734
    %v4507 = vunpack.c.h.b16 %v3734
    %v4508 = vunpack.c.l.b16 %v3735
    %v4509 = vunpack.c.h.b16 %v3735
    %v4510 = vunpack.c.l.b16 %v3736
    %v4511 = vunpack.c.h.b16 %v3736
    %v4512 = vunpack.c.l.b16 %v3737
    %v4513 = vunpack.c.h.b16 %v3737
    %v4514 = vunpack.c.l.b16 %v3738
    %v4515 = vunpack.c.h.b16 %v3738
    %v4516 = vunpack.c.l.b16 %v3739
    %v4517 = vunpack.c.h.b16 %v3739
    %v4518 = vunpack.c.l.b16 %v3740
    %v4519 = vunpack.c.h.b16 %v3740
    %v4520 = vunpack.c.l.b16 %v3741
    %v4521 = vunpack.c.h.b16 %v3741
    %v4522 = vunpack.c.l.b16 %v3742
    %v4523 = vunpack.c.h.b16 %v3742
    %v4524 = vunpack.c.l.b16 %v3743
    %v4525 = vunpack.c.h.b16 %v3743
    %v4526 = vunpack.c.l.b16 %v3744
    %v4527 = vunpack.c.h.b16 %v3744
    %v4528 = vunpack.c.l.b16 %v3745
    %v4529 = vunpack.c.h.b16 %v3745
    %v4530 = vunpack.c.l.b16 %v3746
    %v4531 = vunpack.c.h.b16 %v3746
    %v4532 = vunpack.c.l.b16 %v3747
    %v4533 = vunpack.c.h.b16 %v3747
    %v4534 = vunpack.c.l.b16 %v3748
    %v4535 = vunpack.c.h.b16 %v3748
    %v4536 = vunpack.c.l.b16 %v3749
    %v4537 = vunpack.c.h.b16 %v3749
    %v4538 = vunpack.c.l.b16 %v3750
    %v4539 = vunpack.c.h.b16 %v3750
    %v4540 = vunpack.c.l.b16 %v3751
    %v4541 = vunpack.c.h.b16 %v3751
    %v4542 = vunpack.c.l.b16 %v3752
    %v4543 = vunpack.c.h.b16 %v3752
    %v4544 = vunpack.c.l.b16 %v3753
    %v4545 = vunpack.c.h.b16 %v3753
    %v4546 = vunpack.c.l.b16 %v3754
    %v4547 = vunpack.c.h.b16 %v3754
    %v4548 = vunpack.c.l.b16 %v3755
    %v4549 = vunpack.c.h.b16 %v3755
    %v4550 = vunpack.c.l.b16 %v3756
    %v4551 = vunpack.c.h.b16 %v3756
    %v4552 = vunpack.c.l.b16 %v3757
    %v4553 = vunpack.c.h.b16 %v3757
    %v4554 = vunpack.c.l.b16 %v3758
    %v4555 = vunpack.c.h.b16 %v3758
    %v4556 = vunpack.c.l.b16 %v3759
    %v4557 = vunpack.c.h.b16 %v3759
    %v4558 = vunpack.c.l.b16 %v3760
    %v4559 = vunpack.c.h.b16 %v3760
    %v4560 = vunpack.c.l.b16 %v3761
    %v4561 = vunpack.c.h.b16 %v3761
    %v4562 = vunpack.c.l.b16 %v3762
    %v4563 = vunpack.c.h.b16 %v3762
    %v4564 = vunpack.c.l.b16 %v3763
    %v4565 = vunpack.c.h.b16 %v3763
    %v4566 = vunpack.c.l.b16 %v3764
    %v4567 = vunpack.c.h.b16 %v3764
    %v4568 = vunpack.c.l.b16 %v3765
    %v4569 = vunpack.c.h.b16 %v3765
    %v4570 = vunpack.c.l.b16 %v3766
    %v4571 = vunpack.c.h.b16 %v3766
    %v4572 = vunpack.c.l.b16 %v3767
    %v4573 = vunpack.c.h.b16 %v3767
    %v4574 = vunpack.c.l.b16 %v3768
    %v4575 = vunpack.c.h.b16 %v3768
    %v4576 = vunpack.c.l.b16 %v3769
    %v4577 = vunpack.c.h.b16 %v3769
    %v4578 = vunpack.c.l.b16 %v3770
    %v4579 = vunpack.c.h.b16 %v3770
    %v4580 = vunpack.c.l.b16 %v3771
    %v4581 = vunpack.c.h.b16 %v3771
    %v4582 = vunpack.c.l.b16 %v3772
    %v4583 = vunpack.c.h.b16 %v3772
    %v4584 = vunpack.c.l.b16 %v3773
    %v4585 = vunpack.c.h.b16 %v3773
    %v4586 = vunpack.c.l.b16 %v3774
    %v4587 = vunpack.c.h.b16 %v3774
    %v4588 = vunpack.c.l.b16 %v3775
    %v4589 = vunpack.c.h.b16 %v3775
    %v4590 = vpack.c.b16 %v4086, %v4078
    %v4591 = vpack.c.b16 %v4087, %v4079
    %v4592 = vpack.c.b16 %v4088, %v4080
    %v4593 = vpack.c.b16 %v4089, %v4081
    %v4594 = vpack.c.b16 %v4090, %v4082
    %v4595 = vpack.c.b16 %v4091, %v4083
    %v4596 = vpack.c.b16 %v4092, %v4084
    %v4597 = vpack.c.b16 %v4093, %v4085
    %v4598 = vpack.c.b16 %v4102, %v4094
    %v4599 = vpack.c.b16 %v4103, %v4095
    %v4600 = vpack.c.b16 %v4104, %v4096
    %v4601 = vpack.c.b16 %v4105, %v4097
    %v4602 = vpack.c.b16 %v4106, %v4098
    %v4603 = vpack.c.b16 %v4107, %v4099
    %v4604 = vpack.c.b16 %v4108, %v4100
    %v4605 = vpack.c.b16 %v4109, %v4101
    %v4606 = vpack.c.b16 %v4118, %v4110
    %v4607 = vpack.c.b16 %v4119, %v4111
    %v4608 = vpack.c.b16 %v4120, %v4112
    %v4609 = vpack.c.b16 %v4121, %v4113
    %v4610 = vpack.c.b16 %v4122, %v4114
    %v4611 = vpack.c.b16 %v4123, %v4115
    %v4612 = vpack.c.b16 %v4124, %v4116
    %v4613 = vpack.c.b16 %v4125, %v4117
    %v4614 = vpack.c.b16 %v4134, %v4126
    %v4615 = vpack.c.b16 %v4135, %v4127
    %v4616 = vpack.c.b16 %v4136, %v4128
    %v4617 = vpack.c.b16 %v4137, %v4129
    %v4618 = vpack.c.b16 %v4138, %v4130
    %v4619 = vpack.c.b16 %v4139, %v4131
    %v4620 = vpack.c.b16 %v4140, %v4132
    %v4621 = vpack.c.b16 %v4141, %v4133
    %v4622 = vpack.c.b16 %v4150, %v4142
    %v4623 = vpack.c.b16 %v4151, %v4143
    %v4624 = vpack.c.b16 %v4152, %v4144
    %v4625 = vpack.c.b16 %v4153, %v4145
    %v4626 = vpack.c.b16 %v4154, %v4146
    %v4627 = vpack.c.b16 %v4155, %v4147
    %v4628 = vpack.c.b16 %v4156, %v4148
    %v4629 = vpack.c.b16 %v4157, %v4149
    %v4630 = vpack.c.b16 %v4166, %v4158
    %v4631 = vpack.c.b16 %v4167, %v4159
    %v4632 = vpack.c.b16 %v4168, %v4160
    %v4633 = vpack.c.b16 %v4169, %v4161
    %v4634 = vpack.c.b16 %v4170, %v4162
    %v4635 = vpack.c.b16 %v4171, %v4163
    %v4636 = vpack.c.b16 %v4172, %v4164
    %v4637 = vpack.c.b16 %v4173, %v4165
    %v4638 = vpack.c.b16 %v4182, %v4174
    %v4639 = vpack.c.b16 %v4183, %v4175
    %v4640 = vpack.c.b16 %v4184, %v4176
    %v4641 = vpack.c.b16 %v4185, %v4177
    %v4642 = vpack.c.b16 %v4186, %v4178
    %v4643 = vpack.c.b16 %v4187, %v4179
    %v4644 = vpack.c.b16 %v4188, %v4180
    %v4645 = vpack.c.b16 %v4189, %v4181
    %v4646 = vpack.c.b16 %v4198, %v4190
    %v4647 = vpack.c.b16 %v4199, %v4191
    %v4648 = vpack.c.b16 %v4200, %v4192
    %v4649 = vpack.c.b16 %v4201, %v4193
    %v4650 = vpack.c.b16 %v4202, %v4194
    %v4651 = vpack.c.b16 %v4203, %v4195
    %v4652 = vpack.c.b16 %v4204, %v4196
    %v4653 = vpack.c.b16 %v4205, %v4197
    %v4654 = vpack.c.b16 %v4214, %v4206
    %v4655 = vpack.c.b16 %v4215, %v4207
    %v4656 = vpack.c.b16 %v4216, %v4208
    %v4657 = vpack.c.b16 %v4217, %v4209
    %v4658 = vpack.c.b16 %v4218, %v4210
    %v4659 = vpack.c.b16 %v4219, %v4211
    %v4660 = vpack.c.b16 %v4220, %v4212
    %v4661 = vpack.c.b16 %v4221, %v4213
    %v4662 = vpack.c.b16 %v4230, %v4222
    %v4663 = vpack.c.b16 %v4231, %v4223
    %v4664 = vpack.c.b16 %v4232, %v4224
    %v4665 = vpack.c.b16 %v4233, %v4225
    %v4666 = vpack.c.b16 %v4234, %v4226
    %v4667 = vpack.c.b16 %v4235, %v4227
    %v4668 = vpack.c.b16 %v4236, %v4228
    %v4669 = vpack.c.b16 %v4237, %v4229
    %v4670 = vpack.c.b16 %v4246, %v4238
    %v4671 = vpack.c.b16 %v4247, %v4239
    %v4672 = vpack.c.b16 %v4248, %v4240
    %v4673 = vpack.c.b16 %v4249, %v4241
    %v4674 = vpack.c.b16 %v4250, %v4242
    %v4675 = vpack.c.b16 %v4251, %v4243
    %v4676 = vpack.c.b16 %v4252, %v4244
    %v4677 = vpack.c.b16 %v4253, %v4245
    %v4678 = vpack.c.b16 %v4262, %v4254
    %v4679 = vpack.c.b16 %v4263, %v4255
    %v4680 = vpack.c.b16 %v4264, %v4256
    %v4681 = vpack.c.b16 %v4265, %v4257
    %v4682 = vpack.c.b16 %v4266, %v4258
    %v4683 = vpack.c.b16 %v4267, %v4259
    %v4684 = vpack.c.b16 %v4268, %v4260
    %v4685 = vpack.c.b16 %v4269, %v4261
    %v4686 = vpack.c.b16 %v4278, %v4270
    %v4687 = vpack.c.b16 %v4279, %v4271
    %v4688 = vpack.c.b16 %v4280, %v4272
    %v4689 = vpack.c.b16 %v4281, %v4273
    %v4690 = vpack.c.b16 %v4282, %v4274
    %v4691 = vpack.c.b16 %v4283, %v4275
    %v4692 = vpack.c.b16 %v4284, %v4276
    %v4693 = vpack.c.b16 %v4285, %v4277
    %v4694 = vpack.c.b16 %v4294, %v4286
    %v4695 = vpack.c.b16 %v4295, %v4287
    %v4696 = vpack.c.b16 %v4296, %v4288
    %v4697 = vpack.c.b16 %v4297, %v4289
    %v4698 = vpack.c.b16 %v4298, %v4290
    %v4699 = vpack.c.b16 %v4299, %v4291
    %v4700 = vpack.c.b16 %v4300, %v4292
    %v4701 = vpack.c.b16 %v4301, %v4293
    %v4702 = vpack.c.b16 %v4310, %v4302
    %v4703 = vpack.c.b16 %v4311, %v4303
    %v4704 = vpack.c.b16 %v4312, %v4304
    %v4705 = vpack.c.b16 %v4313, %v4305
    %v4706 = vpack.c.b16 %v4314, %v4306
    %v4707 = vpack.c.b16 %v4315, %v4307
    %v4708 = vpack.c.b16 %v4316, %v4308
    %v4709 = vpack.c.b16 %v4317, %v4309
    %v4710 = vpack.c.b16 %v4326, %v4318
    %v4711 = vpack.c.b16 %v4327, %v4319
    %v4712 = vpack.c.b16 %v4328, %v4320
    %v4713 = vpack.c.b16 %v4329, %v4321
    %v4714 = vpack.c.b16 %v4330, %v4322
    %v4715 = vpack.c.b16 %v4331, %v4323
    %v4716 = vpack.c.b16 %v4332, %v4324
    %v4717 = vpack.c.b16 %v4333, %v4325
    %v4718 = vpack.c.b16 %v4342, %v4334
    %v4719 = vpack.c.b16 %v4343, %v4335
    %v4720 = vpack.c.b16 %v4344, %v4336
    %v4721 = vpack.c.b16 %v4345, %v4337
    %v4722 = vpack.c.b16 %v4346, %v4338
    %v4723 = vpack.c.b16 %v4347, %v4339
    %v4724 = vpack.c.b16 %v4348, %v4340
    %v4725 = vpack.c.b16 %v4349, %v4341
    %v4726 = vpack.c.b16 %v4358, %v4350
    %v4727 = vpack.c.b16 %v4359, %v4351
    %v4728 = vpack.c.b16 %v4360, %v4352
    %v4729 = vpack.c.b16 %v4361, %v4353
    %v4730 = vpack.c.b16 %v4362, %v4354
    %v4731 = vpack.c.b16 %v4363, %v4355
    %v4732 = vpack.c.b16 %v4364, %v4356
    %v4733 = vpack.c.b16 %v4365, %v4357
    %v4734 = vpack.c.b16 %v4374, %v4366
    %v4735 = vpack.c.b16 %v4375, %v4367
    %v4736 = vpack.c.b16 %v4376, %v4368
    %v4737 = vpack.c.b16 %v4377, %v4369
    %v4738 = vpack.c.b16 %v4378, %v4370
    %v4739 = vpack.c.b16 %v4379, %v4371
    %v4740 = vpack.c.b16 %v4380, %v4372
    %v4741 = vpack.c.b16 %v4381, %v4373
    %v4742 = vpack.c.b16 %v4390, %v4382
    %v4743 = vpack.c.b16 %v4391, %v4383
    %v4744 = vpack.c.b16 %v4392, %v4384
    %v4745 = vpack.c.b16 %v4393, %v4385
    %v4746 = vpack.c.b16 %v4394, %v4386
    %v4747 = vpack.c.b16 %v4395, %v4387
    %v4748 = vpack.c.b16 %v4396, %v4388
    %v4749 = vpack.c.b16 %v4397, %v4389
    %v4750 = vpack.c.b16 %v4406, %v4398
    %v4751 = vpack.c.b16 %v4407, %v4399
    %v4752 = vpack.c.b16 %v4408, %v4400
    %v4753 = vpack.c.b16 %v4409, %v4401
    %v4754 = vpack.c.b16 %v4410, %v4402
    %v4755 = vpack.c.b16 %v4411, %v4403
    %v4756 = vpack.c.b16 %v4412, %v4404
    %v4757 = vpack.c.b16 %v4413, %v4405
    %v4758 = vpack.c.b16 %v4422, %v4414
    %v4759 = vpack.c.b16 %v4423, %v4415
    %v4760 = vpack.c.b16 %v4424, %v4416
    %v4761 = vpack.c.b16 %v4425, %v4417
    %v4762 = vpack.c.b16 %v4426, %v4418
    %v4763 = vpack.c.b16 %v4427, %v4419
    %v4764 = vpack.c.b16 %v4428, %v4420
    %v4765 = vpack.c.b16 %v4429, %v4421
    %v4766 = vpack.c.b16 %v4438, %v4430
    %v4767 = vpack.c.b16 %v4439, %v4431
    %v4768 = vpack.c.b16 %v4440, %v4432
    %v4769 = vpack.c.b16 %v4441, %v4433
    %v4770 = vpack.c.b16 %v4442, %v4434
    %v4771 = vpack.c.b16 %v4443, %v4435
    %v4772 = vpack.c.b16 %v4444, %v4436
    %v4773 = vpack.c.b16 %v4445, %v4437
    %v4774 = vpack.c.b16 %v4454, %v4446
    %v4775 = vpack.c.b16 %v4455, %v4447
    %v4776 = vpack.c.b16 %v4456, %v4448
    %v4777 = vpack.c.b16 %v4457, %v4449
    %v4778 = vpack.c.b16 %v4458, %v4450
    %v4779 = vpack.c.b16 %v4459, %v4451
    %v4780 = vpack.c.b16 %v4460, %v4452
    %v4781 = vpack.c.b16 %v4461, %v4453
    %v4782 = vpack.c.b16 %v4470, %v4462
    %v4783 = vpack.c.b16 %v4471, %v4463
    %v4784 = vpack.c.b16 %v4472, %v4464
    %v4785 = vpack.c.b16 %v4473, %v4465
    %v4786 = vpack.c.b16 %v4474, %v4466
    %v4787 = vpack.c.b16 %v4475, %v4467
    %v4788 = vpack.c.b16 %v4476, %v4468
    %v4789 = vpack.c.b16 %v4477, %v4469
    %v4790 = vpack.c.b16 %v4486, %v4478
    %v4791 = vpack.c.b16 %v4487, %v4479
    %v4792 = vpack.c.b16 %v4488, %v4480
    %v4793 = vpack.c.b16 %v4489, %v4481
    %v4794 = vpack.c.b16 %v4490, %v4482
    %v4795 = vpack.c.b16 %v4491, %v4483
    %v4796 = vpack.c.b16 %v4492, %v4484
    %v4797 = vpack.c.b16 %v4493, %v4485
    %v4798 = vpack.c.b16 %v4502, %v4494
    %v4799 = vpack.c.b16 %v4503, %v4495
    %v4800 = vpack.c.b16 %v4504, %v4496
    %v4801 = vpack.c.b16 %v4505, %v4497
    %v4802 = vpack.c.b16 %v4506, %v4498
    %v4803 = vpack.c.b16 %v4507, %v4499
    %v4804 = vpack.c.b16 %v4508, %v4500
    %v4805 = vpack.c.b16 %v4509, %v4501
    %v4806 = vpack.c.b16 %v4518, %v4510
    %v4807 = vpack.c.b16 %v4519, %v4511
    %v4808 = vpack.c.b16 %v4520, %v4512
    %v4809 = vpack.c.b16 %v4521, %v4513
    %v4810 = vpack.c.b16 %v4522, %v4514
    %v4811 = vpack.c.b16 %v4523, %v4515
    %v4812 = vpack.c.b16 %v4524, %v4516
    %v4813 = vpack.c.b16 %v4525, %v4517
    %v4814 = vpack.c.b16 %v4534, %v4526
    %v4815 = vpack.c.b16 %v4535, %v4527
    %v4816 = vpack.c.b16 %v4536, %v4528
    %v4817 = vpack.c.b16 %v4537, %v4529
    %v4818 = vpack.c.b16 %v4538, %v4530
    %v4819 = vpack.c.b16 %v4539, %v4531
    %v4820 = vpack.c.b16 %v4540, %v4532
    %v4821 = vpack.c.b16 %v4541, %v4533
    %v4822 = vpack.c.b16 %v4550, %v4542
    %v4823 = vpack.c.b16 %v4551, %v4543
    %v4824 = vpack.c.b16 %v4552, %v4544
    %v4825 = vpack.c.b16 %v4553, %v4545
    %v4826 = vpack.c.b16 %v4554, %v4546
    %v4827 = vpack.c.b16 %v4555, %v4547
    %v4828 = vpack.c.b16 %v4556, %v4548
    %v4829 = vpack.c.b16 %v4557, %v4549
    %v4830 = vpack.c.b16 %v4566, %v4558
    %v4831 = vpack.c.b16 %v4567, %v4559
    %v4832 = vpack.c.b16 %v4568, %v4560
    %v4833 = vpack.c.b16 %v4569, %v4561
    %v4834 = vpack.c.b16 %v4570, %v4562
    %v4835 = vpack.c.b16 %v4571, %v4563
    %v4836 = vpack.c.b16 %v4572, %v4564
    %v4837 = vpack.c.b16 %v4573, %v4565
    %v4838 = vpack.c.b16 %v4582, %v4574
    %v4839 = vpack.c.b16 %v4583, %v4575
    %v4840 = vpack.c.b16 %v4584, %v4576
    %v4841 = vpack.c.b16 %v4585, %v4577
    %v4842 = vpack.c.b16 %v4586, %v4578
    %v4843 = vpack.c.b16 %v4587, %v4579
    %v4844 = vpack.c.b16 %v4588, %v4580
    %v4845 = vpack.c.b16 %v4589, %v4581
    %5102 = vmatprep.subr.bf16.mxu0 %v4647
    %5103 = vmatpush1.bf16.msra.mxu0 %v4646
    %5104 = vmatprep.subr.bf16.mxu0 %v4639
    %5105 = vmatpush1.bf16.msra.mxu0 %v4638
    %5106 = vmatprep.subr.bf16.mxu0 %v4631
    %5107 = vmatpush1.bf16.msra.mxu0 %v4630
    %5108 = vmatprep.subr.bf16.mxu0 %v4623
    %5109 = vmatpush1.bf16.msra.mxu0 %v4622
    %5110 = vmatprep.subr.bf16.mxu0 %v4615
    %5111 = vmatpush1.bf16.msra.mxu0 %v4614
    %5112 = vmatprep.subr.bf16.mxu0 %v4607
    %5113 = vmatpush1.bf16.msra.mxu0 %v4606
    %5114 = vmatprep.subr.bf16.mxu0 %v4599
    %5115 = vmatpush1.bf16.msra.mxu0 %v4598
    %5116 = vmatprep.subr.bf16.mxu0 %v4591
    %5117 = vmatpush1.bf16.msra.mxu0 %v4590
    %5118 = vmatprep.subr.bf16.mxu0 %v4711
    %5119 = vmatpush2.bf16.msra.mxu0 %v4710
    %5120 = vmatprep.subr.bf16.mxu0 %v4703
    %5121 = vmatpush2.bf16.msra.mxu0 %v4702
    %5122 = vmatprep.subr.bf16.mxu0 %v4695
    %5123 = vmatpush2.bf16.msra.mxu0 %v4694
    %5124 = vmatprep.subr.bf16.mxu0 %v4687
    %5125 = vmatpush2.bf16.msra.mxu0 %v4686
    %5126 = vmatprep.subr.bf16.mxu0 %v4679
    %5127 = vmatpush2.bf16.msra.mxu0 %v4678
    %5128 = vmatprep.subr.bf16.mxu0 %v4671
    %5129 = vmatpush2.bf16.msra.mxu0 %v4670
    %5130 = vmatprep.subr.bf16.mxu0 %v4663
    %5131 = vmatpush2.bf16.msra.mxu0 %v4662
    %5132 = vmatprep.subr.bf16.mxu0 %v4655
    %5133 = vmatpush2.bf16.msra.mxu0 %v4654
    %5134 = vmatprep.mubr.bf16.mxu0 %v3778
    %5135 = vmatmul.mubr.bf16.gmra.mxu0 %v3777
    %v5136 = vpop.f32.mrf.mxu0
    %v5137 = vadd.f32 %v3785, %v5136
    %v5138 = vpop.f32.mrf.mxu0
    %v5139 = vadd.f32 %v3789, %v5138
    %v5140 = vpop.f32.mrf.mxu0
    %v5141 = vpop.f32.mrf.mxu0
    %5142 = vdwg.mxu0
    %5143 = vmatprep.subr.bf16.mxu0 %v4775
    %5144 = vmatpush1.bf16.msra.mxu0 %v4774
    %5145 = vmatprep.subr.bf16.mxu0 %v4767
    %5146 = vmatpush1.bf16.msra.mxu0 %v4766
    %5147 = vmatprep.subr.bf16.mxu0 %v4759
    %5148 = vmatpush1.bf16.msra.mxu0 %v4758
    %5149 = vmatprep.subr.bf16.mxu0 %v4751
    %5150 = vmatpush1.bf16.msra.mxu0 %v4750
    %5151 = vmatprep.subr.bf16.mxu0 %v4743
    %5152 = vmatpush1.bf16.msra.mxu0 %v4742
    %5153 = vmatprep.subr.bf16.mxu0 %v4735
    %5154 = vmatpush1.bf16.msra.mxu0 %v4734
    %5155 = vmatprep.subr.bf16.mxu0 %v4727
    %5156 = vmatpush1.bf16.msra.mxu0 %v4726
    %5157 = vmatprep.subr.bf16.mxu0 %v4719
    %5158 = vmatpush1.bf16.msra.mxu0 %v4718
    %5159 = vmatprep.subr.bf16.mxu0 %v4839
    %5160 = vmatpush2.bf16.msra.mxu0 %v4838
    %5161 = vmatprep.subr.bf16.mxu0 %v4831
    %5162 = vmatpush2.bf16.msra.mxu0 %v4830
    %5163 = vmatprep.subr.bf16.mxu0 %v4823
    %5164 = vmatpush2.bf16.msra.mxu0 %v4822
    %5165 = vmatprep.subr.bf16.mxu0 %v4815
    %5166 = vmatpush2.bf16.msra.mxu0 %v4814
    %5167 = vmatprep.subr.bf16.mxu0 %v4807
    %5168 = vmatpush2.bf16.msra.mxu0 %v4806
    %5169 = vmatprep.subr.bf16.mxu0 %v4799
    %5170 = vmatpush2.bf16.msra.mxu0 %v4798
    %5171 = vmatprep.subr.bf16.mxu0 %v4791
    %5172 = vmatpush2.bf16.msra.mxu0 %v4790
    %5173 = vmatprep.subr.bf16.mxu0 %v4783
    %5174 = vmatpush2.bf16.msra.mxu0 %v4782
    %5175 = vmatprep.mubr.bf16.mxu0 %v3780
    %5176 = vmatmul.mubr.bf16.gmra.mxu0 %v3779
    %v5177 = vpop.f32.mrf.mxu0
    %v5178 = vadd.f32 %v5137, %v5177
    %v5179 = vpop.f32.mrf.mxu0
    %v5180 = vadd.f32 %v5139, %v5179
    %v5181 = vpop.f32.mrf.mxu0
    %v5182 = vpop.f32.mrf.mxu0
    %5183 = vdwg.mxu0
    %5184 = vmatprep.subr.bf16.mxu0 %v4649
    %5185 = vmatpush1.bf16.msra.mxu0 %v4648
    %5186 = vmatprep.subr.bf16.mxu0 %v4641
    %5187 = vmatpush1.bf16.msra.mxu0 %v4640
    %5188 = vmatprep.subr.bf16.mxu0 %v4633
    %5189 = vmatpush1.bf16.msra.mxu0 %v4632
    %5190 = vmatprep.subr.bf16.mxu0 %v4625
    %5191 = vmatpush1.bf16.msra.mxu0 %v4624
    %5192 = vmatprep.subr.bf16.mxu0 %v4617
    %5193 = vmatpush1.bf16.msra.mxu0 %v4616
    %5194 = vmatprep.subr.bf16.mxu0 %v4609
    %5195 = vmatpush1.bf16.msra.mxu0 %v4608
    %5196 = vmatprep.subr.bf16.mxu0 %v4601
    %5197 = vmatpush1.bf16.msra.mxu0 %v4600
    %5198 = vmatprep.subr.bf16.mxu0 %v4593
    %5199 = vmatpush1.bf16.msra.mxu0 %v4592
    %5200 = vmatprep.subr.bf16.mxu0 %v4713
    %5201 = vmatpush2.bf16.msra.mxu0 %v4712
    %5202 = vmatprep.subr.bf16.mxu0 %v4705
    %5203 = vmatpush2.bf16.msra.mxu0 %v4704
    %5204 = vmatprep.subr.bf16.mxu0 %v4697
    %5205 = vmatpush2.bf16.msra.mxu0 %v4696
    %5206 = vmatprep.subr.bf16.mxu0 %v4689
    %5207 = vmatpush2.bf16.msra.mxu0 %v4688
    %5208 = vmatprep.subr.bf16.mxu0 %v4681
    %5209 = vmatpush2.bf16.msra.mxu0 %v4680
    %5210 = vmatprep.subr.bf16.mxu0 %v4673
    %5211 = vmatpush2.bf16.msra.mxu0 %v4672
    %5212 = vmatprep.subr.bf16.mxu0 %v4665
    %5213 = vmatpush2.bf16.msra.mxu0 %v4664
    %5214 = vmatprep.subr.bf16.mxu0 %v4657
    %5215 = vmatpush2.bf16.msra.mxu0 %v4656
    %5216 = vmatprep.mubr.bf16.mxu0 %v3778
    %5217 = vmatmul.mubr.bf16.gmra.mxu0 %v3777
    %v5218 = vpop.f32.mrf.mxu0
    %v5219 = vadd.f32 %v3793, %v5218
    %v5220 = vpop.f32.mrf.mxu0
    %v5221 = vadd.f32 %v3797, %v5220
    %v5222 = vpop.f32.mrf.mxu0
    %v5223 = vpop.f32.mrf.mxu0
    %5224 = vdwg.mxu0
    %5225 = vmatprep.subr.bf16.mxu0 %v4777
    %5226 = vmatpush1.bf16.msra.mxu0 %v4776
    %5227 = vmatprep.subr.bf16.mxu0 %v4769
    %5228 = vmatpush1.bf16.msra.mxu0 %v4768
    %5229 = vmatprep.subr.bf16.mxu0 %v4761
    %5230 = vmatpush1.bf16.msra.mxu0 %v4760
    %5231 = vmatprep.subr.bf16.mxu0 %v4753
    %5232 = vmatpush1.bf16.msra.mxu0 %v4752
    %5233 = vmatprep.subr.bf16.mxu0 %v4745
    %5234 = vmatpush1.bf16.msra.mxu0 %v4744
    %5235 = vmatprep.subr.bf16.mxu0 %v4737
    %5236 = vmatpush1.bf16.msra.mxu0 %v4736
    %5237 = vmatprep.subr.bf16.mxu0 %v4729
    %5238 = vmatpush1.bf16.msra.mxu0 %v4728
    %5239 = vmatprep.subr.bf16.mxu0 %v4721
    %5240 = vmatpush1.bf16.msra.mxu0 %v4720
    %5241 = vmatprep.subr.bf16.mxu0 %v4841
    %5242 = vmatpush2.bf16.msra.mxu0 %v4840
    %5243 = vmatprep.subr.bf16.mxu0 %v4833
    %5244 = vmatpush2.bf16.msra.mxu0 %v4832
    %5245 = vmatprep.subr.bf16.mxu0 %v4825
    %5246 = vmatpush2.bf16.msra.mxu0 %v4824
    %5247 = vmatprep.subr.bf16.mxu0 %v4817
    %5248 = vmatpush2.bf16.msra.mxu0 %v4816
    %5249 = vmatprep.subr.bf16.mxu0 %v4809
    %5250 = vmatpush2.bf16.msra.mxu0 %v4808
    %5251 = vmatprep.subr.bf16.mxu0 %v4801
    %5252 = vmatpush2.bf16.msra.mxu0 %v4800
    %5253 = vmatprep.subr.bf16.mxu0 %v4793
    %5254 = vmatpush2.bf16.msra.mxu0 %v4792
    %5255 = vmatprep.subr.bf16.mxu0 %v4785
    %5256 = vmatpush2.bf16.msra.mxu0 %v4784
    %5257 = vmatprep.mubr.bf16.mxu0 %v3780
    %5258 = vmatmul.mubr.bf16.gmra.mxu0 %v3779
    %v5259 = vpop.f32.mrf.mxu0
    %v5260 = vadd.f32 %v5219, %v5259
    %v5261 = vpop.f32.mrf.mxu0
    %v5262 = vadd.f32 %v5221, %v5261
    %v5263 = vpop.f32.mrf.mxu0
    %v5264 = vpop.f32.mrf.mxu0
    %5265 = vdwg.mxu0
    %5266 = vmatprep.subr.bf16.mxu0 %v4651
    %5267 = vmatpush1.bf16.msra.mxu0 %v4650
    %5268 = vmatprep.subr.bf16.mxu0 %v4643
    %5269 = vmatpush1.bf16.msra.mxu0 %v4642
    %5270 = vmatprep.subr.bf16.mxu0 %v4635
    %5271 = vmatpush1.bf16.msra.mxu0 %v4634
    %5272 = vmatprep.subr.bf16.mxu0 %v4627
    %5273 = vmatpush1.bf16.msra.mxu0 %v4626
    %5274 = vmatprep.subr.bf16.mxu0 %v4619
    %5275 = vmatpush1.bf16.msra.mxu0 %v4618
    %5276 = vmatprep.subr.bf16.mxu0 %v4611
    %5277 = vmatpush1.bf16.msra.mxu0 %v4610
    %5278 = vmatprep.subr.bf16.mxu0 %v4603
    %5279 = vmatpush1.bf16.msra.mxu0 %v4602
    %5280 = vmatprep.subr.bf16.mxu0 %v4595
    %5281 = vmatpush1.bf16.msra.mxu0 %v4594
    %5282 = vmatprep.subr.bf16.mxu0 %v4715
    %5283 = vmatpush2.bf16.msra.mxu0 %v4714
    %5284 = vmatprep.subr.bf16.mxu0 %v4707
    %5285 = vmatpush2.bf16.msra.mxu0 %v4706
    %5286 = vmatprep.subr.bf16.mxu0 %v4699
    %5287 = vmatpush2.bf16.msra.mxu0 %v4698
    %5288 = vmatprep.subr.bf16.mxu0 %v4691
    %5289 = vmatpush2.bf16.msra.mxu0 %v4690
    %5290 = vmatprep.subr.bf16.mxu0 %v4683
    %5291 = vmatpush2.bf16.msra.mxu0 %v4682
    %5292 = vmatprep.subr.bf16.mxu0 %v4675
    %5293 = vmatpush2.bf16.msra.mxu0 %v4674
    %5294 = vmatprep.subr.bf16.mxu0 %v4667
    %5295 = vmatpush2.bf16.msra.mxu0 %v4666
    %5296 = vmatprep.subr.bf16.mxu0 %v4659
    %5297 = vmatpush2.bf16.msra.mxu0 %v4658
    %5298 = vmatprep.mubr.bf16.mxu0 %v3778
    %5299 = vmatmul.mubr.bf16.gmra.mxu0 %v3777
    %v5300 = vpop.f32.mrf.mxu0
    %v5301 = vadd.f32 %v3801, %v5300
    %v5302 = vpop.f32.mrf.mxu0
    %v5303 = vadd.f32 %v3805, %v5302
    %v5304 = vpop.f32.mrf.mxu0
    %v5305 = vpop.f32.mrf.mxu0
    %5306 = vdwg.mxu0
    %5307 = vmatprep.subr.bf16.mxu0 %v4779
    %5308 = vmatpush1.bf16.msra.mxu0 %v4778
    %5309 = vmatprep.subr.bf16.mxu0 %v4771
    %5310 = vmatpush1.bf16.msra.mxu0 %v4770
    %5311 = vmatprep.subr.bf16.mxu0 %v4763
    %5312 = vmatpush1.bf16.msra.mxu0 %v4762
    %5313 = vmatprep.subr.bf16.mxu0 %v4755
    %5314 = vmatpush1.bf16.msra.mxu0 %v4754
    %5315 = vmatprep.subr.bf16.mxu0 %v4747
    %5316 = vmatpush1.bf16.msra.mxu0 %v4746
    %5317 = vmatprep.subr.bf16.mxu0 %v4739
    %5318 = vmatpush1.bf16.msra.mxu0 %v4738
    %5319 = vmatprep.subr.bf16.mxu0 %v4731
    %5320 = vmatpush1.bf16.msra.mxu0 %v4730
    %5321 = vmatprep.subr.bf16.mxu0 %v4723
    %5322 = vmatpush1.bf16.msra.mxu0 %v4722
    %5323 = vmatprep.subr.bf16.mxu0 %v4843
    %5324 = vmatpush2.bf16.msra.mxu0 %v4842
    %5325 = vmatprep.subr.bf16.mxu0 %v4835
    %5326 = vmatpush2.bf16.msra.mxu0 %v4834
    %5327 = vmatprep.subr.bf16.mxu0 %v4827
    %5328 = vmatpush2.bf16.msra.mxu0 %v4826
    %5329 = vmatprep.subr.bf16.mxu0 %v4819
    %5330 = vmatpush2.bf16.msra.mxu0 %v4818
    %5331 = vmatprep.subr.bf16.mxu0 %v4811
    %5332 = vmatpush2.bf16.msra.mxu0 %v4810
    %5333 = vmatprep.subr.bf16.mxu0 %v4803
    %5334 = vmatpush2.bf16.msra.mxu0 %v4802
    %5335 = vmatprep.subr.bf16.mxu0 %v4795
    %5336 = vmatpush2.bf16.msra.mxu0 %v4794
    %5337 = vmatprep.subr.bf16.mxu0 %v4787
    %5338 = vmatpush2.bf16.msra.mxu0 %v4786
    %5339 = vmatprep.mubr.bf16.mxu0 %v3780
    %5340 = vmatmul.mubr.bf16.gmra.mxu0 %v3779
    %v5341 = vpop.f32.mrf.mxu0
    %v5342 = vadd.f32 %v5301, %v5341
    %v5343 = vpop.f32.mrf.mxu0
    %v5344 = vadd.f32 %v5303, %v5343
    %v5345 = vpop.f32.mrf.mxu0
    %v5346 = vpop.f32.mrf.mxu0
    %5347 = vdwg.mxu0
    %5348 = vmatprep.subr.bf16.mxu0 %v4653
    %5349 = vmatpush1.bf16.msra.mxu0 %v4652
    %5350 = vmatprep.subr.bf16.mxu0 %v4645
    %5351 = vmatpush1.bf16.msra.mxu0 %v4644
    %5352 = vmatprep.subr.bf16.mxu0 %v4637
    %5353 = vmatpush1.bf16.msra.mxu0 %v4636
    %5354 = vmatprep.subr.bf16.mxu0 %v4629
    %5355 = vmatpush1.bf16.msra.mxu0 %v4628
    %5356 = vmatprep.subr.bf16.mxu0 %v4621
    %5357 = vmatpush1.bf16.msra.mxu0 %v4620
    %5358 = vmatprep.subr.bf16.mxu0 %v4613
    %5359 = vmatpush1.bf16.msra.mxu0 %v4612
    %5360 = vmatprep.subr.bf16.mxu0 %v4605
    %5361 = vmatpush1.bf16.msra.mxu0 %v4604
    %5362 = vmatprep.subr.bf16.mxu0 %v4597
    %5363 = vmatpush1.bf16.msra.mxu0 %v4596
    %5364 = vmatprep.subr.bf16.mxu0 %v4717
    %5365 = vmatpush2.bf16.msra.mxu0 %v4716
    %5366 = vmatprep.subr.bf16.mxu0 %v4709
    %5367 = vmatpush2.bf16.msra.mxu0 %v4708
    %5368 = vmatprep.subr.bf16.mxu0 %v4701
    %5369 = vmatpush2.bf16.msra.mxu0 %v4700
    %5370 = vmatprep.subr.bf16.mxu0 %v4693
    %5371 = vmatpush2.bf16.msra.mxu0 %v4692
    %5372 = vmatprep.subr.bf16.mxu0 %v4685
    %5373 = vmatpush2.bf16.msra.mxu0 %v4684
    %5374 = vmatprep.subr.bf16.mxu0 %v4677
    %5375 = vmatpush2.bf16.msra.mxu0 %v4676
    %5376 = vmatprep.subr.bf16.mxu0 %v4669
    %5377 = vmatpush2.bf16.msra.mxu0 %v4668
    %5378 = vmatprep.subr.bf16.mxu0 %v4661
    %5379 = vmatpush2.bf16.msra.mxu0 %v4660
    %5380 = vmatprep.mubr.bf16.mxu0 %v3778
    %5381 = vmatmul.mubr.bf16.gmra.mxu0 %v3777
    %v5382 = vpop.f32.mrf.mxu0
    %v5383 = vadd.f32 %v3809, %v5382
    %v5384 = vpop.f32.mrf.mxu0
    %v5385 = vadd.f32 %v3813, %v5384
    %v5386 = vpop.f32.mrf.mxu0
    %v5387 = vpop.f32.mrf.mxu0
    %5388 = vdwg.mxu0
    %5389 = vmatprep.subr.bf16.mxu0 %v4781
    %5390 = vmatpush1.bf16.msra.mxu0 %v4780
    %5391 = vmatprep.subr.bf16.mxu0 %v4773
    %5392 = vmatpush1.bf16.msra.mxu0 %v4772
    %5393 = vmatprep.subr.bf16.mxu0 %v4765
    %5394 = vmatpush1.bf16.msra.mxu0 %v4764
    %5395 = vmatprep.subr.bf16.mxu0 %v4757
    %5396 = vmatpush1.bf16.msra.mxu0 %v4756
    %5397 = vmatprep.subr.bf16.mxu0 %v4749
    %5398 = vmatpush1.bf16.msra.mxu0 %v4748
    %5399 = vmatprep.subr.bf16.mxu0 %v4741
    %5400 = vmatpush1.bf16.msra.mxu0 %v4740
    %5401 = vmatprep.subr.bf16.mxu0 %v4733
    %5402 = vmatpush1.bf16.msra.mxu0 %v4732
    %5403 = vmatprep.subr.bf16.mxu0 %v4725
    %5404 = vmatpush1.bf16.msra.mxu0 %v4724
    %5405 = vmatprep.subr.bf16.mxu0 %v4845
    %5406 = vmatpush2.bf16.msra.mxu0 %v4844
    %5407 = vmatprep.subr.bf16.mxu0 %v4837
    %5408 = vmatpush2.bf16.msra.mxu0 %v4836
    %5409 = vmatprep.subr.bf16.mxu0 %v4829
    %5410 = vmatpush2.bf16.msra.mxu0 %v4828
    %5411 = vmatprep.subr.bf16.mxu0 %v4821
    %5412 = vmatpush2.bf16.msra.mxu0 %v4820
    %5413 = vmatprep.subr.bf16.mxu0 %v4813
    %5414 = vmatpush2.bf16.msra.mxu0 %v4812
    %5415 = vmatprep.subr.bf16.mxu0 %v4805
    %5416 = vmatpush2.bf16.msra.mxu0 %v4804
    %5417 = vmatprep.subr.bf16.mxu0 %v4797
    %5418 = vmatpush2.bf16.msra.mxu0 %v4796
    %5419 = vmatprep.subr.bf16.mxu0 %v4789
    %5420 = vmatpush2.bf16.msra.mxu0 %v4788
    %5421 = vmatprep.mubr.bf16.mxu0 %v3780
    %5422 = vmatmul.mubr.bf16.gmra.mxu0 %v3779
    %v5423 = vpop.f32.mrf.mxu0
    %v5424 = vadd.f32 %v5383, %v5423
    %v5425 = vpop.f32.mrf.mxu0
    %v5426 = vadd.f32 %v5385, %v5425
    %v5427 = vpop.f32.mrf.mxu0
    %v5428 = vpop.f32.mrf.mxu0
    %5429 = vdwg.mxu0
    %5430 = vst [vmem:[#allocation20] sm:$0xff] %v5178
    %5431 = vst [vmem:[#allocation20 + $0x8] sm:$0xff] %v5180
    %5432 = vst [vmem:[#allocation20 + $0x10] sm:$0xff] %v5260
    %5433 = vst [vmem:[#allocation20 + $0x18] sm:$0xff] %v5262
    %5434 = vst [vmem:[#allocation20 + $0x20] sm:$0xff] %v5342
    %5435 = vst [vmem:[#allocation20 + $0x28] sm:$0xff] %v5344
    %5436 = vst [vmem:[#allocation20 + $0x30] sm:$0xff] %v5424
    %5437 = vst [vmem:[#allocation20 + $0x38] sm:$0xff] %v5426
    // Predicated region
    $region106: #{tpu_custom_call.1} parent=1 // pred_check
      _
    $region107: #{tpu_custom_call.1} parent=1 // pred_check_branch
      %5439 = sbr.rel (0) target = $region109
    $region108: #{tpu_custom_call.1} parent=1 // pred_region
      %s5441 = ssub.s32 1024, 1024
      %5442 = vsyncadd [#allocation4], %s5441
      %s5444 = sshll.u32 [#allocation20], 4
      %s5445 = int_to_ptr.vmem [resolvable:$true] %s5444
      %5447 = dma.vmem_to_hbm [thread:$0]  %s5445, 1024, %s15, [#allocation4]
    $region109: #{tpu_custom_call.1} parent=1 // pred_fallthru
      _
    // Predicated region
    $region110: #{tpu_custom_call.1} parent=1 // pred_check
      _
    $region111: #{tpu_custom_call.1} parent=1 // pred_check_branch
      %5449 = sbr.rel (0) target = $region113
    $region112: #{tpu_custom_call.1} parent=1 // pred_region
      %5450 = dma.done [#allocation4], 1024
    $region113: #{tpu_custom_call.1} parent=1 // pred_fallthru
      _
    %5451 = vsyncpa [#allocation3], 1
    %5452 = vsyncpa [#allocation6], 1
    %5453 = vsyncpa [#allocation9], 1
    %5454 = vsyncpa [#allocation12], 1
    %5455 = vsyncpa [#allocation15], 1
    %5456 = vsyncpa [#allocation18], 1
    %5457 = vsyncpa [#allocation4], 1

</llo_original>
